<compile_context>
chip_gen: v6e
topology: v6e:2x2x1
jax: 0.10.0
libtpu: 0.0.40
codegen_flags: <defaults>
</compile_context>

<pallas_src>
import functools

import jax
import jax.numpy as jnp
from jax import lax
from jax.experimental import pallas as pl
from jax.experimental.pallas import tpu as pltpu

INPUT_SIZE = 12
HIDDEN = 64          # logical LSTM hidden size (matches the PyTorch module)
HP = 128             # hidden padded to one full 128-lane span
GW = 4 * HP          # padded gate width: [ i | f | o | g ], each 128 lanes
NUM_CLASSES = 8
OUT_PAD = 128        # lane-dense padded logits / softmax width
T_CHUNK_MAX = 32     # time-chunk size (2 x 32 x 128 x 512 bf16 ~ 8 MiB double-buffered)


# ----------------------------------------------------------------------------- kernel
def mfcc_lstm_kernel(
    gates_x_ref,                 # (Tc, Bt, 512) bf16  precomputed x@W_ih + b chunk
    w_hh_ref,                    # (128, 512)  bf16, zero-padded rows/cols
    w1_ref, b1_ref,              # (128, 256)  bf16, (1, 256)  f32
    w2_ref, b2_ref,              # (256, 1024) bf16, (1, 1024) f32
    w3_ref, b3_ref,              # (1024, 256) bf16, (1, 256)  f32
    w4_ref, b4_ref,              # (256, 128)  f32,  (1, 128)  f32  (cols 8.. are 0)
    out_ref,                     # (Bt, 128)   f32
    h_scr, c_scr,                # VMEM (Bt, 128) f32 -- carried across time chunks
    *, t_total,
):
    tc = pl.program_id(1)
    n_tc = pl.num_programs(1)
    t_chunk, _, _ = gates_x_ref.shape

    @pl.when(tc == 0)
    def _():
        h_scr[...] = jnp.zeros_like(h_scr)
        c_scr[...] = jnp.zeros_like(c_scr)

    w_hh = w_hh_ref[...]                          # bf16, hoisted out of the loop
    needs_mask = (t_total % t_chunk) != 0         # static (padded tail timesteps)

    def step(t, carry):
        h, c = carry
        # Only the recurrent matmul remains on the serial critical path (bf16 MXU).
        gates = gates_x_ref[t].astype(jnp.float32) + jnp.dot(
            h.astype(jnp.bfloat16), w_hh, preferred_element_type=jnp.float32)
        sig = jax.nn.sigmoid(gates[:, : 3 * HP])  # i | f | o : one contiguous EUP pass
        g_g = jnp.tanh(gates[:, 3 * HP:])         # g
        i_g = sig[:, 0 * HP:1 * HP]
        f_g = sig[:, 1 * HP:2 * HP]
        o_g = sig[:, 2 * HP:3 * HP]
        c_new = f_g * c + i_g * g_g               # padded lanes stay exactly 0
        h_new = o_g * jnp.tanh(c_new)
        if needs_mask:                            # hold state on padded timesteps
            valid = (tc * t_chunk + t) < t_total
            h_new = jnp.where(valid, h_new, h)
            c_new = jnp.where(valid, c_new, c)
        return h_new, c_new

    h, c = lax.fori_loop(0, t_chunk, step, (h_scr[...], c_scr[...]),
                         unroll=min(t_chunk, 8))
    h_scr[...] = h
    c_scr[...] = c

    @pl.when(tc == n_tc - 1)
    def _():
        # FC head (dropouts are identity at inference). bf16 weights, f32 accumulation.
        z = jnp.maximum(
            jnp.dot(h.astype(jnp.bfloat16), w1_ref[...],
                    preferred_element_type=jnp.float32) + b1_ref[...], 0.0)
        z = jnp.maximum(
            jnp.dot(z.astype(jnp.bfloat16), w2_ref[...],
                    preferred_element_type=jnp.float32) + b2_ref[...], 0.0)
        z = jnp.maximum(
            jnp.dot(z.astype(jnp.bfloat16), w3_ref[...],
                    preferred_element_type=jnp.float32) + b3_ref[...], 0.0)
        logits = jnp.dot(z, w4_ref[...],
                         preferred_element_type=jnp.float32) + b4_ref[...]
        # softmax over the first NUM_CLASSES lanes (remaining lanes are padding)
        col = lax.broadcasted_iota(jnp.int32, logits.shape, 1)
        logits = jnp.where(col < NUM_CLASSES, logits, -1e30)
        m = jnp.max(logits, axis=1, keepdims=True)
        e = jnp.exp(logits - m)
        out_ref[...] = e / jnp.sum(e, axis=1, keepdims=True)


# ----------------------------------------------------------------------- param packing
def _reorder_and_pad_gates(a):
    """(rows, 4*64) in PyTorch gate order (i,f,g,o) ->
       (rows, 4*128) in kernel order (i,f,o,g), each gate zero-padded 64->128 lanes."""
    gi = a[:, 0 * HIDDEN:1 * HIDDEN]
    gf = a[:, 1 * HIDDEN:2 * HIDDEN]
    gg = a[:, 2 * HIDDEN:3 * HIDDEN]
    go = a[:, 3 * HIDDEN:4 * HIDDEN]
    pad = lambda g: jnp.pad(g, ((0, 0), (0, HP - HIDDEN)))
    return jnp.concatenate([pad(gi), pad(gf), pad(go), pad(gg)], axis=1)


def pack_params_for_kernel(params):
    (w_ih, w_hh, b_lstm, w1, b1, w2, b2, w3, b3, w4, b4) = params
    w_ih_p = _reorder_and_pad_gates(w_ih)                                # (12, 512)
    w_hh_p = jnp.pad(_reorder_and_pad_gates(w_hh),
                     ((0, HP - HIDDEN), (0, 0)))                         # (128, 512)
    b_p = _reorder_and_pad_gates(b_lstm)                                 # (1, 512)
    w1_p = jnp.pad(w1, ((0, HP - HIDDEN), (0, 0)))                       # (128, 256)
    w4_p = jnp.pad(w4, ((0, 0), (0, OUT_PAD - NUM_CLASSES)))             # (256, 128)
    b4_p = jnp.pad(b4, ((0, 0), (0, OUT_PAD - NUM_CLASSES)))             # (1, 128)
    return dict(
        w_ih=w_ih_p, b=b_p,
        w_hh=w_hh_p.astype(jnp.bfloat16),
        w1=w1_p.astype(jnp.bfloat16), b1=b1,
        w2=w2.astype(jnp.bfloat16), b2=b2,
        w3=w3.astype(jnp.bfloat16), b3=b3,
        w4=w4_p, b4=b4_p,
    )


# ---------------------------------------------------------------------------- wrapper
def mfcc_lstm_forward(x, params):
    """x: (B, 12, T) float32.  Returns (B, 8) softmax probabilities."""
    B, C, T = x.shape
    assert C == INPUT_SIZE
    kp = pack_params_for_kernel(params)

    # One batch tile of up to 128 rows (the grid is a serial loop -> never split a
    # sub-128 batch); B > 128 gives >=2 tiles that the "parallel" axis can shard
    # across v7x's two TensorCores.
    b_tile = min(128, ((B + 7) // 8) * 8)
    BP = ((B + b_tile - 1) // b_tile) * b_tile
    nb = BP // b_tile

    # Time chunking: gates_x is the dominant HBM->VMEM stream; Tc-step bf16 slabs are
    # double-buffered by BlockSpec pipelining behind the serial recurrence.
    t_chunk = min(T, T_CHUNK_MAX)
    n_tc = (T + t_chunk - 1) // t_chunk
    t_pad = n_tc * t_chunk

    # (B, 12, T) -> (T, BP, 12)
    x_tbf = jnp.transpose(x, (2, 0, 1)).astype(jnp.float32)
    x_tbf = jnp.pad(x_tbf, ((0, 0), (0, BP - B), (0, 0)))

    # Hoist the input projection out of the serial recurrence: one well-shaped matmul
    # in XLA (f32), stored bf16 to halve the DMA stream into the kernel.
    gates_x = x_tbf.reshape(T * BP, INPUT_SIZE) @ kp["w_ih"] + kp["b"]
    gates_x = gates_x.reshape(T, BP, GW).astype(jnp.bfloat16)
    gates_x = jnp.pad(gates_x, ((0, t_pad - T), (0, 0), (0, 0)))

    def rep(a):
        nd = a.ndim
        return pl.BlockSpec(a.shape, lambda b, tc, _nd=nd: (0,) * _nd)
    # TODO(synk): pipeline_mode=pl.Buffered(1) on the replicated weight specs would
    # reclaim ~1 MiB of double-buffered VMEM (matters most under v7x's 64 MiB).

    flops = (2 * t_pad * BP * HP * GW
             + 2 * BP * (HP * 256 + 256 * 1024 + 1024 * 256 + 256 * OUT_PAD))
    transcendentals = t_pad * BP * 5 * HP + BP * OUT_PAD
    bytes_accessed = (gates_x.size * 2 + BP * OUT_PAD * 4 + nb * (
        kp["w_hh"].size * 2 + kp["w1"].size * 2 + kp["w2"].size * 2
        + kp["w3"].size * 2 + kp["w4"].size * 4
        + (kp["b1"].size + kp["b2"].size + kp["b3"].size + kp["b4"].size) * 4))

    out = pl.pallas_call(
        functools.partial(mfcc_lstm_kernel, t_total=T),
        out_shape=jax.ShapeDtypeStruct((BP, OUT_PAD), jnp.float32),
        grid=(nb, n_tc),
        in_specs=[
            pl.BlockSpec((t_chunk, b_tile, GW), lambda b, tc: (tc, b, 0)),
            rep(kp["w_hh"]),
            rep(kp["w1"]), rep(kp["b1"]),
            rep(kp["w2"]), rep(kp["b2"]),
            rep(kp["w3"]), rep(kp["b3"]),
            rep(kp["w4"]), rep(kp["b4"]),
        ],
        out_specs=pl.BlockSpec((b_tile, OUT_PAD), lambda b, tc: (b, 0)),
        scratch_shapes=[pltpu.VMEM((b_tile, HP), jnp.float32),
                        pltpu.VMEM((b_tile, HP), jnp.float32)],
        compiler_params=pltpu.CompilerParams(
            dimension_semantics=("parallel", "arbitrary")),
        cost_estimate=pl.CostEstimate(
            flops=flops, transcendentals=transcendentals,
            bytes_accessed=bytes_accessed),
    )(gates_x, kp["w_hh"], kp["w1"], kp["b1"], kp["w2"], kp["b2"],
      kp["w3"], kp["b3"], kp["w4"], kp["b4"])
    return out[:B, :NUM_CLASSES]


# ----------------------------------------------------------------------- test harness
def make_params(key):
    """Deterministic synthetic parameters matching the PyTorch module shapes
    (pre-transposed to right-multiply form, natural gate order i,f,g,o, f32)."""
    ks = jax.random.split(key, 12)

    def u(k, shape, scale):
        return jax.random.uniform(k, shape, jnp.float32, -scale, scale)

    s_lstm = 1.0 / jnp.sqrt(HIDDEN)
    w_ih = u(ks[0], (INPUT_SIZE, 4 * HIDDEN), s_lstm)
    w_hh = u(ks[1], (HIDDEN, 4 * HIDDEN), s_lstm)
    b_ih = u(ks[2], (1, 4 * HIDDEN), s_lstm)
    b_hh = u(ks[3], (1, 4 * HIDDEN), s_lstm)
    b_lstm = b_ih + b_hh

    def linear(kw, kb, fan_in, fan_out):
        s = 1.0 / jnp.sqrt(fan_in)
        return u(kw, (fan_in, fan_out), s), u(kb, (1, fan_out), s)

    w1, b1 = linear(ks[4], ks[5], 64, 256)
    w2, b2 = linear(ks[6], ks[7], 256, 1024)
    w3, b3 = linear(ks[8], ks[9], 1024, 256)
    w4, b4 = linear(ks[10], ks[11], 256, 8)

    return (w_ih, w_hh, b_lstm, w1, b1, w2, b2, w3, b3, w4, b4)


def reference_forward(x, params):
    """Pure-JAX f32 reference of the PyTorch forward (eval mode)."""
    (w_ih, w_hh, b_lstm, w1, b1, w2, b2, w3, b3, w4, b4) = params
    xt = jnp.transpose(x, (0, 2, 1))  # (B, T, 12)
    B, T, _ = xt.shape
    h = jnp.zeros((B, HIDDEN), jnp.float32)
    c = jnp.zeros((B, HIDDEN), jnp.float32)
    for t in range(T):
        g = xt[:, t, :] @ w_ih + h @ w_hh + b_lstm
        i = jax.nn.sigmoid(g[:, 0:HIDDEN])
        f = jax.nn.sigmoid(g[:, HIDDEN:2 * HIDDEN])
        gg = jnp.tanh(g[:, 2 * HIDDEN:3 * HIDDEN])
        o = jax.nn.sigmoid(g[:, 3 * HIDDEN:4 * HIDDEN])
        c = f * c + i * gg
        h = o * jnp.tanh(c)
    z = jax.nn.relu(h @ w1 + b1)
    z = jax.nn.relu(z @ w2 + b2)
    z = jax.nn.relu(z @ w3 + b3)
    return jax.nn.softmax(z @ w4 + b4, axis=1)


if __name__ == "__main__":
    key = jax.random.PRNGKey(0)
    k_x, k_p, k_x2 = jax.random.split(key, 3)
    params = make_params(k_p)
    fwd = jax.jit(mfcc_lstm_forward)

    # Small shape: single time chunk, whole batch in one tile.
    B, T = 2, 8
    x = jax.random.normal(k_x, (B, INPUT_SIZE, T), jnp.float32)  # (B, 12, T)
    out = jax.block_until_ready(fwd(x, params))
    ref = reference_forward(x, params)
    assert out.shape == (B, NUM_CLASSES)
    assert jnp.allclose(jnp.sum(out, axis=1), 1.0, atol=1e-5)
    # bf16 recurrence / gates / FC weights -> tolerance relaxed vs the f32 reference
    assert jnp.allclose(out, ref, atol=2e-2, rtol=2e-2), "mismatch vs reference (small)"

    # Longer sequence: exercises the time-chunked grid axis and the padded-tail mask.
    B2, T2 = 4, 40
    x2 = jax.random.normal(k_x2, (B2, INPUT_SIZE, T2), jnp.float32)
    out2 = jax.block_until_ready(fwd(x2, params))
    ref2 = reference_forward(x2, params)
    assert out2.shape == (B2, NUM_CLASSES)
    assert jnp.allclose(jnp.sum(out2, axis=1), 1.0, atol=1e-5)
    assert jnp.allclose(out2, ref2, atol=3e-2, rtol=3e-2), "mismatch vs reference (chunked)"

    print("KERNEL_OK")
</pallas_src>

<mosaic_0001>
module attributes {stable_mosaic.version = 11 : i64} {
  func.func @mfcc_lstm_kernel(%arg0: i32, %arg1: i32, %arg2: memref<8x8x512xbf16, #tpu.memory_space<vmem>>, %arg3: memref<128x512xbf16, #tpu.memory_space<vmem>>, %arg4: memref<128x256xbf16, #tpu.memory_space<vmem>>, %arg5: memref<1x256xf32, #tpu.memory_space<vmem>>, %arg6: memref<256x1024xbf16, #tpu.memory_space<vmem>>, %arg7: memref<1x1024xf32, #tpu.memory_space<vmem>>, %arg8: memref<1024x256xbf16, #tpu.memory_space<vmem>>, %arg9: memref<1x256xf32, #tpu.memory_space<vmem>>, %arg10: memref<256x128xf32, #tpu.memory_space<vmem>>, %arg11: memref<1x128xf32, #tpu.memory_space<vmem>>, %arg12: memref<8x128xf32, #tpu.memory_space<vmem>>, %arg13: memref<8x128xf32, #tpu.memory_space<vmem>>, %arg14: memref<8x128xf32, #tpu.memory_space<vmem>>) attributes {dimension_semantics = [#tpu.dimension_semantics<parallel>, #tpu.dimension_semantics<arbitrary>], iteration_bounds = array<i64: 1, 1>, scalar_prefetch = 0 : i64, scratch_operands = 2 : i64, tpu.core_type = #tpu.core_type<tc>, window_params = [{transform_indices = @transform_0, window_bounds = array<i64: 8, 8, 512>}, {pipeline_mode = #tpu.pipeline_mode<synchronous>, transform_indices = @transform_1, window_bounds = array<i64: 128, 512>}, {pipeline_mode = #tpu.pipeline_mode<synchronous>, transform_indices = @transform_2, window_bounds = array<i64: 128, 256>}, {pipeline_mode = #tpu.pipeline_mode<synchronous>, transform_indices = @transform_3, window_bounds = array<i64: 1, 256>}, {pipeline_mode = #tpu.pipeline_mode<synchronous>, transform_indices = @transform_4, window_bounds = array<i64: 256, 1024>}, {pipeline_mode = #tpu.pipeline_mode<synchronous>, transform_indices = @transform_5, window_bounds = array<i64: 1, 1024>}, {pipeline_mode = #tpu.pipeline_mode<synchronous>, transform_indices = @transform_6, window_bounds = array<i64: 1024, 256>}, {pipeline_mode = #tpu.pipeline_mode<synchronous>, transform_indices = @transform_7, window_bounds = array<i64: 1, 256>}, {pipeline_mode = #tpu.pipeline_mode<synchronous>, transform_indices = @transform_8, window_bounds = array<i64: 256, 128>}, {pipeline_mode = #tpu.pipeline_mode<synchronous>, transform_indices = @transform_9, window_bounds = array<i64: 1, 128>}, {transform_indices = @transform_10, window_bounds = array<i64: 8, 128>}]} {
    %c0_i32 = arith.constant 0 : i32
    %0 = arith.cmpi eq, %arg1, %c0_i32 : i32
    %1 = arith.extui %0 : i1 to i32
    %c0_i32_0 = arith.constant 0 : i32
    %2 = arith.cmpi ne, %1, %c0_i32_0 : i32
    scf.if %2 {
      %cst_44 = arith.constant 0.000000e+00 : f32
      %195 = vector.broadcast %cst_44 : f32 to vector<8x128xf32>
      %c0_45 = arith.constant 0 : index
      %c0_46 = arith.constant 0 : index
      %196 = vector.load %arg13[%c0_45, %c0_46] : memref<8x128xf32, #tpu.memory_space<vmem>>, vector<8x128xf32>
      tpu.vector_store %arg13[%c0_45, %c0_46], %195 {strides = array<i32>} : memref<8x128xf32, #tpu.memory_space<vmem>>, vector<8x128xf32>,
      %cst_47 = arith.constant 0.000000e+00 : f32
      %197 = vector.broadcast %cst_47 : f32 to vector<8x128xf32>
      %c0_48 = arith.constant 0 : index
      %c0_49 = arith.constant 0 : index
      %198 = vector.load %arg14[%c0_48, %c0_49] : memref<8x128xf32, #tpu.memory_space<vmem>>, vector<8x128xf32>
      tpu.vector_store %arg14[%c0_48, %c0_49], %197 {strides = array<i32>} : memref<8x128xf32, #tpu.memory_space<vmem>>, vector<8x128xf32>,
    } else {
    }
    %c0 = arith.constant 0 : index
    %c0_1 = arith.constant 0 : index
    %3 = vector.load %arg3[%c0, %c0_1] : memref<128x512xbf16, #tpu.memory_space<vmem>>, vector<128x512xbf16>
    %c0_2 = arith.constant 0 : index
    %c0_3 = arith.constant 0 : index
    %4 = vector.load %arg13[%c0_2, %c0_3] : memref<8x128xf32, #tpu.memory_space<vmem>>, vector<8x128xf32>
    %c0_4 = arith.constant 0 : index
    %c0_5 = arith.constant 0 : index
    %5 = vector.load %arg14[%c0_4, %c0_5] : memref<8x128xf32, #tpu.memory_space<vmem>>, vector<8x128xf32>
    %c0_i32_6 = arith.constant 0 : i32
    %6 = arith.index_cast %c0_i32_6 : i32 to index
    %c0_7 = arith.constant 0 : index
    %c0_8 = arith.constant 0 : index
    %7 = vector.load %arg2[%6, %c0_7, %c0_8] : memref<8x8x512xbf16, #tpu.memory_space<vmem>>, vector<1x8x512xbf16>
    %8 = vector.shape_cast %7 : vector<1x8x512xbf16> to vector<8x512xbf16>
    %9 = arith.extf %8 : vector<8x512xbf16> to vector<8x512xf32>
    %10 = arith.truncf %4 : vector<8x128xf32> to vector<8x128xbf16>
    %cst = arith.constant dense<0.000000e+00> : vector<8x512xf32>
    %11 = tpu.matmul %10, %3, %cst {dimension_numbers = #tpu.dot_dimension_numbers<[1], [0], [0], [1], [0, 0, 1, 1], [], []>} : vector<8x128xbf16>, vector<128x512xbf16>, vector<8x512xf32> -> vector<8x512xf32>
    %12 = arith.addf %9, %11 : vector<8x512xf32>
    %13 = vector.extract_strided_slice %12 {offsets = [0, 0], sizes = [8, 384], strides = [1, 1]} : vector<8x512xf32> to vector<8x384xf32>
    %14 = arith.negf %13 : vector<8x384xf32>
    %15 = math.exp %14 : vector<8x384xf32>
    %cst_9 = arith.constant 1.000000e+00 : f32
    %16 = vector.broadcast %cst_9 : f32 to vector<8x384xf32>
    %17 = arith.addf %16, %15 : vector<8x384xf32>
    %18 = arith.divf %16, %17 : vector<8x384xf32>
    %19 = vector.extract_strided_slice %12 {offsets = [0, 384], sizes = [8, 128], strides = [1, 1]} : vector<8x512xf32> to vector<8x128xf32>
    %20 = math.tanh %19 : vector<8x128xf32>
    %21 = vector.extract_strided_slice %18 {offsets = [0, 0], sizes = [8, 128], strides = [1, 1]} : vector<8x384xf32> to vector<8x128xf32>
    %22 = vector.extract_strided_slice %18 {offsets = [0, 128], sizes = [8, 128], strides = [1, 1]} : vector<8x384xf32> to vector<8x128xf32>
    %23 = vector.extract_strided_slice %18 {offsets = [0, 256], sizes = [8, 128], strides = [1, 1]} : vector<8x384xf32> to vector<8x128xf32>
    %24 = arith.mulf %22, %5 : vector<8x128xf32>
    %25 = arith.mulf %21, %20 : vector<8x128xf32>
    %26 = arith.addf %24, %25 : vector<8x128xf32>
    %27 = math.tanh %26 : vector<8x128xf32>
    %28 = arith.mulf %23, %27 : vector<8x128xf32>
    %c1_i32 = arith.constant 1 : i32
    %29 = arith.index_cast %c1_i32 : i32 to index
    %c0_10 = arith.constant 0 : index
    %c0_11 = arith.constant 0 : index
    %30 = vector.load %arg2[%29, %c0_10, %c0_11] : memref<8x8x512xbf16, #tpu.memory_space<vmem>>, vector<1x8x512xbf16>
    %31 = vector.shape_cast %30 : vector<1x8x512xbf16> to vector<8x512xbf16>
    %32 = arith.extf %31 : vector<8x512xbf16> to vector<8x512xf32>
    %33 = arith.truncf %28 : vector<8x128xf32> to vector<8x128xbf16>
    %cst_12 = arith.constant dense<0.000000e+00> : vector<8x512xf32>
    %34 = tpu.matmul %33, %3, %cst_12 {dimension_numbers = #tpu.dot_dimension_numbers<[1], [0], [0], [1], [0, 0, 1, 1], [], []>} : vector<8x128xbf16>, vector<128x512xbf16>, vector<8x512xf32> -> vector<8x512xf32>
    %35 = arith.addf %32, %34 : vector<8x512xf32>
    %36 = vector.extract_strided_slice %35 {offsets = [0, 0], sizes = [8, 384], strides = [1, 1]} : vector<8x512xf32> to vector<8x384xf32>
    %37 = arith.negf %36 : vector<8x384xf32>
    %38 = math.exp %37 : vector<8x384xf32>
    %cst_13 = arith.constant 1.000000e+00 : f32
    %39 = vector.broadcast %cst_13 : f32 to vector<8x384xf32>
    %40 = arith.addf %39, %38 : vector<8x384xf32>
    %41 = arith.divf %39, %40 : vector<8x384xf32>
    %42 = vector.extract_strided_slice %35 {offsets = [0, 384], sizes = [8, 128], strides = [1, 1]} : vector<8x512xf32> to vector<8x128xf32>
    %43 = math.tanh %42 : vector<8x128xf32>
    %44 = vector.extract_strided_slice %41 {offsets = [0, 0], sizes = [8, 128], strides = [1, 1]} : vector<8x384xf32> to vector<8x128xf32>
    %45 = vector.extract_strided_slice %41 {offsets = [0, 128], sizes = [8, 128], strides = [1, 1]} : vector<8x384xf32> to vector<8x128xf32>
    %46 = vector.extract_strided_slice %41 {offsets = [0, 256], sizes = [8, 128], strides = [1, 1]} : vector<8x384xf32> to vector<8x128xf32>
    %47 = arith.mulf %45, %26 : vector<8x128xf32>
    %48 = arith.mulf %44, %43 : vector<8x128xf32>
    %49 = arith.addf %47, %48 : vector<8x128xf32>
    %50 = math.tanh %49 : vector<8x128xf32>
    %51 = arith.mulf %46, %50 : vector<8x128xf32>
    %c2_i32 = arith.constant 2 : i32
    %52 = arith.index_cast %c2_i32 : i32 to index
    %c0_14 = arith.constant 0 : index
    %c0_15 = arith.constant 0 : index
    %53 = vector.load %arg2[%52, %c0_14, %c0_15] : memref<8x8x512xbf16, #tpu.memory_space<vmem>>, vector<1x8x512xbf16>
    %54 = vector.shape_cast %53 : vector<1x8x512xbf16> to vector<8x512xbf16>
    %55 = arith.extf %54 : vector<8x512xbf16> to vector<8x512xf32>
    %56 = arith.truncf %51 : vector<8x128xf32> to vector<8x128xbf16>
    %cst_16 = arith.constant dense<0.000000e+00> : vector<8x512xf32>
    %57 = tpu.matmul %56, %3, %cst_16 {dimension_numbers = #tpu.dot_dimension_numbers<[1], [0], [0], [1], [0, 0, 1, 1], [], []>} : vector<8x128xbf16>, vector<128x512xbf16>, vector<8x512xf32> -> vector<8x512xf32>
    %58 = arith.addf %55, %57 : vector<8x512xf32>
    %59 = vector.extract_strided_slice %58 {offsets = [0, 0], sizes = [8, 384], strides = [1, 1]} : vector<8x512xf32> to vector<8x384xf32>
    %60 = arith.negf %59 : vector<8x384xf32>
    %61 = math.exp %60 : vector<8x384xf32>
    %cst_17 = arith.constant 1.000000e+00 : f32
    %62 = vector.broadcast %cst_17 : f32 to vector<8x384xf32>
    %63 = arith.addf %62, %61 : vector<8x384xf32>
    %64 = arith.divf %62, %63 : vector<8x384xf32>
    %65 = vector.extract_strided_slice %58 {offsets = [0, 384], sizes = [8, 128], strides = [1, 1]} : vector<8x512xf32> to vector<8x128xf32>
    %66 = math.tanh %65 : vector<8x128xf32>
    %67 = vector.extract_strided_slice %64 {offsets = [0, 0], sizes = [8, 128], strides = [1, 1]} : vector<8x384xf32> to vector<8x128xf32>
    %68 = vector.extract_strided_slice %64 {offsets = [0, 128], sizes = [8, 128], strides = [1, 1]} : vector<8x384xf32> to vector<8x128xf32>
    %69 = vector.extract_strided_slice %64 {offsets = [0, 256], sizes = [8, 128], strides = [1, 1]} : vector<8x384xf32> to vector<8x128xf32>
    %70 = arith.mulf %68, %49 : vector<8x128xf32>
    %71 = arith.mulf %67, %66 : vector<8x128xf32>
    %72 = arith.addf %70, %71 : vector<8x128xf32>
    %73 = math.tanh %72 : vector<8x128xf32>
    %74 = arith.mulf %69, %73 : vector<8x128xf32>
    %c3_i32 = arith.constant 3 : i32
    %75 = arith.index_cast %c3_i32 : i32 to index
    %c0_18 = arith.constant 0 : index
    %c0_19 = arith.constant 0 : index
    %76 = vector.load %arg2[%75, %c0_18, %c0_19] : memref<8x8x512xbf16, #tpu.memory_space<vmem>>, vector<1x8x512xbf16>
    %77 = vector.shape_cast %76 : vector<1x8x512xbf16> to vector<8x512xbf16>
    %78 = arith.extf %77 : vector<8x512xbf16> to vector<8x512xf32>
    %79 = arith.truncf %74 : vector<8x128xf32> to vector<8x128xbf16>
    %cst_20 = arith.constant dense<0.000000e+00> : vector<8x512xf32>
    %80 = tpu.matmul %79, %3, %cst_20 {dimension_numbers = #tpu.dot_dimension_numbers<[1], [0], [0], [1], [0, 0, 1, 1], [], []>} : vector<8x128xbf16>, vector<128x512xbf16>, vector<8x512xf32> -> vector<8x512xf32>
    %81 = arith.addf %78, %80 : vector<8x512xf32>
    %82 = vector.extract_strided_slice %81 {offsets = [0, 0], sizes = [8, 384], strides = [1, 1]} : vector<8x512xf32> to vector<8x384xf32>
    %83 = arith.negf %82 : vector<8x384xf32>
    %84 = math.exp %83 : vector<8x384xf32>
    %cst_21 = arith.constant 1.000000e+00 : f32
    %85 = vector.broadcast %cst_21 : f32 to vector<8x384xf32>
    %86 = arith.addf %85, %84 : vector<8x384xf32>
    %87 = arith.divf %85, %86 : vector<8x384xf32>
    %88 = vector.extract_strided_slice %81 {offsets = [0, 384], sizes = [8, 128], strides = [1, 1]} : vector<8x512xf32> to vector<8x128xf32>
    %89 = math.tanh %88 : vector<8x128xf32>
    %90 = vector.extract_strided_slice %87 {offsets = [0, 0], sizes = [8, 128], strides = [1, 1]} : vector<8x384xf32> to vector<8x128xf32>
    %91 = vector.extract_strided_slice %87 {offsets = [0, 128], sizes = [8, 128], strides = [1, 1]} : vector<8x384xf32> to vector<8x128xf32>
    %92 = vector.extract_strided_slice %87 {offsets = [0, 256], sizes = [8, 128], strides = [1, 1]} : vector<8x384xf32> to vector<8x128xf32>
    %93 = arith.mulf %91, %72 : vector<8x128xf32>
    %94 = arith.mulf %90, %89 : vector<8x128xf32>
    %95 = arith.addf %93, %94 : vector<8x128xf32>
    %96 = math.tanh %95 : vector<8x128xf32>
    %97 = arith.mulf %92, %96 : vector<8x128xf32>
    %c4_i32 = arith.constant 4 : i32
    %98 = arith.index_cast %c4_i32 : i32 to index
    %c0_22 = arith.constant 0 : index
    %c0_23 = arith.constant 0 : index
    %99 = vector.load %arg2[%98, %c0_22, %c0_23] : memref<8x8x512xbf16, #tpu.memory_space<vmem>>, vector<1x8x512xbf16>
    %100 = vector.shape_cast %99 : vector<1x8x512xbf16> to vector<8x512xbf16>
    %101 = arith.extf %100 : vector<8x512xbf16> to vector<8x512xf32>
    %102 = arith.truncf %97 : vector<8x128xf32> to vector<8x128xbf16>
    %cst_24 = arith.constant dense<0.000000e+00> : vector<8x512xf32>
    %103 = tpu.matmul %102, %3, %cst_24 {dimension_numbers = #tpu.dot_dimension_numbers<[1], [0], [0], [1], [0, 0, 1, 1], [], []>} : vector<8x128xbf16>, vector<128x512xbf16>, vector<8x512xf32> -> vector<8x512xf32>
    %104 = arith.addf %101, %103 : vector<8x512xf32>
    %105 = vector.extract_strided_slice %104 {offsets = [0, 0], sizes = [8, 384], strides = [1, 1]} : vector<8x512xf32> to vector<8x384xf32>
    %106 = arith.negf %105 : vector<8x384xf32>
    %107 = math.exp %106 : vector<8x384xf32>
    %cst_25 = arith.constant 1.000000e+00 : f32
    %108 = vector.broadcast %cst_25 : f32 to vector<8x384xf32>
    %109 = arith.addf %108, %107 : vector<8x384xf32>
    %110 = arith.divf %108, %109 : vector<8x384xf32>
    %111 = vector.extract_strided_slice %104 {offsets = [0, 384], sizes = [8, 128], strides = [1, 1]} : vector<8x512xf32> to vector<8x128xf32>
    %112 = math.tanh %111 : vector<8x128xf32>
    %113 = vector.extract_strided_slice %110 {offsets = [0, 0], sizes = [8, 128], strides = [1, 1]} : vector<8x384xf32> to vector<8x128xf32>
    %114 = vector.extract_strided_slice %110 {offsets = [0, 128], sizes = [8, 128], strides = [1, 1]} : vector<8x384xf32> to vector<8x128xf32>
    %115 = vector.extract_strided_slice %110 {offsets = [0, 256], sizes = [8, 128], strides = [1, 1]} : vector<8x384xf32> to vector<8x128xf32>
    %116 = arith.mulf %114, %95 : vector<8x128xf32>
    %117 = arith.mulf %113, %112 : vector<8x128xf32>
    %118 = arith.addf %116, %117 : vector<8x128xf32>
    %119 = math.tanh %118 : vector<8x128xf32>
    %120 = arith.mulf %115, %119 : vector<8x128xf32>
    %c5_i32 = arith.constant 5 : i32
    %121 = arith.index_cast %c5_i32 : i32 to index
    %c0_26 = arith.constant 0 : index
    %c0_27 = arith.constant 0 : index
    %122 = vector.load %arg2[%121, %c0_26, %c0_27] : memref<8x8x512xbf16, #tpu.memory_space<vmem>>, vector<1x8x512xbf16>
    %123 = vector.shape_cast %122 : vector<1x8x512xbf16> to vector<8x512xbf16>
    %124 = arith.extf %123 : vector<8x512xbf16> to vector<8x512xf32>
    %125 = arith.truncf %120 : vector<8x128xf32> to vector<8x128xbf16>
    %cst_28 = arith.constant dense<0.000000e+00> : vector<8x512xf32>
    %126 = tpu.matmul %125, %3, %cst_28 {dimension_numbers = #tpu.dot_dimension_numbers<[1], [0], [0], [1], [0, 0, 1, 1], [], []>} : vector<8x128xbf16>, vector<128x512xbf16>, vector<8x512xf32> -> vector<8x512xf32>
    %127 = arith.addf %124, %126 : vector<8x512xf32>
    %128 = vector.extract_strided_slice %127 {offsets = [0, 0], sizes = [8, 384], strides = [1, 1]} : vector<8x512xf32> to vector<8x384xf32>
    %129 = arith.negf %128 : vector<8x384xf32>
    %130 = math.exp %129 : vector<8x384xf32>
    %cst_29 = arith.constant 1.000000e+00 : f32
    %131 = vector.broadcast %cst_29 : f32 to vector<8x384xf32>
    %132 = arith.addf %131, %130 : vector<8x384xf32>
    %133 = arith.divf %131, %132 : vector<8x384xf32>
    %134 = vector.extract_strided_slice %127 {offsets = [0, 384], sizes = [8, 128], strides = [1, 1]} : vector<8x512xf32> to vector<8x128xf32>
    %135 = math.tanh %134 : vector<8x128xf32>
    %136 = vector.extract_strided_slice %133 {offsets = [0, 0], sizes = [8, 128], strides = [1, 1]} : vector<8x384xf32> to vector<8x128xf32>
    %137 = vector.extract_strided_slice %133 {offsets = [0, 128], sizes = [8, 128], strides = [1, 1]} : vector<8x384xf32> to vector<8x128xf32>
    %138 = vector.extract_strided_slice %133 {offsets = [0, 256], sizes = [8, 128], strides = [1, 1]} : vector<8x384xf32> to vector<8x128xf32>
    %139 = arith.mulf %137, %118 : vector<8x128xf32>
    %140 = arith.mulf %136, %135 : vector<8x128xf32>
    %141 = arith.addf %139, %140 : vector<8x128xf32>
    %142 = math.tanh %141 : vector<8x128xf32>
    %143 = arith.mulf %138, %142 : vector<8x128xf32>
    %c6_i32 = arith.constant 6 : i32
    %144 = arith.index_cast %c6_i32 : i32 to index
    %c0_30 = arith.constant 0 : index
    %c0_31 = arith.constant 0 : index
    %145 = vector.load %arg2[%144, %c0_30, %c0_31] : memref<8x8x512xbf16, #tpu.memory_space<vmem>>, vector<1x8x512xbf16>
    %146 = vector.shape_cast %145 : vector<1x8x512xbf16> to vector<8x512xbf16>
    %147 = arith.extf %146 : vector<8x512xbf16> to vector<8x512xf32>
    %148 = arith.truncf %143 : vector<8x128xf32> to vector<8x128xbf16>
    %cst_32 = arith.constant dense<0.000000e+00> : vector<8x512xf32>
    %149 = tpu.matmul %148, %3, %cst_32 {dimension_numbers = #tpu.dot_dimension_numbers<[1], [0], [0], [1], [0, 0, 1, 1], [], []>} : vector<8x128xbf16>, vector<128x512xbf16>, vector<8x512xf32> -> vector<8x512xf32>
    %150 = arith.addf %147, %149 : vector<8x512xf32>
    %151 = vector.extract_strided_slice %150 {offsets = [0, 0], sizes = [8, 384], strides = [1, 1]} : vector<8x512xf32> to vector<8x384xf32>
    %152 = arith.negf %151 : vector<8x384xf32>
    %153 = math.exp %152 : vector<8x384xf32>
    %cst_33 = arith.constant 1.000000e+00 : f32
    %154 = vector.broadcast %cst_33 : f32 to vector<8x384xf32>
    %155 = arith.addf %154, %153 : vector<8x384xf32>
    %156 = arith.divf %154, %155 : vector<8x384xf32>
    %157 = vector.extract_strided_slice %150 {offsets = [0, 384], sizes = [8, 128], strides = [1, 1]} : vector<8x512xf32> to vector<8x128xf32>
    %158 = math.tanh %157 : vector<8x128xf32>
    %159 = vector.extract_strided_slice %156 {offsets = [0, 0], sizes = [8, 128], strides = [1, 1]} : vector<8x384xf32> to vector<8x128xf32>
    %160 = vector.extract_strided_slice %156 {offsets = [0, 128], sizes = [8, 128], strides = [1, 1]} : vector<8x384xf32> to vector<8x128xf32>
    %161 = vector.extract_strided_slice %156 {offsets = [0, 256], sizes = [8, 128], strides = [1, 1]} : vector<8x384xf32> to vector<8x128xf32>
    %162 = arith.mulf %160, %141 : vector<8x128xf32>
    %163 = arith.mulf %159, %158 : vector<8x128xf32>
    %164 = arith.addf %162, %163 : vector<8x128xf32>
    %165 = math.tanh %164 : vector<8x128xf32>
    %166 = arith.mulf %161, %165 : vector<8x128xf32>
    %c7_i32 = arith.constant 7 : i32
    %167 = arith.index_cast %c7_i32 : i32 to index
    %c0_34 = arith.constant 0 : index
    %c0_35 = arith.constant 0 : index
    %168 = vector.load %arg2[%167, %c0_34, %c0_35] : memref<8x8x512xbf16, #tpu.memory_space<vmem>>, vector<1x8x512xbf16>
    %169 = vector.shape_cast %168 : vector<1x8x512xbf16> to vector<8x512xbf16>
    %170 = arith.extf %169 : vector<8x512xbf16> to vector<8x512xf32>
    %171 = arith.truncf %166 : vector<8x128xf32> to vector<8x128xbf16>
    %cst_36 = arith.constant dense<0.000000e+00> : vector<8x512xf32>
    %172 = tpu.matmul %171, %3, %cst_36 {dimension_numbers = #tpu.dot_dimension_numbers<[1], [0], [0], [1], [0, 0, 1, 1], [], []>} : vector<8x128xbf16>, vector<128x512xbf16>, vector<8x512xf32> -> vector<8x512xf32>
    %173 = arith.addf %170, %172 : vector<8x512xf32>
    %174 = vector.extract_strided_slice %173 {offsets = [0, 0], sizes = [8, 384], strides = [1, 1]} : vector<8x512xf32> to vector<8x384xf32>
    %175 = arith.negf %174 : vector<8x384xf32>
    %176 = math.exp %175 : vector<8x384xf32>
    %cst_37 = arith.constant 1.000000e+00 : f32
    %177 = vector.broadcast %cst_37 : f32 to vector<8x384xf32>
    %178 = arith.addf %177, %176 : vector<8x384xf32>
    %179 = arith.divf %177, %178 : vector<8x384xf32>
    %180 = vector.extract_strided_slice %173 {offsets = [0, 384], sizes = [8, 128], strides = [1, 1]} : vector<8x512xf32> to vector<8x128xf32>
    %181 = math.tanh %180 : vector<8x128xf32>
    %182 = vector.extract_strided_slice %179 {offsets = [0, 0], sizes = [8, 128], strides = [1, 1]} : vector<8x384xf32> to vector<8x128xf32>
    %183 = vector.extract_strided_slice %179 {offsets = [0, 128], sizes = [8, 128], strides = [1, 1]} : vector<8x384xf32> to vector<8x128xf32>
    %184 = vector.extract_strided_slice %179 {offsets = [0, 256], sizes = [8, 128], strides = [1, 1]} : vector<8x384xf32> to vector<8x128xf32>
    %185 = arith.mulf %183, %164 : vector<8x128xf32>
    %186 = arith.mulf %182, %181 : vector<8x128xf32>
    %187 = arith.addf %185, %186 : vector<8x128xf32>
    %188 = math.tanh %187 : vector<8x128xf32>
    %189 = arith.mulf %184, %188 : vector<8x128xf32>
    %c8_i32 = arith.constant 8 : i32
    %c0_38 = arith.constant 0 : index
    %c0_39 = arith.constant 0 : index
    %190 = vector.load %arg13[%c0_38, %c0_39] : memref<8x128xf32, #tpu.memory_space<vmem>>, vector<8x128xf32>
    tpu.vector_store %arg13[%c0_38, %c0_39], %189 {strides = array<i32>} : memref<8x128xf32, #tpu.memory_space<vmem>>, vector<8x128xf32>,
    %c0_40 = arith.constant 0 : index
    %c0_41 = arith.constant 0 : index
    %191 = vector.load %arg14[%c0_40, %c0_41] : memref<8x128xf32, #tpu.memory_space<vmem>>, vector<8x128xf32>
    tpu.vector_store %arg14[%c0_40, %c0_41], %187 {strides = array<i32>} : memref<8x128xf32, #tpu.memory_space<vmem>>, vector<8x128xf32>,
    %c0_i32_42 = arith.constant 0 : i32
    %192 = arith.cmpi eq, %arg1, %c0_i32_42 : i32
    %193 = arith.extui %192 : i1 to i32
    %c0_i32_43 = arith.constant 0 : i32
    %194 = arith.cmpi ne, %193, %c0_i32_43 : i32
    scf.if %194 {
      %195 = arith.truncf %189 : vector<8x128xf32> to vector<8x128xbf16>
      %c0_44 = arith.constant 0 : index
      %c0_45 = arith.constant 0 : index
      %196 = vector.load %arg4[%c0_44, %c0_45] : memref<128x256xbf16, #tpu.memory_space<vmem>>, vector<128x256xbf16>
      %cst_46 = arith.constant dense<0.000000e+00> : vector<8x256xf32>
      %197 = tpu.matmul %195, %196, %cst_46 {dimension_numbers = #tpu.dot_dimension_numbers<[1], [0], [0], [1], [0, 0, 1, 1], [], []>} : vector<8x128xbf16>, vector<128x256xbf16>, vector<8x256xf32> -> vector<8x256xf32>
      %c0_47 = arith.constant 0 : index
      %c0_48 = arith.constant 0 : index
      %198 = vector.load %arg5[%c0_47, %c0_48] : memref<1x256xf32, #tpu.memory_space<vmem>>, vector<1x256xf32>
      %199 = vector.broadcast %198 : vector<1x256xf32> to vector<8x256xf32>
      %200 = arith.addf %197, %199 : vector<8x256xf32>
      %cst_49 = arith.constant 0.000000e+00 : f32
      %201 = vector.broadcast %cst_49 : f32 to vector<8x256xf32>
      %202 = arith.maximumf %200, %201 : vector<8x256xf32>
      %203 = arith.truncf %202 : vector<8x256xf32> to vector<8x256xbf16>
      %c0_50 = arith.constant 0 : index
      %c0_51 = arith.constant 0 : index
      %204 = vector.load %arg6[%c0_50, %c0_51] : memref<256x1024xbf16, #tpu.memory_space<vmem>>, vector<256x1024xbf16>
      %cst_52 = arith.constant dense<0.000000e+00> : vector<8x1024xf32>
      %205 = tpu.matmul %203, %204, %cst_52 {dimension_numbers = #tpu.dot_dimension_numbers<[1], [0], [0], [1], [0, 0, 1, 1], [], []>} : vector<8x256xbf16>, vector<256x1024xbf16>, vector<8x1024xf32> -> vector<8x1024xf32>
      %c0_53 = arith.constant 0 : index
      %c0_54 = arith.constant 0 : index
      %206 = vector.load %arg7[%c0_53, %c0_54] : memref<1x1024xf32, #tpu.memory_space<vmem>>, vector<1x1024xf32>
      %207 = vector.broadcast %206 : vector<1x1024xf32> to vector<8x1024xf32>
      %208 = arith.addf %205, %207 : vector<8x1024xf32>
      %cst_55 = arith.constant 0.000000e+00 : f32
      %209 = vector.broadcast %cst_55 : f32 to vector<8x1024xf32>
      %210 = arith.maximumf %208, %209 : vector<8x1024xf32>
      %211 = arith.truncf %210 : vector<8x1024xf32> to vector<8x1024xbf16>
      %c0_56 = arith.constant 0 : index
      %c0_57 = arith.constant 0 : index
      %212 = vector.load %arg8[%c0_56, %c0_57] : memref<1024x256xbf16, #tpu.memory_space<vmem>>, vector<1024x256xbf16>
      %cst_58 = arith.constant dense<0.000000e+00> : vector<8x256xf32>
      %213 = tpu.matmul %211, %212, %cst_58 {dimension_numbers = #tpu.dot_dimension_numbers<[1], [0], [0], [1], [0, 0, 1, 1], [], []>} : vector<8x1024xbf16>, vector<1024x256xbf16>, vector<8x256xf32> -> vector<8x256xf32>
      %c0_59 = arith.constant 0 : index
      %c0_60 = arith.constant 0 : index
      %214 = vector.load %arg9[%c0_59, %c0_60] : memref<1x256xf32, #tpu.memory_space<vmem>>, vector<1x256xf32>
      %215 = vector.broadcast %214 : vector<1x256xf32> to vector<8x256xf32>
      %216 = arith.addf %213, %215 : vector<8x256xf32>
      %cst_61 = arith.constant 0.000000e+00 : f32
      %217 = vector.broadcast %cst_61 : f32 to vector<8x256xf32>
      %218 = arith.maximumf %216, %217 : vector<8x256xf32>
      %c0_62 = arith.constant 0 : index
      %c0_63 = arith.constant 0 : index
      %219 = vector.load %arg10[%c0_62, %c0_63] : memref<256x128xf32, #tpu.memory_space<vmem>>, vector<256x128xf32>
      %cst_64 = arith.constant dense<0.000000e+00> : vector<8x128xf32>
      %220 = tpu.matmul %218, %219, %cst_64 {dimension_numbers = #tpu.dot_dimension_numbers<[1], [0], [0], [1], [0, 0, 1, 1], [], []>} : vector<8x256xf32>, vector<256x128xf32>, vector<8x128xf32> -> vector<8x128xf32>
      %c0_65 = arith.constant 0 : index
      %c0_66 = arith.constant 0 : index
      %221 = vector.load %arg11[%c0_65, %c0_66] : memref<1x128xf32, #tpu.memory_space<vmem>>, vector<1x128xf32>
      %222 = vector.broadcast %221 : vector<1x128xf32> to vector<8x128xf32>
      %223 = arith.addf %220, %222 : vector<8x128xf32>
      %224 = tpu.iota {dimensions = array<i32: 1>} : vector<8x128xi32>
      %c8_i32_67 = arith.constant 8 : i32
      %225 = vector.broadcast %c8_i32_67 : i32 to vector<8x128xi32>
      %226 = arith.cmpi slt, %224, %225 : vector<8x128xi32>
      %cst_68 = arith.constant -1.000000e+30 : f32
      %227 = vector.broadcast %cst_68 : f32 to vector<8x128xf32>
      %228 = arith.select %226, %223, %227 : vector<8x128xi1>, vector<8x128xf32>
      %cst_69 = arith.constant dense<0xFF800000> : vector<8xf32>
      %229 = vector.multi_reduction <maximumf>, %228, %cst_69 [1] : vector<8x128xf32> to vector<8xf32>
      %230 = vector.shape_cast %229 : vector<8xf32> to vector<8x1xf32>
      %231 = vector.broadcast %230 : vector<8x1xf32> to vector<8x128xf32>
      %232 = arith.subf %228, %231 : vector<8x128xf32>
      %233 = math.exp %232 : vector<8x128xf32>
      %cst_70 = arith.constant dense<0.000000e+00> : vector<8xf32>
      %234 = vector.multi_reduction <add>, %233, %cst_70 [1] : vector<8x128xf32> to vector<8xf32>
      %235 = vector.shape_cast %234 : vector<8xf32> to vector<8x1xf32>
      %236 = vector.broadcast %235 : vector<8x1xf32> to vector<8x128xf32>
      %237 = arith.divf %233, %236 : vector<8x128xf32>
      %c0_71 = arith.constant 0 : index
      %c0_72 = arith.constant 0 : index
      %238 = vector.load %arg12[%c0_71, %c0_72] : memref<8x128xf32, #tpu.memory_space<vmem>>, vector<8x128xf32>
      tpu.vector_store %arg12[%c0_71, %c0_72], %237 {strides = array<i32>} : memref<8x128xf32, #tpu.memory_space<vmem>>, vector<8x128xf32>,
    } else {
    }
    return
  }
  func.func @transform_0(%arg0: i32, %arg1: i32) -> (i32, i32, i32) {
    %c0_i32 = arith.constant 0 : i32
    %c0_i32_0 = arith.constant 0 : i32
    return %arg1, %arg0, %c0_i32 : i32, i32, i32
  }
  func.func @transform_1(%arg0: i32, %arg1: i32) -> (i32, i32) {
    %c0_i32 = arith.constant 0 : i32
    %c0_i32_0 = arith.constant 0 : i32
    %c0_i32_1 = arith.constant 0 : i32
    return %c0_i32, %c0_i32_0 : i32, i32
  }
  func.func @transform_2(%arg0: i32, %arg1: i32) -> (i32, i32) {
    %c0_i32 = arith.constant 0 : i32
    %c0_i32_0 = arith.constant 0 : i32
    %c0_i32_1 = arith.constant 0 : i32
    return %c0_i32, %c0_i32_0 : i32, i32
  }
  func.func @transform_3(%arg0: i32, %arg1: i32) -> (i32, i32) {
    %c0_i32 = arith.constant 0 : i32
    %c0_i32_0 = arith.constant 0 : i32
    %c0_i32_1 = arith.constant 0 : i32
    return %c0_i32, %c0_i32_0 : i32, i32
  }
  func.func @transform_4(%arg0: i32, %arg1: i32) -> (i32, i32) {
    %c0_i32 = arith.constant 0 : i32
    %c0_i32_0 = arith.constant 0 : i32
    %c0_i32_1 = arith.constant 0 : i32
    return %c0_i32, %c0_i32_0 : i32, i32
  }
  func.func @transform_5(%arg0: i32, %arg1: i32) -> (i32, i32) {
    %c0_i32 = arith.constant 0 : i32
    %c0_i32_0 = arith.constant 0 : i32
    %c0_i32_1 = arith.constant 0 : i32
    return %c0_i32, %c0_i32_0 : i32, i32
  }
  func.func @transform_6(%arg0: i32, %arg1: i32) -> (i32, i32) {
    %c0_i32 = arith.constant 0 : i32
    %c0_i32_0 = arith.constant 0 : i32
    %c0_i32_1 = arith.constant 0 : i32
    return %c0_i32, %c0_i32_0 : i32, i32
  }
  func.func @transform_7(%arg0: i32, %arg1: i32) -> (i32, i32) {
    %c0_i32 = arith.constant 0 : i32
    %c0_i32_0 = arith.constant 0 : i32
    %c0_i32_1 = arith.constant 0 : i32
    return %c0_i32, %c0_i32_0 : i32, i32
  }
  func.func @transform_8(%arg0: i32, %arg1: i32) -> (i32, i32) {
    %c0_i32 = arith.constant 0 : i32
    %c0_i32_0 = arith.constant 0 : i32
    %c0_i32_1 = arith.constant 0 : i32
    return %c0_i32, %c0_i32_0 : i32, i32
  }
  func.func @transform_9(%arg0: i32, %arg1: i32) -> (i32, i32) {
    %c0_i32 = arith.constant 0 : i32
    %c0_i32_0 = arith.constant 0 : i32
    %c0_i32_1 = arith.constant 0 : i32
    return %c0_i32, %c0_i32_0 : i32, i32
  }
  func.func @transform_10(%arg0: i32, %arg1: i32) -> (i32, i32) {
    %c0_i32 = arith.constant 0 : i32
    %c0_i32_0 = arith.constant 0 : i32
    return %arg0, %c0_i32 : i32, i32
  }
}

</mosaic_0001>

<llo_original>
// kernel: mfcc_lstm_forward.1
$region0: #{mfcc_lstm_forward.1}
  #allocation0 [shape = 'u32[]', space=smem, size = 0x4, offset = 0x4, fixed_abs, tag = 'smem constant byte address 0x4 - core index']
  #allocation1 [shape = 'u32[144,128]{1,0:T(1,128)}', space=vmem, size = 0x12000, scoped, tag = 'internal scratch']
  #allocation2 [shape = 'f32[8,128]{1,0:T(8,128)}', space=vmem, size = 0x1000, scoped, tag = 'scratch operand']
  #allocation3 [shape = 'f32[8,128]{1,0:T(8,128)}', space=vmem, size = 0x1000, scoped, tag = 'scratch operand']
  %s0 = inlined_call_operand.vmem [shape: bf16[8,8,512], index: 0, kind: input, shape index: {}]
  %s1 = inlined_call_operand.vmem [shape: bf16[128,512], index: 1, kind: input, shape index: {}]
  %s2 = inlined_call_operand.vmem [shape: bf16[128,256], index: 2, kind: input, shape index: {}]
  %s3 = inlined_call_operand.vmem [shape: f32[1,256], index: 3, kind: input, shape index: {}]
  %s4 = inlined_call_operand.vmem [shape: bf16[256,1024], index: 4, kind: input, shape index: {}]
  %s5 = inlined_call_operand.vmem [shape: f32[1,1024], index: 5, kind: input, shape index: {}]
  %s6 = inlined_call_operand.vmem [shape: bf16[1024,256], index: 6, kind: input, shape index: {}]
  %s7 = inlined_call_operand.vmem [shape: f32[1,256], index: 7, kind: input, shape index: {}]
  %s8 = inlined_call_operand.vmem [shape: f32[256,128], index: 8, kind: input, shape index: {}]
  %s9 = inlined_call_operand.vmem [shape: f32[1,128], index: 9, kind: input, shape index: {}]
  %s10 = inlined_call_operand.vmem [shape: f32[8,128], index: 10, kind: output, shape index: {}]
  %s11 = sld [smem:[#allocation0]]
  $region58: #{mfcc_lstm_forward.1} parent=0
    _
  %s13 = ssub.s32 1, %s11
  %s14 = scalar_select 0, %s13, %s11
  // Predicated region
  $region2: #{mfcc_lstm_forward.1} parent=0 // pred_check
    _
  $region3: #{mfcc_lstm_forward.1} parent=0 // pred_check_branch
    %16 = sbr.rel (0) target = $region5
  $region4: #{mfcc_lstm_forward.1} parent=0 // pred_region
    _
  $region5: #{mfcc_lstm_forward.1} parent=0 // pred_fallthru
    _
  // Predicated region
  $region6: #{mfcc_lstm_forward.1} parent=0 // pred_check
    _
  $region7: #{mfcc_lstm_forward.1} parent=0 // pred_check_branch
    %18 = sbr.rel (0) target = $region9
  $region8: #{mfcc_lstm_forward.1} parent=0 // pred_region
    _
  $region9: #{mfcc_lstm_forward.1} parent=0 // pred_fallthru
    _
  // Predicated region
  $region10: #{mfcc_lstm_forward.1} parent=0 // pred_check
    _
  $region11: #{mfcc_lstm_forward.1} parent=0 // pred_check_branch
    %20 = sbr.rel (0) target = $region13
  $region12: #{mfcc_lstm_forward.1} parent=0 // pred_region
    _
  $region13: #{mfcc_lstm_forward.1} parent=0 // pred_fallthru
    _
  // Predicated region
  $region14: #{mfcc_lstm_forward.1} parent=0 // pred_check
    _
  $region15: #{mfcc_lstm_forward.1} parent=0 // pred_check_branch
    %22 = sbr.rel (0) target = $region17
  $region16: #{mfcc_lstm_forward.1} parent=0 // pred_region
    _
  $region17: #{mfcc_lstm_forward.1} parent=0 // pred_fallthru
    _
  // Predicated region
  $region18: #{mfcc_lstm_forward.1} parent=0 // pred_check
    _
  $region19: #{mfcc_lstm_forward.1} parent=0 // pred_check_branch
    %24 = sbr.rel (0) target = $region21
  $region20: #{mfcc_lstm_forward.1} parent=0 // pred_region
    _
  $region21: #{mfcc_lstm_forward.1} parent=0 // pred_fallthru
    _
  // Predicated region
  $region22: #{mfcc_lstm_forward.1} parent=0 // pred_check
    _
  $region23: #{mfcc_lstm_forward.1} parent=0 // pred_check_branch
    %26 = sbr.rel (0) target = $region25
  $region24: #{mfcc_lstm_forward.1} parent=0 // pred_region
    _
  $region25: #{mfcc_lstm_forward.1} parent=0 // pred_fallthru
    _
  // Predicated region
  $region26: #{mfcc_lstm_forward.1} parent=0 // pred_check
    _
  $region27: #{mfcc_lstm_forward.1} parent=0 // pred_check_branch
    %28 = sbr.rel (0) target = $region29
  $region28: #{mfcc_lstm_forward.1} parent=0 // pred_region
    _
  $region29: #{mfcc_lstm_forward.1} parent=0 // pred_fallthru
    _
  // Predicated region
  $region30: #{mfcc_lstm_forward.1} parent=0 // pred_check
    _
  $region31: #{mfcc_lstm_forward.1} parent=0 // pred_check_branch
    %30 = sbr.rel (0) target = $region33
  $region32: #{mfcc_lstm_forward.1} parent=0 // pred_region
    _
  $region33: #{mfcc_lstm_forward.1} parent=0 // pred_fallthru
    _
  // Predicated region
  $region34: #{mfcc_lstm_forward.1} parent=0 // pred_check
    _
  $region35: #{mfcc_lstm_forward.1} parent=0 // pred_check_branch
    %32 = sbr.rel (0) target = $region37
  $region36: #{mfcc_lstm_forward.1} parent=0 // pred_region
    _
  $region37: #{mfcc_lstm_forward.1} parent=0 // pred_fallthru
    _
  // Predicated region
  $region38: #{mfcc_lstm_forward.1} parent=0 // pred_check
    _
  $region39: #{mfcc_lstm_forward.1} parent=0 // pred_check_branch
    %34 = sbr.rel (0) target = $region41
  $region40: #{mfcc_lstm_forward.1} parent=0 // pred_region
    _
  $region41: #{mfcc_lstm_forward.1} parent=0 // pred_fallthru
    _
  %p36 = scmp.eq.s32.totalorder 0, 0
  // Predicated region
  $region42: #{mfcc_lstm_forward.1} parent=0 // pred_check
    %p37 = pneg %p36
  $region43: #{mfcc_lstm_forward.1} parent=0 // pred_check_branch
    %39 = sbr.rel (%p37) target = $region45
  $region44: #{mfcc_lstm_forward.1} parent=0 // pred_region
    %40 = vst [vmem:[#allocation2] sm:$0xff] 0.0
    %41 = vst [vmem:[#allocation3] sm:$0xff] 0.0
  $region45: #{mfcc_lstm_forward.1} parent=0 // pred_fallthru
    _
  %v42 = vld [vmem:[%s1] sm:$0xff]
  %v43 = vld [vmem:[%s1 + $0x8] sm:$0xff]
  %v44 = vld [vmem:[%s1 + $0x10] sm:$0xff]
  %v45 = vld [vmem:[%s1 + $0x18] sm:$0xff]
  %v46 = vld [vmem:[%s1 + $0x20] sm:$0xff]
  %v47 = vld [vmem:[%s1 + $0x28] sm:$0xff]
  %v48 = vld [vmem:[%s1 + $0x30] sm:$0xff]
  %v49 = vld [vmem:[%s1 + $0x38] sm:$0xff]
  %v50 = vld [vmem:[%s1 + $0x40] sm:$0xff]
  %v51 = vld [vmem:[%s1 + $0x48] sm:$0xff]
  %v52 = vld [vmem:[%s1 + $0x50] sm:$0xff]
  %v53 = vld [vmem:[%s1 + $0x58] sm:$0xff]
  %v54 = vld [vmem:[%s1 + $0x60] sm:$0xff]
  %v55 = vld [vmem:[%s1 + $0x68] sm:$0xff]
  %v56 = vld [vmem:[%s1 + $0x70] sm:$0xff]
  %v57 = vld [vmem:[%s1 + $0x78] sm:$0xff]
  %v58 = vld [vmem:[%s1 + $0x80] sm:$0xff]
  %v59 = vld [vmem:[%s1 + $0x88] sm:$0xff]
  %v60 = vld [vmem:[%s1 + $0x90] sm:$0xff]
  %v61 = vld [vmem:[%s1 + $0x98] sm:$0xff]
  %v62 = vld [vmem:[%s1 + $0xa0] sm:$0xff]
  %v63 = vld [vmem:[%s1 + $0xa8] sm:$0xff]
  %v64 = vld [vmem:[%s1 + $0xb0] sm:$0xff]
  %v65 = vld [vmem:[%s1 + $0xb8] sm:$0xff]
  %v66 = vld [vmem:[%s1 + $0xc0] sm:$0xff]
  %v67 = vld [vmem:[%s1 + $0xc8] sm:$0xff]
  %v68 = vld [vmem:[%s1 + $0xd0] sm:$0xff]
  %v69 = vld [vmem:[%s1 + $0xd8] sm:$0xff]
  %v70 = vld [vmem:[%s1 + $0xe0] sm:$0xff]
  %v71 = vld [vmem:[%s1 + $0xe8] sm:$0xff]
  %v72 = vld [vmem:[%s1 + $0xf0] sm:$0xff]
  %v73 = vld [vmem:[%s1 + $0xf8] sm:$0xff]
  %v74 = vld [vmem:[#allocation2] sm:$0xff]
  %v75 = vld [vmem:[#allocation3] sm:$0xff]
  %v76 = vld [vmem:[%s0] sm:$0xff]
  %v77 = vld [vmem:[%s0 + $0x8] sm:$0xff]
  %v78 = vunpack.c.l.bf16 %v76
  %v79 = vunpack.c.h.bf16 %v76
  %v80 = vunpack.c.l.bf16 %v77
  %v81 = vunpack.c.h.bf16 %v77
  %v82 = vpack.c.bf16 %v74, %v74
  %v115 = vunpack.c.l.b16 %v42
  %v116 = vunpack.c.h.b16 %v42
  %v117 = vunpack.c.l.b16 %v43
  %v118 = vunpack.c.h.b16 %v43
  %v119 = vunpack.c.l.b16 %v44
  %v120 = vunpack.c.h.b16 %v44
  %v121 = vunpack.c.l.b16 %v45
  %v122 = vunpack.c.h.b16 %v45
  %v123 = vunpack.c.l.b16 %v46
  %v124 = vunpack.c.h.b16 %v46
  %v125 = vunpack.c.l.b16 %v47
  %v126 = vunpack.c.h.b16 %v47
  %v127 = vunpack.c.l.b16 %v48
  %v128 = vunpack.c.h.b16 %v48
  %v129 = vunpack.c.l.b16 %v49
  %v130 = vunpack.c.h.b16 %v49
  %v131 = vunpack.c.l.b16 %v50
  %v132 = vunpack.c.h.b16 %v50
  %v133 = vunpack.c.l.b16 %v51
  %v134 = vunpack.c.h.b16 %v51
  %v135 = vunpack.c.l.b16 %v52
  %v136 = vunpack.c.h.b16 %v52
  %v137 = vunpack.c.l.b16 %v53
  %v138 = vunpack.c.h.b16 %v53
  %v139 = vunpack.c.l.b16 %v54
  %v140 = vunpack.c.h.b16 %v54
  %v141 = vunpack.c.l.b16 %v55
  %v142 = vunpack.c.h.b16 %v55
  %v143 = vunpack.c.l.b16 %v56
  %v144 = vunpack.c.h.b16 %v56
  %v145 = vunpack.c.l.b16 %v57
  %v146 = vunpack.c.h.b16 %v57
  %v147 = vunpack.c.l.b16 %v58
  %v148 = vunpack.c.h.b16 %v58
  %v149 = vunpack.c.l.b16 %v59
  %v150 = vunpack.c.h.b16 %v59
  %v151 = vunpack.c.l.b16 %v60
  %v152 = vunpack.c.h.b16 %v60
  %v153 = vunpack.c.l.b16 %v61
  %v154 = vunpack.c.h.b16 %v61
  %v155 = vunpack.c.l.b16 %v62
  %v156 = vunpack.c.h.b16 %v62
  %v157 = vunpack.c.l.b16 %v63
  %v158 = vunpack.c.h.b16 %v63
  %v159 = vunpack.c.l.b16 %v64
  %v160 = vunpack.c.h.b16 %v64
  %v161 = vunpack.c.l.b16 %v65
  %v162 = vunpack.c.h.b16 %v65
  %v163 = vunpack.c.l.b16 %v66
  %v164 = vunpack.c.h.b16 %v66
  %v165 = vunpack.c.l.b16 %v67
  %v166 = vunpack.c.h.b16 %v67
  %v167 = vunpack.c.l.b16 %v68
  %v168 = vunpack.c.h.b16 %v68
  %v169 = vunpack.c.l.b16 %v69
  %v170 = vunpack.c.h.b16 %v69
  %v171 = vunpack.c.l.b16 %v70
  %v172 = vunpack.c.h.b16 %v70
  %v173 = vunpack.c.l.b16 %v71
  %v174 = vunpack.c.h.b16 %v71
  %v175 = vunpack.c.l.b16 %v72
  %v176 = vunpack.c.h.b16 %v72
  %v177 = vunpack.c.l.b16 %v73
  %v178 = vunpack.c.h.b16 %v73
  %v179 = vpack.c.b16 %v119, %v115
  %v180 = vpack.c.b16 %v120, %v116
  %v181 = vpack.c.b16 %v121, %v117
  %v182 = vpack.c.b16 %v122, %v118
  %v183 = vpack.c.b16 %v127, %v123
  %v184 = vpack.c.b16 %v128, %v124
  %v185 = vpack.c.b16 %v129, %v125
  %v186 = vpack.c.b16 %v130, %v126
  %v187 = vpack.c.b16 %v135, %v131
  %v188 = vpack.c.b16 %v136, %v132
  %v189 = vpack.c.b16 %v137, %v133
  %v190 = vpack.c.b16 %v138, %v134
  %v191 = vpack.c.b16 %v143, %v139
  %v192 = vpack.c.b16 %v144, %v140
  %v193 = vpack.c.b16 %v145, %v141
  %v194 = vpack.c.b16 %v146, %v142
  %v195 = vpack.c.b16 %v151, %v147
  %v196 = vpack.c.b16 %v152, %v148
  %v197 = vpack.c.b16 %v153, %v149
  %v198 = vpack.c.b16 %v154, %v150
  %v199 = vpack.c.b16 %v159, %v155
  %v200 = vpack.c.b16 %v160, %v156
  %v201 = vpack.c.b16 %v161, %v157
  %v202 = vpack.c.b16 %v162, %v158
  %v203 = vpack.c.b16 %v167, %v163
  %v204 = vpack.c.b16 %v168, %v164
  %v205 = vpack.c.b16 %v169, %v165
  %v206 = vpack.c.b16 %v170, %v166
  %v207 = vpack.c.b16 %v175, %v171
  %v208 = vpack.c.b16 %v176, %v172
  %v209 = vpack.c.b16 %v177, %v173
  %v210 = vpack.c.b16 %v178, %v174
  %243 = vmatprep.subr.bf16.mxu0 %v208
  %244 = vmatpush1.bf16.msra.mxu0 %v207
  %245 = vmatprep.subr.bf16.mxu0 %v204
  %246 = vmatpush1.bf16.msra.mxu0 %v203
  %247 = vmatprep.subr.bf16.mxu0 %v200
  %248 = vmatpush1.bf16.msra.mxu0 %v199
  %249 = vmatprep.subr.bf16.mxu0 %v196
  %250 = vmatpush1.bf16.msra.mxu0 %v195
  %251 = vmatprep.subr.bf16.mxu0 %v192
  %252 = vmatpush1.bf16.msra.mxu0 %v191
  %253 = vmatprep.subr.bf16.mxu0 %v188
  %254 = vmatpush1.bf16.msra.mxu0 %v187
  %255 = vmatprep.subr.bf16.mxu0 %v184
  %256 = vmatpush1.bf16.msra.mxu0 %v183
  %257 = vmatprep.subr.bf16.mxu0 %v180
  %258 = vmatpush1.bf16.msra.mxu0 %v179
  %259 = vmatprep.subr.bf16.mxu0 0
  %260 = vmatpush2.bf16.msra.mxu0 0
  %261 = vmatprep.subr.bf16.mxu0 0
  %262 = vmatpush2.bf16.msra.mxu0 0
  %263 = vmatprep.subr.bf16.mxu0 0
  %264 = vmatpush2.bf16.msra.mxu0 0
  %265 = vmatprep.subr.bf16.mxu0 0
  %266 = vmatpush2.bf16.msra.mxu0 0
  %267 = vmatprep.subr.bf16.mxu0 0
  %268 = vmatpush2.bf16.msra.mxu0 0
  %269 = vmatprep.subr.bf16.mxu0 0
  %270 = vmatpush2.bf16.msra.mxu0 0
  %271 = vmatprep.subr.bf16.mxu0 0
  %272 = vmatpush2.bf16.msra.mxu0 0
  %273 = vmatprep.subr.bf16.mxu0 0
  %274 = vmatpush2.bf16.msra.mxu0 0
  %275 = vmatprep.mubr.bf16.mxu0 0
  %276 = vmatmul.mubr.bf16.gmra.mxu0 %v82
  %v277 = vpop.f32.mrf.mxu0
  %v278 = vadd.f32 0.0, %v277
  %v279 = vpop.f32.mrf.mxu0
  %v280 = vadd.f32 0.0, %v279
  %v281 = vpop.f32.mrf.mxu0
  %v282 = vpop.f32.mrf.mxu0
  %283 = vdwg.mxu0
  %284 = vmatprep.subr.bf16.mxu0 %v210
  %285 = vmatpush1.bf16.msra.mxu0 %v209
  %286 = vmatprep.subr.bf16.mxu0 %v206
  %287 = vmatpush1.bf16.msra.mxu0 %v205
  %288 = vmatprep.subr.bf16.mxu0 %v202
  %289 = vmatpush1.bf16.msra.mxu0 %v201
  %290 = vmatprep.subr.bf16.mxu0 %v198
  %291 = vmatpush1.bf16.msra.mxu0 %v197
  %292 = vmatprep.subr.bf16.mxu0 %v194
  %293 = vmatpush1.bf16.msra.mxu0 %v193
  %294 = vmatprep.subr.bf16.mxu0 %v190
  %295 = vmatpush1.bf16.msra.mxu0 %v189
  %296 = vmatprep.subr.bf16.mxu0 %v186
  %297 = vmatpush1.bf16.msra.mxu0 %v185
  %298 = vmatprep.subr.bf16.mxu0 %v182
  %299 = vmatpush1.bf16.msra.mxu0 %v181
  %300 = vmatprep.subr.bf16.mxu0 0
  %301 = vmatpush2.bf16.msra.mxu0 0
  %302 = vmatprep.subr.bf16.mxu0 0
  %303 = vmatpush2.bf16.msra.mxu0 0
  %304 = vmatprep.subr.bf16.mxu0 0
  %305 = vmatpush2.bf16.msra.mxu0 0
  %306 = vmatprep.subr.bf16.mxu0 0
  %307 = vmatpush2.bf16.msra.mxu0 0
  %308 = vmatprep.subr.bf16.mxu0 0
  %309 = vmatpush2.bf16.msra.mxu0 0
  %310 = vmatprep.subr.bf16.mxu0 0
  %311 = vmatpush2.bf16.msra.mxu0 0
  %312 = vmatprep.subr.bf16.mxu0 0
  %313 = vmatpush2.bf16.msra.mxu0 0
  %314 = vmatprep.subr.bf16.mxu0 0
  %315 = vmatpush2.bf16.msra.mxu0 0
  %316 = vmatprep.mubr.bf16.mxu0 0
  %317 = vmatmul.mubr.bf16.gmra.mxu0 %v82
  %v318 = vpop.f32.mrf.mxu0
  %v319 = vadd.f32 0.0, %v318
  %v320 = vpop.f32.mrf.mxu0
  %v321 = vadd.f32 0.0, %v320
  %v322 = vpop.f32.mrf.mxu0
  %v323 = vpop.f32.mrf.mxu0
  %324 = vdwg.mxu0
  %v325 = vadd.f32 %v78, %v278
  %v326 = vadd.f32 %v79, %v280
  %v327 = vadd.f32 %v80, %v319
  %v328 = vadd.f32 %v81, %v321
  %v329 = vxor.u32 %v325, 2147483648
  %v330 = vxor.u32 %v326, 2147483648
  %v331 = vxor.u32 %v327, 2147483648
  %v332 = vmul.f32 %v329, 1.442695
  %v333 = vpow.pop %v332
  %v334 = vmul.f32 %v330, 1.442695
  %v335 = vpow.pop %v334
  %v336 = vmul.f32 %v331, 1.442695
  %v337 = vpow.pop %v336
  %v338 = vadd.f32 %v333, 1.0
  %v339 = vadd.f32 %v335, 1.0
  %v340 = vadd.f32 %v337, 1.0
  %v341 = vrcp.pop %v338
  %v342 = vmul.f32 1.0, %v341
  %v343 = vrcp.pop %v339
  %v344 = vmul.f32 1.0, %v343
  %v345 = vrcp.pop %v340
  %v346 = vmul.f32 1.0, %v345
  %v347 = vtanh.pop %v328
  %v348 = vmul.f32 %v344, %v75
  %v349 = vmul.f32 %v342, %v347
  %v350 = vadd.f32 %v348, %v349
  %v351 = vtanh.pop %v350
  %v352 = vmul.f32 %v346, %v351
  %s353 = scalar_lea.vmem %s0, 16
  %v354 = vld [vmem:[%s353] sm:$0xff]
  %v355 = vld [vmem:[%s353 + $0x8] sm:$0xff]
  %v356 = vunpack.c.l.bf16 %v354
  %v357 = vunpack.c.h.bf16 %v354
  %v358 = vunpack.c.l.bf16 %v355
  %v359 = vunpack.c.h.bf16 %v355
  %v360 = vpack.c.bf16 %v352, %v352
  %361 = vmatprep.subr.bf16.mxu0 %v208
  %362 = vmatpush1.bf16.msra.mxu0 %v207
  %363 = vmatprep.subr.bf16.mxu0 %v204
  %364 = vmatpush1.bf16.msra.mxu0 %v203
  %365 = vmatprep.subr.bf16.mxu0 %v200
  %366 = vmatpush1.bf16.msra.mxu0 %v199
  %367 = vmatprep.subr.bf16.mxu0 %v196
  %368 = vmatpush1.bf16.msra.mxu0 %v195
  %369 = vmatprep.subr.bf16.mxu0 %v192
  %370 = vmatpush1.bf16.msra.mxu0 %v191
  %371 = vmatprep.subr.bf16.mxu0 %v188
  %372 = vmatpush1.bf16.msra.mxu0 %v187
  %373 = vmatprep.subr.bf16.mxu0 %v184
  %374 = vmatpush1.bf16.msra.mxu0 %v183
  %375 = vmatprep.subr.bf16.mxu0 %v180
  %376 = vmatpush1.bf16.msra.mxu0 %v179
  %377 = vmatprep.subr.bf16.mxu0 0
  %378 = vmatpush2.bf16.msra.mxu0 0
  %379 = vmatprep.subr.bf16.mxu0 0
  %380 = vmatpush2.bf16.msra.mxu0 0
  %381 = vmatprep.subr.bf16.mxu0 0
  %382 = vmatpush2.bf16.msra.mxu0 0
  %383 = vmatprep.subr.bf16.mxu0 0
  %384 = vmatpush2.bf16.msra.mxu0 0
  %385 = vmatprep.subr.bf16.mxu0 0
  %386 = vmatpush2.bf16.msra.mxu0 0
  %387 = vmatprep.subr.bf16.mxu0 0
  %388 = vmatpush2.bf16.msra.mxu0 0
  %389 = vmatprep.subr.bf16.mxu0 0
  %390 = vmatpush2.bf16.msra.mxu0 0
  %391 = vmatprep.subr.bf16.mxu0 0
  %392 = vmatpush2.bf16.msra.mxu0 0
  %393 = vmatprep.mubr.bf16.mxu0 0
  %394 = vmatmul.mubr.bf16.gmra.mxu0 %v360
  %v395 = vpop.f32.mrf.mxu0
  %v396 = vadd.f32 0.0, %v395
  %v397 = vpop.f32.mrf.mxu0
  %v398 = vadd.f32 0.0, %v397
  %v399 = vpop.f32.mrf.mxu0
  %v400 = vpop.f32.mrf.mxu0
  %401 = vdwg.mxu0
  %402 = vmatprep.subr.bf16.mxu0 %v210
  %403 = vmatpush1.bf16.msra.mxu0 %v209
  %404 = vmatprep.subr.bf16.mxu0 %v206
  %405 = vmatpush1.bf16.msra.mxu0 %v205
  %406 = vmatprep.subr.bf16.mxu0 %v202
  %407 = vmatpush1.bf16.msra.mxu0 %v201
  %408 = vmatprep.subr.bf16.mxu0 %v198
  %409 = vmatpush1.bf16.msra.mxu0 %v197
  %410 = vmatprep.subr.bf16.mxu0 %v194
  %411 = vmatpush1.bf16.msra.mxu0 %v193
  %412 = vmatprep.subr.bf16.mxu0 %v190
  %413 = vmatpush1.bf16.msra.mxu0 %v189
  %414 = vmatprep.subr.bf16.mxu0 %v186
  %415 = vmatpush1.bf16.msra.mxu0 %v185
  %416 = vmatprep.subr.bf16.mxu0 %v182
  %417 = vmatpush1.bf16.msra.mxu0 %v181
  %418 = vmatprep.subr.bf16.mxu0 0
  %419 = vmatpush2.bf16.msra.mxu0 0
  %420 = vmatprep.subr.bf16.mxu0 0
  %421 = vmatpush2.bf16.msra.mxu0 0
  %422 = vmatprep.subr.bf16.mxu0 0
  %423 = vmatpush2.bf16.msra.mxu0 0
  %424 = vmatprep.subr.bf16.mxu0 0
  %425 = vmatpush2.bf16.msra.mxu0 0
  %426 = vmatprep.subr.bf16.mxu0 0
  %427 = vmatpush2.bf16.msra.mxu0 0
  %428 = vmatprep.subr.bf16.mxu0 0
  %429 = vmatpush2.bf16.msra.mxu0 0
  %430 = vmatprep.subr.bf16.mxu0 0
  %431 = vmatpush2.bf16.msra.mxu0 0
  %432 = vmatprep.subr.bf16.mxu0 0
  %433 = vmatpush2.bf16.msra.mxu0 0
  %434 = vmatprep.mubr.bf16.mxu0 0
  %435 = vmatmul.mubr.bf16.gmra.mxu0 %v360
  %v436 = vpop.f32.mrf.mxu0
  %v437 = vadd.f32 0.0, %v436
  %v438 = vpop.f32.mrf.mxu0
  %v439 = vadd.f32 0.0, %v438
  %v440 = vpop.f32.mrf.mxu0
  %v441 = vpop.f32.mrf.mxu0
  %442 = vdwg.mxu0
  %v443 = vadd.f32 %v356, %v396
  %v444 = vadd.f32 %v357, %v398
  %v445 = vadd.f32 %v358, %v437
  %v446 = vadd.f32 %v359, %v439
  %v447 = vxor.u32 %v443, 2147483648
  %v448 = vxor.u32 %v444, 2147483648
  %v449 = vxor.u32 %v445, 2147483648
  %v450 = vmul.f32 %v447, 1.442695
  %v451 = vpow.pop %v450
  %v452 = vmul.f32 %v448, 1.442695
  %v453 = vpow.pop %v452
  %v454 = vmul.f32 %v449, 1.442695
  %v455 = vpow.pop %v454
  %v456 = vadd.f32 %v451, 1.0
  %v457 = vadd.f32 %v453, 1.0
  %v458 = vadd.f32 %v455, 1.0
  %v459 = vrcp.pop %v456
  %v460 = vmul.f32 1.0, %v459
  %v461 = vrcp.pop %v457
  %v462 = vmul.f32 1.0, %v461
  %v463 = vrcp.pop %v458
  %v464 = vmul.f32 1.0, %v463
  %v465 = vtanh.pop %v446
  %v466 = vmul.f32 %v462, %v350
  %v467 = vmul.f32 %v460, %v465
  %v468 = vadd.f32 %v466, %v467
  %v469 = vtanh.pop %v468
  %v470 = vmul.f32 %v464, %v469
  %s471 = scalar_lea.vmem %s0, 32
  %v472 = vld [vmem:[%s471] sm:$0xff]
  %v473 = vld [vmem:[%s471 + $0x8] sm:$0xff]
  %v474 = vunpack.c.l.bf16 %v472
  %v475 = vunpack.c.h.bf16 %v472
  %v476 = vunpack.c.l.bf16 %v473
  %v477 = vunpack.c.h.bf16 %v473
  %v478 = vpack.c.bf16 %v470, %v470
  %479 = vmatprep.subr.bf16.mxu0 %v208
  %480 = vmatpush1.bf16.msra.mxu0 %v207
  %481 = vmatprep.subr.bf16.mxu0 %v204
  %482 = vmatpush1.bf16.msra.mxu0 %v203
  %483 = vmatprep.subr.bf16.mxu0 %v200
  %484 = vmatpush1.bf16.msra.mxu0 %v199
  %485 = vmatprep.subr.bf16.mxu0 %v196
  %486 = vmatpush1.bf16.msra.mxu0 %v195
  %487 = vmatprep.subr.bf16.mxu0 %v192
  %488 = vmatpush1.bf16.msra.mxu0 %v191
  %489 = vmatprep.subr.bf16.mxu0 %v188
  %490 = vmatpush1.bf16.msra.mxu0 %v187
  %491 = vmatprep.subr.bf16.mxu0 %v184
  %492 = vmatpush1.bf16.msra.mxu0 %v183
  %493 = vmatprep.subr.bf16.mxu0 %v180
  %494 = vmatpush1.bf16.msra.mxu0 %v179
  %495 = vmatprep.subr.bf16.mxu0 0
  %496 = vmatpush2.bf16.msra.mxu0 0
  %497 = vmatprep.subr.bf16.mxu0 0
  %498 = vmatpush2.bf16.msra.mxu0 0
  %499 = vmatprep.subr.bf16.mxu0 0
  %500 = vmatpush2.bf16.msra.mxu0 0
  %501 = vmatprep.subr.bf16.mxu0 0
  %502 = vmatpush2.bf16.msra.mxu0 0
  %503 = vmatprep.subr.bf16.mxu0 0
  %504 = vmatpush2.bf16.msra.mxu0 0
  %505 = vmatprep.subr.bf16.mxu0 0
  %506 = vmatpush2.bf16.msra.mxu0 0
  %507 = vmatprep.subr.bf16.mxu0 0
  %508 = vmatpush2.bf16.msra.mxu0 0
  %509 = vmatprep.subr.bf16.mxu0 0
  %510 = vmatpush2.bf16.msra.mxu0 0
  %511 = vmatprep.mubr.bf16.mxu0 0
  %512 = vmatmul.mubr.bf16.gmra.mxu0 %v478
  %v513 = vpop.f32.mrf.mxu0
  %v514 = vadd.f32 0.0, %v513
  %v515 = vpop.f32.mrf.mxu0
  %v516 = vadd.f32 0.0, %v515
  %v517 = vpop.f32.mrf.mxu0
  %v518 = vpop.f32.mrf.mxu0
  %519 = vdwg.mxu0
  %520 = vmatprep.subr.bf16.mxu0 %v210
  %521 = vmatpush1.bf16.msra.mxu0 %v209
  %522 = vmatprep.subr.bf16.mxu0 %v206
  %523 = vmatpush1.bf16.msra.mxu0 %v205
  %524 = vmatprep.subr.bf16.mxu0 %v202
  %525 = vmatpush1.bf16.msra.mxu0 %v201
  %526 = vmatprep.subr.bf16.mxu0 %v198
  %527 = vmatpush1.bf16.msra.mxu0 %v197
  %528 = vmatprep.subr.bf16.mxu0 %v194
  %529 = vmatpush1.bf16.msra.mxu0 %v193
  %530 = vmatprep.subr.bf16.mxu0 %v190
  %531 = vmatpush1.bf16.msra.mxu0 %v189
  %532 = vmatprep.subr.bf16.mxu0 %v186
  %533 = vmatpush1.bf16.msra.mxu0 %v185
  %534 = vmatprep.subr.bf16.mxu0 %v182
  %535 = vmatpush1.bf16.msra.mxu0 %v181
  %536 = vmatprep.subr.bf16.mxu0 0
  %537 = vmatpush2.bf16.msra.mxu0 0
  %538 = vmatprep.subr.bf16.mxu0 0
  %539 = vmatpush2.bf16.msra.mxu0 0
  %540 = vmatprep.subr.bf16.mxu0 0
  %541 = vmatpush2.bf16.msra.mxu0 0
  %542 = vmatprep.subr.bf16.mxu0 0
  %543 = vmatpush2.bf16.msra.mxu0 0
  %544 = vmatprep.subr.bf16.mxu0 0
  %545 = vmatpush2.bf16.msra.mxu0 0
  %546 = vmatprep.subr.bf16.mxu0 0
  %547 = vmatpush2.bf16.msra.mxu0 0
  %548 = vmatprep.subr.bf16.mxu0 0
  %549 = vmatpush2.bf16.msra.mxu0 0
  %550 = vmatprep.subr.bf16.mxu0 0
  %551 = vmatpush2.bf16.msra.mxu0 0
  %552 = vmatprep.mubr.bf16.mxu0 0
  %553 = vmatmul.mubr.bf16.gmra.mxu0 %v478
  %v554 = vpop.f32.mrf.mxu0
  %v555 = vadd.f32 0.0, %v554
  %v556 = vpop.f32.mrf.mxu0
  %v557 = vadd.f32 0.0, %v556
  %v558 = vpop.f32.mrf.mxu0
  %v559 = vpop.f32.mrf.mxu0
  %560 = vdwg.mxu0
  %v561 = vadd.f32 %v474, %v514
  %v562 = vadd.f32 %v475, %v516
  %v563 = vadd.f32 %v476, %v555
  %v564 = vadd.f32 %v477, %v557
  %v565 = vxor.u32 %v561, 2147483648
  %v566 = vxor.u32 %v562, 2147483648
  %v567 = vxor.u32 %v563, 2147483648
  %v568 = vmul.f32 %v565, 1.442695
  %v569 = vpow.pop %v568
  %v570 = vmul.f32 %v566, 1.442695
  %v571 = vpow.pop %v570
  %v572 = vmul.f32 %v567, 1.442695
  %v573 = vpow.pop %v572
  %v574 = vadd.f32 %v569, 1.0
  %v575 = vadd.f32 %v571, 1.0
  %v576 = vadd.f32 %v573, 1.0
  %v577 = vrcp.pop %v574
  %v578 = vmul.f32 1.0, %v577
  %v579 = vrcp.pop %v575
  %v580 = vmul.f32 1.0, %v579
  %v581 = vrcp.pop %v576
  %v582 = vmul.f32 1.0, %v581
  %v583 = vtanh.pop %v564
  %v584 = vmul.f32 %v580, %v468
  %v585 = vmul.f32 %v578, %v583
  %v586 = vadd.f32 %v584, %v585
  %v587 = vtanh.pop %v586
  %v588 = vmul.f32 %v582, %v587
  %s589 = scalar_lea.vmem %s0, 48
  %v590 = vld [vmem:[%s589] sm:$0xff]
  %v591 = vld [vmem:[%s589 + $0x8] sm:$0xff]
  %v592 = vunpack.c.l.bf16 %v590
  %v593 = vunpack.c.h.bf16 %v590
  %v594 = vunpack.c.l.bf16 %v591
  %v595 = vunpack.c.h.bf16 %v591
  %v596 = vpack.c.bf16 %v588, %v588
  %597 = vmatprep.subr.bf16.mxu0 %v208
  %598 = vmatpush1.bf16.msra.mxu0 %v207
  %599 = vmatprep.subr.bf16.mxu0 %v204
  %600 = vmatpush1.bf16.msra.mxu0 %v203
  %601 = vmatprep.subr.bf16.mxu0 %v200
  %602 = vmatpush1.bf16.msra.mxu0 %v199
  %603 = vmatprep.subr.bf16.mxu0 %v196
  %604 = vmatpush1.bf16.msra.mxu0 %v195
  %605 = vmatprep.subr.bf16.mxu0 %v192
  %606 = vmatpush1.bf16.msra.mxu0 %v191
  %607 = vmatprep.subr.bf16.mxu0 %v188
  %608 = vmatpush1.bf16.msra.mxu0 %v187
  %609 = vmatprep.subr.bf16.mxu0 %v184
  %610 = vmatpush1.bf16.msra.mxu0 %v183
  %611 = vmatprep.subr.bf16.mxu0 %v180
  %612 = vmatpush1.bf16.msra.mxu0 %v179
  %613 = vmatprep.subr.bf16.mxu0 0
  %614 = vmatpush2.bf16.msra.mxu0 0
  %615 = vmatprep.subr.bf16.mxu0 0
  %616 = vmatpush2.bf16.msra.mxu0 0
  %617 = vmatprep.subr.bf16.mxu0 0
  %618 = vmatpush2.bf16.msra.mxu0 0
  %619 = vmatprep.subr.bf16.mxu0 0
  %620 = vmatpush2.bf16.msra.mxu0 0
  %621 = vmatprep.subr.bf16.mxu0 0
  %622 = vmatpush2.bf16.msra.mxu0 0
  %623 = vmatprep.subr.bf16.mxu0 0
  %624 = vmatpush2.bf16.msra.mxu0 0
  %625 = vmatprep.subr.bf16.mxu0 0
  %626 = vmatpush2.bf16.msra.mxu0 0
  %627 = vmatprep.subr.bf16.mxu0 0
  %628 = vmatpush2.bf16.msra.mxu0 0
  %629 = vmatprep.mubr.bf16.mxu0 0
  %630 = vmatmul.mubr.bf16.gmra.mxu0 %v596
  %v631 = vpop.f32.mrf.mxu0
  %v632 = vadd.f32 0.0, %v631
  %v633 = vpop.f32.mrf.mxu0
  %v634 = vadd.f32 0.0, %v633
  %v635 = vpop.f32.mrf.mxu0
  %v636 = vpop.f32.mrf.mxu0
  %637 = vdwg.mxu0
  %638 = vmatprep.subr.bf16.mxu0 %v210
  %639 = vmatpush1.bf16.msra.mxu0 %v209
  %640 = vmatprep.subr.bf16.mxu0 %v206
  %641 = vmatpush1.bf16.msra.mxu0 %v205
  %642 = vmatprep.subr.bf16.mxu0 %v202
  %643 = vmatpush1.bf16.msra.mxu0 %v201
  %644 = vmatprep.subr.bf16.mxu0 %v198
  %645 = vmatpush1.bf16.msra.mxu0 %v197
  %646 = vmatprep.subr.bf16.mxu0 %v194
  %647 = vmatpush1.bf16.msra.mxu0 %v193
  %648 = vmatprep.subr.bf16.mxu0 %v190
  %649 = vmatpush1.bf16.msra.mxu0 %v189
  %650 = vmatprep.subr.bf16.mxu0 %v186
  %651 = vmatpush1.bf16.msra.mxu0 %v185
  %652 = vmatprep.subr.bf16.mxu0 %v182
  %653 = vmatpush1.bf16.msra.mxu0 %v181
  %654 = vmatprep.subr.bf16.mxu0 0
  %655 = vmatpush2.bf16.msra.mxu0 0
  %656 = vmatprep.subr.bf16.mxu0 0
  %657 = vmatpush2.bf16.msra.mxu0 0
  %658 = vmatprep.subr.bf16.mxu0 0
  %659 = vmatpush2.bf16.msra.mxu0 0
  %660 = vmatprep.subr.bf16.mxu0 0
  %661 = vmatpush2.bf16.msra.mxu0 0
  %662 = vmatprep.subr.bf16.mxu0 0
  %663 = vmatpush2.bf16.msra.mxu0 0
  %664 = vmatprep.subr.bf16.mxu0 0
  %665 = vmatpush2.bf16.msra.mxu0 0
  %666 = vmatprep.subr.bf16.mxu0 0
  %667 = vmatpush2.bf16.msra.mxu0 0
  %668 = vmatprep.subr.bf16.mxu0 0
  %669 = vmatpush2.bf16.msra.mxu0 0
  %670 = vmatprep.mubr.bf16.mxu0 0
  %671 = vmatmul.mubr.bf16.gmra.mxu0 %v596
  %v672 = vpop.f32.mrf.mxu0
  %v673 = vadd.f32 0.0, %v672
  %v674 = vpop.f32.mrf.mxu0
  %v675 = vadd.f32 0.0, %v674
  %v676 = vpop.f32.mrf.mxu0
  %v677 = vpop.f32.mrf.mxu0
  %678 = vdwg.mxu0
  %v679 = vadd.f32 %v592, %v632
  %v680 = vadd.f32 %v593, %v634
  %v681 = vadd.f32 %v594, %v673
  %v682 = vadd.f32 %v595, %v675
  %v683 = vxor.u32 %v679, 2147483648
  %v684 = vxor.u32 %v680, 2147483648
  %v685 = vxor.u32 %v681, 2147483648
  %v686 = vmul.f32 %v683, 1.442695
  %v687 = vpow.pop %v686
  %v688 = vmul.f32 %v684, 1.442695
  %v689 = vpow.pop %v688
  %v690 = vmul.f32 %v685, 1.442695
  %v691 = vpow.pop %v690
  %v692 = vadd.f32 %v687, 1.0
  %v693 = vadd.f32 %v689, 1.0
  %v694 = vadd.f32 %v691, 1.0
  %v695 = vrcp.pop %v692
  %v696 = vmul.f32 1.0, %v695
  %v697 = vrcp.pop %v693
  %v698 = vmul.f32 1.0, %v697
  %v699 = vrcp.pop %v694
  %v700 = vmul.f32 1.0, %v699
  %v701 = vtanh.pop %v682
  %v702 = vmul.f32 %v698, %v586
  %v703 = vmul.f32 %v696, %v701
  %v704 = vadd.f32 %v702, %v703
  %v705 = vtanh.pop %v704
  %v706 = vmul.f32 %v700, %v705
  %s707 = scalar_lea.vmem %s0, 64
  %v708 = vld [vmem:[%s707] sm:$0xff]
  %v709 = vld [vmem:[%s707 + $0x8] sm:$0xff]
  %v710 = vunpack.c.l.bf16 %v708
  %v711 = vunpack.c.h.bf16 %v708
  %v712 = vunpack.c.l.bf16 %v709
  %v713 = vunpack.c.h.bf16 %v709
  %v714 = vpack.c.bf16 %v706, %v706
  %715 = vmatprep.subr.bf16.mxu0 %v208
  %716 = vmatpush1.bf16.msra.mxu0 %v207
  %717 = vmatprep.subr.bf16.mxu0 %v204
  %718 = vmatpush1.bf16.msra.mxu0 %v203
  %719 = vmatprep.subr.bf16.mxu0 %v200
  %720 = vmatpush1.bf16.msra.mxu0 %v199
  %721 = vmatprep.subr.bf16.mxu0 %v196
  %722 = vmatpush1.bf16.msra.mxu0 %v195
  %723 = vmatprep.subr.bf16.mxu0 %v192
  %724 = vmatpush1.bf16.msra.mxu0 %v191
  %725 = vmatprep.subr.bf16.mxu0 %v188
  %726 = vmatpush1.bf16.msra.mxu0 %v187
  %727 = vmatprep.subr.bf16.mxu0 %v184
  %728 = vmatpush1.bf16.msra.mxu0 %v183
  %729 = vmatprep.subr.bf16.mxu0 %v180
  %730 = vmatpush1.bf16.msra.mxu0 %v179
  %731 = vmatprep.subr.bf16.mxu0 0
  %732 = vmatpush2.bf16.msra.mxu0 0
  %733 = vmatprep.subr.bf16.mxu0 0
  %734 = vmatpush2.bf16.msra.mxu0 0
  %735 = vmatprep.subr.bf16.mxu0 0
  %736 = vmatpush2.bf16.msra.mxu0 0
  %737 = vmatprep.subr.bf16.mxu0 0
  %738 = vmatpush2.bf16.msra.mxu0 0
  %739 = vmatprep.subr.bf16.mxu0 0
  %740 = vmatpush2.bf16.msra.mxu0 0
  %741 = vmatprep.subr.bf16.mxu0 0
  %742 = vmatpush2.bf16.msra.mxu0 0
  %743 = vmatprep.subr.bf16.mxu0 0
  %744 = vmatpush2.bf16.msra.mxu0 0
  %745 = vmatprep.subr.bf16.mxu0 0
  %746 = vmatpush2.bf16.msra.mxu0 0
  %747 = vmatprep.mubr.bf16.mxu0 0
  %748 = vmatmul.mubr.bf16.gmra.mxu0 %v714
  %v749 = vpop.f32.mrf.mxu0
  %v750 = vadd.f32 0.0, %v749
  %v751 = vpop.f32.mrf.mxu0
  %v752 = vadd.f32 0.0, %v751
  %v753 = vpop.f32.mrf.mxu0
  %v754 = vpop.f32.mrf.mxu0
  %755 = vdwg.mxu0
  %756 = vmatprep.subr.bf16.mxu0 %v210
  %757 = vmatpush1.bf16.msra.mxu0 %v209
  %758 = vmatprep.subr.bf16.mxu0 %v206
  %759 = vmatpush1.bf16.msra.mxu0 %v205
  %760 = vmatprep.subr.bf16.mxu0 %v202
  %761 = vmatpush1.bf16.msra.mxu0 %v201
  %762 = vmatprep.subr.bf16.mxu0 %v198
  %763 = vmatpush1.bf16.msra.mxu0 %v197
  %764 = vmatprep.subr.bf16.mxu0 %v194
  %765 = vmatpush1.bf16.msra.mxu0 %v193
  %766 = vmatprep.subr.bf16.mxu0 %v190
  %767 = vmatpush1.bf16.msra.mxu0 %v189
  %768 = vmatprep.subr.bf16.mxu0 %v186
  %769 = vmatpush1.bf16.msra.mxu0 %v185
  %770 = vmatprep.subr.bf16.mxu0 %v182
  %771 = vmatpush1.bf16.msra.mxu0 %v181
  %772 = vmatprep.subr.bf16.mxu0 0
  %773 = vmatpush2.bf16.msra.mxu0 0
  %774 = vmatprep.subr.bf16.mxu0 0
  %775 = vmatpush2.bf16.msra.mxu0 0
  %776 = vmatprep.subr.bf16.mxu0 0
  %777 = vmatpush2.bf16.msra.mxu0 0
  %778 = vmatprep.subr.bf16.mxu0 0
  %779 = vmatpush2.bf16.msra.mxu0 0
  %780 = vmatprep.subr.bf16.mxu0 0
  %781 = vmatpush2.bf16.msra.mxu0 0
  %782 = vmatprep.subr.bf16.mxu0 0
  %783 = vmatpush2.bf16.msra.mxu0 0
  %784 = vmatprep.subr.bf16.mxu0 0
  %785 = vmatpush2.bf16.msra.mxu0 0
  %786 = vmatprep.subr.bf16.mxu0 0
  %787 = vmatpush2.bf16.msra.mxu0 0
  %788 = vmatprep.mubr.bf16.mxu0 0
  %789 = vmatmul.mubr.bf16.gmra.mxu0 %v714
  %v790 = vpop.f32.mrf.mxu0
  %v791 = vadd.f32 0.0, %v790
  %v792 = vpop.f32.mrf.mxu0
  %v793 = vadd.f32 0.0, %v792
  %v794 = vpop.f32.mrf.mxu0
  %v795 = vpop.f32.mrf.mxu0
  %796 = vdwg.mxu0
  %v797 = vadd.f32 %v710, %v750
  %v798 = vadd.f32 %v711, %v752
  %v799 = vadd.f32 %v712, %v791
  %v800 = vadd.f32 %v713, %v793
  %v801 = vxor.u32 %v797, 2147483648
  %v802 = vxor.u32 %v798, 2147483648
  %v803 = vxor.u32 %v799, 2147483648
  %v804 = vmul.f32 %v801, 1.442695
  %v805 = vpow.pop %v804
  %v806 = vmul.f32 %v802, 1.442695
  %v807 = vpow.pop %v806
  %v808 = vmul.f32 %v803, 1.442695
  %v809 = vpow.pop %v808
  %v810 = vadd.f32 %v805, 1.0
  %v811 = vadd.f32 %v807, 1.0
  %v812 = vadd.f32 %v809, 1.0
  %v813 = vrcp.pop %v810
  %v814 = vmul.f32 1.0, %v813
  %v815 = vrcp.pop %v811
  %v816 = vmul.f32 1.0, %v815
  %v817 = vrcp.pop %v812
  %v818 = vmul.f32 1.0, %v817
  %v819 = vtanh.pop %v800
  %v820 = vmul.f32 %v816, %v704
  %v821 = vmul.f32 %v814, %v819
  %v822 = vadd.f32 %v820, %v821
  %v823 = vtanh.pop %v822
  %v824 = vmul.f32 %v818, %v823
  %s825 = scalar_lea.vmem %s0, 80
  %v826 = vld [vmem:[%s825] sm:$0xff]
  %v827 = vld [vmem:[%s825 + $0x8] sm:$0xff]
  %v828 = vunpack.c.l.bf16 %v826
  %v829 = vunpack.c.h.bf16 %v826
  %v830 = vunpack.c.l.bf16 %v827
  %v831 = vunpack.c.h.bf16 %v827
  %v832 = vpack.c.bf16 %v824, %v824
  %833 = vmatprep.subr.bf16.mxu0 %v208
  %834 = vmatpush1.bf16.msra.mxu0 %v207
  %835 = vmatprep.subr.bf16.mxu0 %v204
  %836 = vmatpush1.bf16.msra.mxu0 %v203
  %837 = vmatprep.subr.bf16.mxu0 %v200
  %838 = vmatpush1.bf16.msra.mxu0 %v199
  %839 = vmatprep.subr.bf16.mxu0 %v196
  %840 = vmatpush1.bf16.msra.mxu0 %v195
  %841 = vmatprep.subr.bf16.mxu0 %v192
  %842 = vmatpush1.bf16.msra.mxu0 %v191
  %843 = vmatprep.subr.bf16.mxu0 %v188
  %844 = vmatpush1.bf16.msra.mxu0 %v187
  %845 = vmatprep.subr.bf16.mxu0 %v184
  %846 = vmatpush1.bf16.msra.mxu0 %v183
  %847 = vmatprep.subr.bf16.mxu0 %v180
  %848 = vmatpush1.bf16.msra.mxu0 %v179
  %849 = vmatprep.subr.bf16.mxu0 0
  %850 = vmatpush2.bf16.msra.mxu0 0
  %851 = vmatprep.subr.bf16.mxu0 0
  %852 = vmatpush2.bf16.msra.mxu0 0
  %853 = vmatprep.subr.bf16.mxu0 0
  %854 = vmatpush2.bf16.msra.mxu0 0
  %855 = vmatprep.subr.bf16.mxu0 0
  %856 = vmatpush2.bf16.msra.mxu0 0
  %857 = vmatprep.subr.bf16.mxu0 0
  %858 = vmatpush2.bf16.msra.mxu0 0
  %859 = vmatprep.subr.bf16.mxu0 0
  %860 = vmatpush2.bf16.msra.mxu0 0
  %861 = vmatprep.subr.bf16.mxu0 0
  %862 = vmatpush2.bf16.msra.mxu0 0
  %863 = vmatprep.subr.bf16.mxu0 0
  %864 = vmatpush2.bf16.msra.mxu0 0
  %865 = vmatprep.mubr.bf16.mxu0 0
  %866 = vmatmul.mubr.bf16.gmra.mxu0 %v832
  %v867 = vpop.f32.mrf.mxu0
  %v868 = vadd.f32 0.0, %v867
  %v869 = vpop.f32.mrf.mxu0
  %v870 = vadd.f32 0.0, %v869
  %v871 = vpop.f32.mrf.mxu0
  %v872 = vpop.f32.mrf.mxu0
  %873 = vdwg.mxu0
  %874 = vmatprep.subr.bf16.mxu0 %v210
  %875 = vmatpush1.bf16.msra.mxu0 %v209
  %876 = vmatprep.subr.bf16.mxu0 %v206
  %877 = vmatpush1.bf16.msra.mxu0 %v205
  %878 = vmatprep.subr.bf16.mxu0 %v202
  %879 = vmatpush1.bf16.msra.mxu0 %v201
  %880 = vmatprep.subr.bf16.mxu0 %v198
  %881 = vmatpush1.bf16.msra.mxu0 %v197
  %882 = vmatprep.subr.bf16.mxu0 %v194
  %883 = vmatpush1.bf16.msra.mxu0 %v193
  %884 = vmatprep.subr.bf16.mxu0 %v190
  %885 = vmatpush1.bf16.msra.mxu0 %v189
  %886 = vmatprep.subr.bf16.mxu0 %v186
  %887 = vmatpush1.bf16.msra.mxu0 %v185
  %888 = vmatprep.subr.bf16.mxu0 %v182
  %889 = vmatpush1.bf16.msra.mxu0 %v181
  %890 = vmatprep.subr.bf16.mxu0 0
  %891 = vmatpush2.bf16.msra.mxu0 0
  %892 = vmatprep.subr.bf16.mxu0 0
  %893 = vmatpush2.bf16.msra.mxu0 0
  %894 = vmatprep.subr.bf16.mxu0 0
  %895 = vmatpush2.bf16.msra.mxu0 0
  %896 = vmatprep.subr.bf16.mxu0 0
  %897 = vmatpush2.bf16.msra.mxu0 0
  %898 = vmatprep.subr.bf16.mxu0 0
  %899 = vmatpush2.bf16.msra.mxu0 0
  %900 = vmatprep.subr.bf16.mxu0 0
  %901 = vmatpush2.bf16.msra.mxu0 0
  %902 = vmatprep.subr.bf16.mxu0 0
  %903 = vmatpush2.bf16.msra.mxu0 0
  %904 = vmatprep.subr.bf16.mxu0 0
  %905 = vmatpush2.bf16.msra.mxu0 0
  %906 = vmatprep.mubr.bf16.mxu0 0
  %907 = vmatmul.mubr.bf16.gmra.mxu0 %v832
  %v908 = vpop.f32.mrf.mxu0
  %v909 = vadd.f32 0.0, %v908
  %v910 = vpop.f32.mrf.mxu0
  %v911 = vadd.f32 0.0, %v910
  %v912 = vpop.f32.mrf.mxu0
  %v913 = vpop.f32.mrf.mxu0
  %914 = vdwg.mxu0
  %v915 = vadd.f32 %v828, %v868
  %v916 = vadd.f32 %v829, %v870
  %v917 = vadd.f32 %v830, %v909
  %v918 = vadd.f32 %v831, %v911
  %v919 = vxor.u32 %v915, 2147483648
  %v920 = vxor.u32 %v916, 2147483648
  %v921 = vxor.u32 %v917, 2147483648
  %v922 = vmul.f32 %v919, 1.442695
  %v923 = vpow.pop %v922
  %v924 = vmul.f32 %v920, 1.442695
  %v925 = vpow.pop %v924
  %v926 = vmul.f32 %v921, 1.442695
  %v927 = vpow.pop %v926
  %v928 = vadd.f32 %v923, 1.0
  %v929 = vadd.f32 %v925, 1.0
  %v930 = vadd.f32 %v927, 1.0
  %v931 = vrcp.pop %v928
  %v932 = vmul.f32 1.0, %v931
  %v933 = vrcp.pop %v929
  %v934 = vmul.f32 1.0, %v933
  %v935 = vrcp.pop %v930
  %v936 = vmul.f32 1.0, %v935
  %v937 = vtanh.pop %v918
  %v938 = vmul.f32 %v934, %v822
  %v939 = vmul.f32 %v932, %v937
  %v940 = vadd.f32 %v938, %v939
  %v941 = vtanh.pop %v940
  %v942 = vmul.f32 %v936, %v941
  %s943 = scalar_lea.vmem %s0, 96
  %v944 = vld [vmem:[%s943] sm:$0xff]
  %v945 = vld [vmem:[%s943 + $0x8] sm:$0xff]
  %v946 = vunpack.c.l.bf16 %v944
  %v947 = vunpack.c.h.bf16 %v944
  %v948 = vunpack.c.l.bf16 %v945
  %v949 = vunpack.c.h.bf16 %v945
  %v950 = vpack.c.bf16 %v942, %v942
  %951 = vmatprep.subr.bf16.mxu0 %v208
  %952 = vmatpush1.bf16.msra.mxu0 %v207
  %953 = vmatprep.subr.bf16.mxu0 %v204
  %954 = vmatpush1.bf16.msra.mxu0 %v203
  %955 = vmatprep.subr.bf16.mxu0 %v200
  %956 = vmatpush1.bf16.msra.mxu0 %v199
  %957 = vmatprep.subr.bf16.mxu0 %v196
  %958 = vmatpush1.bf16.msra.mxu0 %v195
  %959 = vmatprep.subr.bf16.mxu0 %v192
  %960 = vmatpush1.bf16.msra.mxu0 %v191
  %961 = vmatprep.subr.bf16.mxu0 %v188
  %962 = vmatpush1.bf16.msra.mxu0 %v187
  %963 = vmatprep.subr.bf16.mxu0 %v184
  %964 = vmatpush1.bf16.msra.mxu0 %v183
  %965 = vmatprep.subr.bf16.mxu0 %v180
  %966 = vmatpush1.bf16.msra.mxu0 %v179
  %967 = vmatprep.subr.bf16.mxu0 0
  %968 = vmatpush2.bf16.msra.mxu0 0
  %969 = vmatprep.subr.bf16.mxu0 0
  %970 = vmatpush2.bf16.msra.mxu0 0
  %971 = vmatprep.subr.bf16.mxu0 0
  %972 = vmatpush2.bf16.msra.mxu0 0
  %973 = vmatprep.subr.bf16.mxu0 0
  %974 = vmatpush2.bf16.msra.mxu0 0
  %975 = vmatprep.subr.bf16.mxu0 0
  %976 = vmatpush2.bf16.msra.mxu0 0
  %977 = vmatprep.subr.bf16.mxu0 0
  %978 = vmatpush2.bf16.msra.mxu0 0
  %979 = vmatprep.subr.bf16.mxu0 0
  %980 = vmatpush2.bf16.msra.mxu0 0
  %981 = vmatprep.subr.bf16.mxu0 0
  %982 = vmatpush2.bf16.msra.mxu0 0
  %983 = vmatprep.mubr.bf16.mxu0 0
  %984 = vmatmul.mubr.bf16.gmra.mxu0 %v950
  %v985 = vpop.f32.mrf.mxu0
  %v986 = vadd.f32 0.0, %v985
  %v987 = vpop.f32.mrf.mxu0
  %v988 = vadd.f32 0.0, %v987
  %v989 = vpop.f32.mrf.mxu0
  %v990 = vpop.f32.mrf.mxu0
  %991 = vdwg.mxu0
  %992 = vmatprep.subr.bf16.mxu0 %v210
  %993 = vmatpush1.bf16.msra.mxu0 %v209
  %994 = vmatprep.subr.bf16.mxu0 %v206
  %995 = vmatpush1.bf16.msra.mxu0 %v205
  %996 = vmatprep.subr.bf16.mxu0 %v202
  %997 = vmatpush1.bf16.msra.mxu0 %v201
  %998 = vmatprep.subr.bf16.mxu0 %v198
  %999 = vmatpush1.bf16.msra.mxu0 %v197
  %1000 = vmatprep.subr.bf16.mxu0 %v194
  %1001 = vmatpush1.bf16.msra.mxu0 %v193
  %1002 = vmatprep.subr.bf16.mxu0 %v190
  %1003 = vmatpush1.bf16.msra.mxu0 %v189
  %1004 = vmatprep.subr.bf16.mxu0 %v186
  %1005 = vmatpush1.bf16.msra.mxu0 %v185
  %1006 = vmatprep.subr.bf16.mxu0 %v182
  %1007 = vmatpush1.bf16.msra.mxu0 %v181
  %1008 = vmatprep.subr.bf16.mxu0 0
  %1009 = vmatpush2.bf16.msra.mxu0 0
  %1010 = vmatprep.subr.bf16.mxu0 0
  %1011 = vmatpush2.bf16.msra.mxu0 0
  %1012 = vmatprep.subr.bf16.mxu0 0
  %1013 = vmatpush2.bf16.msra.mxu0 0
  %1014 = vmatprep.subr.bf16.mxu0 0
  %1015 = vmatpush2.bf16.msra.mxu0 0
  %1016 = vmatprep.subr.bf16.mxu0 0
  %1017 = vmatpush2.bf16.msra.mxu0 0
  %1018 = vmatprep.subr.bf16.mxu0 0
  %1019 = vmatpush2.bf16.msra.mxu0 0
  %1020 = vmatprep.subr.bf16.mxu0 0
  %1021 = vmatpush2.bf16.msra.mxu0 0
  %1022 = vmatprep.subr.bf16.mxu0 0
  %1023 = vmatpush2.bf16.msra.mxu0 0
  %1024 = vmatprep.mubr.bf16.mxu0 0
  %1025 = vmatmul.mubr.bf16.gmra.mxu0 %v950
  %v1026 = vpop.f32.mrf.mxu0
  %v1027 = vadd.f32 0.0, %v1026
  %v1028 = vpop.f32.mrf.mxu0
  %v1029 = vadd.f32 0.0, %v1028
  %v1030 = vpop.f32.mrf.mxu0
  %v1031 = vpop.f32.mrf.mxu0
  %1032 = vdwg.mxu0
  %v1033 = vadd.f32 %v946, %v986
  %v1034 = vadd.f32 %v947, %v988
  %v1035 = vadd.f32 %v948, %v1027
  %v1036 = vadd.f32 %v949, %v1029
  %v1037 = vxor.u32 %v1033, 2147483648
  %v1038 = vxor.u32 %v1034, 2147483648
  %v1039 = vxor.u32 %v1035, 2147483648
  %v1040 = vmul.f32 %v1037, 1.442695
  %v1041 = vpow.pop %v1040
  %v1042 = vmul.f32 %v1038, 1.442695
  %v1043 = vpow.pop %v1042
  %v1044 = vmul.f32 %v1039, 1.442695
  %v1045 = vpow.pop %v1044
  %v1046 = vadd.f32 %v1041, 1.0
  %v1047 = vadd.f32 %v1043, 1.0
  %v1048 = vadd.f32 %v1045, 1.0
  %v1049 = vrcp.pop %v1046
  %v1050 = vmul.f32 1.0, %v1049
  %v1051 = vrcp.pop %v1047
  %v1052 = vmul.f32 1.0, %v1051
  %v1053 = vrcp.pop %v1048
  %v1054 = vmul.f32 1.0, %v1053
  %v1055 = vtanh.pop %v1036
  %v1056 = vmul.f32 %v1052, %v940
  %v1057 = vmul.f32 %v1050, %v1055
  %v1058 = vadd.f32 %v1056, %v1057
  %v1059 = vtanh.pop %v1058
  %v1060 = vmul.f32 %v1054, %v1059
  %s1061 = scalar_lea.vmem %s0, 112
  %v1062 = vld [vmem:[%s1061] sm:$0xff]
  %v1063 = vld [vmem:[%s1061 + $0x8] sm:$0xff]
  %v1064 = vunpack.c.l.bf16 %v1062
  %v1065 = vunpack.c.h.bf16 %v1062
  %v1066 = vunpack.c.l.bf16 %v1063
  %v1067 = vunpack.c.h.bf16 %v1063
  %v1068 = vpack.c.bf16 %v1060, %v1060
  %1069 = vmatprep.subr.bf16.mxu0 %v208
  %1070 = vmatpush1.bf16.msra.mxu0 %v207
  %1071 = vmatprep.subr.bf16.mxu0 %v204
  %1072 = vmatpush1.bf16.msra.mxu0 %v203
  %1073 = vmatprep.subr.bf16.mxu0 %v200
  %1074 = vmatpush1.bf16.msra.mxu0 %v199
  %1075 = vmatprep.subr.bf16.mxu0 %v196
  %1076 = vmatpush1.bf16.msra.mxu0 %v195
  %1077 = vmatprep.subr.bf16.mxu0 %v192
  %1078 = vmatpush1.bf16.msra.mxu0 %v191
  %1079 = vmatprep.subr.bf16.mxu0 %v188
  %1080 = vmatpush1.bf16.msra.mxu0 %v187
  %1081 = vmatprep.subr.bf16.mxu0 %v184
  %1082 = vmatpush1.bf16.msra.mxu0 %v183
  %1083 = vmatprep.subr.bf16.mxu0 %v180
  %1084 = vmatpush1.bf16.msra.mxu0 %v179
  %1085 = vmatprep.subr.bf16.mxu0 0
  %1086 = vmatpush2.bf16.msra.mxu0 0
  %1087 = vmatprep.subr.bf16.mxu0 0
  %1088 = vmatpush2.bf16.msra.mxu0 0
  %1089 = vmatprep.subr.bf16.mxu0 0
  %1090 = vmatpush2.bf16.msra.mxu0 0
  %1091 = vmatprep.subr.bf16.mxu0 0
  %1092 = vmatpush2.bf16.msra.mxu0 0
  %1093 = vmatprep.subr.bf16.mxu0 0
  %1094 = vmatpush2.bf16.msra.mxu0 0
  %1095 = vmatprep.subr.bf16.mxu0 0
  %1096 = vmatpush2.bf16.msra.mxu0 0
  %1097 = vmatprep.subr.bf16.mxu0 0
  %1098 = vmatpush2.bf16.msra.mxu0 0
  %1099 = vmatprep.subr.bf16.mxu0 0
  %1100 = vmatpush2.bf16.msra.mxu0 0
  %1101 = vmatprep.mubr.bf16.mxu0 0
  %1102 = vmatmul.mubr.bf16.gmra.mxu0 %v1068
  %v1103 = vpop.f32.mrf.mxu0
  %v1104 = vadd.f32 0.0, %v1103
  %v1105 = vpop.f32.mrf.mxu0
  %v1106 = vadd.f32 0.0, %v1105
  %v1107 = vpop.f32.mrf.mxu0
  %v1108 = vpop.f32.mrf.mxu0
  %1109 = vdwg.mxu0
  %1110 = vmatprep.subr.bf16.mxu0 %v210
  %1111 = vmatpush1.bf16.msra.mxu0 %v209
  %1112 = vmatprep.subr.bf16.mxu0 %v206
  %1113 = vmatpush1.bf16.msra.mxu0 %v205
  %1114 = vmatprep.subr.bf16.mxu0 %v202
  %1115 = vmatpush1.bf16.msra.mxu0 %v201
  %1116 = vmatprep.subr.bf16.mxu0 %v198
  %1117 = vmatpush1.bf16.msra.mxu0 %v197
  %1118 = vmatprep.subr.bf16.mxu0 %v194
  %1119 = vmatpush1.bf16.msra.mxu0 %v193
  %1120 = vmatprep.subr.bf16.mxu0 %v190
  %1121 = vmatpush1.bf16.msra.mxu0 %v189
  %1122 = vmatprep.subr.bf16.mxu0 %v186
  %1123 = vmatpush1.bf16.msra.mxu0 %v185
  %1124 = vmatprep.subr.bf16.mxu0 %v182
  %1125 = vmatpush1.bf16.msra.mxu0 %v181
  %1126 = vmatprep.subr.bf16.mxu0 0
  %1127 = vmatpush2.bf16.msra.mxu0 0
  %1128 = vmatprep.subr.bf16.mxu0 0
  %1129 = vmatpush2.bf16.msra.mxu0 0
  %1130 = vmatprep.subr.bf16.mxu0 0
  %1131 = vmatpush2.bf16.msra.mxu0 0
  %1132 = vmatprep.subr.bf16.mxu0 0
  %1133 = vmatpush2.bf16.msra.mxu0 0
  %1134 = vmatprep.subr.bf16.mxu0 0
  %1135 = vmatpush2.bf16.msra.mxu0 0
  %1136 = vmatprep.subr.bf16.mxu0 0
  %1137 = vmatpush2.bf16.msra.mxu0 0
  %1138 = vmatprep.subr.bf16.mxu0 0
  %1139 = vmatpush2.bf16.msra.mxu0 0
  %1140 = vmatprep.subr.bf16.mxu0 0
  %1141 = vmatpush2.bf16.msra.mxu0 0
  %1142 = vmatprep.mubr.bf16.mxu0 0
  %1143 = vmatmul.mubr.bf16.gmra.mxu0 %v1068
  %v1144 = vpop.f32.mrf.mxu0
  %v1145 = vadd.f32 0.0, %v1144
  %v1146 = vpop.f32.mrf.mxu0
  %v1147 = vadd.f32 0.0, %v1146
  %v1148 = vpop.f32.mrf.mxu0
  %v1149 = vpop.f32.mrf.mxu0
  %1150 = vdwg.mxu0
  %v1151 = vadd.f32 %v1064, %v1104
  %v1152 = vadd.f32 %v1065, %v1106
  %v1153 = vadd.f32 %v1066, %v1145
  %v1154 = vadd.f32 %v1067, %v1147
  %v1155 = vxor.u32 %v1151, 2147483648
  %v1156 = vxor.u32 %v1152, 2147483648
  %v1157 = vxor.u32 %v1153, 2147483648
  %v1158 = vmul.f32 %v1155, 1.442695
  %v1159 = vpow.pop %v1158
  %v1160 = vmul.f32 %v1156, 1.442695
  %v1161 = vpow.pop %v1160
  %v1162 = vmul.f32 %v1157, 1.442695
  %v1163 = vpow.pop %v1162
  %v1164 = vadd.f32 %v1159, 1.0
  %v1165 = vadd.f32 %v1161, 1.0
  %v1166 = vadd.f32 %v1163, 1.0
  %v1167 = vrcp.pop %v1164
  %v1168 = vmul.f32 1.0, %v1167
  %v1169 = vrcp.pop %v1165
  %v1170 = vmul.f32 1.0, %v1169
  %v1171 = vrcp.pop %v1166
  %v1172 = vmul.f32 1.0, %v1171
  %v1173 = vtanh.pop %v1154
  %v1174 = vmul.f32 %v1170, %v1058
  %v1175 = vmul.f32 %v1168, %v1173
  %v1176 = vadd.f32 %v1174, %v1175
  %v1177 = vtanh.pop %v1176
  %v1178 = vmul.f32 %v1172, %v1177
  %1179 = vst [vmem:[#allocation2] sm:$0xff] %v1178
  %1180 = vst [vmem:[#allocation3] sm:$0xff] %v1176
  // Predicated region
  $region46: #{mfcc_lstm_forward.1} parent=0 // pred_check
    %p1181 = pneg %p36
  $region47: #{mfcc_lstm_forward.1} parent=0 // pred_check_branch
    %1183 = sbr.rel (%p1181) target = $region49
  $region48: #{mfcc_lstm_forward.1} parent=0 // pred_region
    %v1184 = vpack.c.bf16 %v1178, %v1178
    %v1185 = vld [vmem:[%s2] sm:$0xff]
    %v1186 = vld [vmem:[%s2 + $0x8] sm:$0xff]
    %v1187 = vld [vmem:[%s2 + $0x10] sm:$0xff]
    %v1188 = vld [vmem:[%s2 + $0x18] sm:$0xff]
    %v1189 = vld [vmem:[%s2 + $0x20] sm:$0xff]
    %v1190 = vld [vmem:[%s2 + $0x28] sm:$0xff]
    %v1191 = vld [vmem:[%s2 + $0x30] sm:$0xff]
    %v1192 = vld [vmem:[%s2 + $0x38] sm:$0xff]
    %v1193 = vld [vmem:[%s2 + $0x40] sm:$0xff]
    %v1194 = vld [vmem:[%s2 + $0x48] sm:$0xff]
    %v1195 = vld [vmem:[%s2 + $0x50] sm:$0xff]
    %v1196 = vld [vmem:[%s2 + $0x58] sm:$0xff]
    %v1197 = vld [vmem:[%s2 + $0x60] sm:$0xff]
    %v1198 = vld [vmem:[%s2 + $0x68] sm:$0xff]
    %v1199 = vld [vmem:[%s2 + $0x70] sm:$0xff]
    %v1200 = vld [vmem:[%s2 + $0x78] sm:$0xff]
    %v1201 = vld [vmem:[%s3] sm:$0x3]
    %v1203 = vlaneseq
    %v1204 = vshrl.u32 %v1203, 7
    %v1205 = vsub.s32 0, %v1204
    %v1206 = vrot.slane %v1201, %v1205
    %v1207 = vlaneseq
    %v1208 = vshrl.u32 %v1207, 7
    %v1209 = vsub.s32 1, %v1208
    %v1210 = vrot.slane %v1201, %v1209
    %v1229 = vunpack.c.l.b16 %v1185
    %v1230 = vunpack.c.h.b16 %v1185
    %v1231 = vunpack.c.l.b16 %v1186
    %v1232 = vunpack.c.h.b16 %v1186
    %v1233 = vunpack.c.l.b16 %v1187
    %v1234 = vunpack.c.h.b16 %v1187
    %v1235 = vunpack.c.l.b16 %v1188
    %v1236 = vunpack.c.h.b16 %v1188
    %v1237 = vunpack.c.l.b16 %v1189
    %v1238 = vunpack.c.h.b16 %v1189
    %v1239 = vunpack.c.l.b16 %v1190
    %v1240 = vunpack.c.h.b16 %v1190
    %v1241 = vunpack.c.l.b16 %v1191
    %v1242 = vunpack.c.h.b16 %v1191
    %v1243 = vunpack.c.l.b16 %v1192
    %v1244 = vunpack.c.h.b16 %v1192
    %v1245 = vunpack.c.l.b16 %v1193
    %v1246 = vunpack.c.h.b16 %v1193
    %v1247 = vunpack.c.l.b16 %v1194
    %v1248 = vunpack.c.h.b16 %v1194
    %v1249 = vunpack.c.l.b16 %v1195
    %v1250 = vunpack.c.h.b16 %v1195
    %v1251 = vunpack.c.l.b16 %v1196
    %v1252 = vunpack.c.h.b16 %v1196
    %v1253 = vunpack.c.l.b16 %v1197
    %v1254 = vunpack.c.h.b16 %v1197
    %v1255 = vunpack.c.l.b16 %v1198
    %v1256 = vunpack.c.h.b16 %v1198
    %v1257 = vunpack.c.l.b16 %v1199
    %v1258 = vunpack.c.h.b16 %v1199
    %v1259 = vunpack.c.l.b16 %v1200
    %v1260 = vunpack.c.h.b16 %v1200
    %v1261 = vpack.c.b16 %v1231, %v1229
    %v1262 = vpack.c.b16 %v1232, %v1230
    %v1263 = vpack.c.b16 %v1235, %v1233
    %v1264 = vpack.c.b16 %v1236, %v1234
    %v1265 = vpack.c.b16 %v1239, %v1237
    %v1266 = vpack.c.b16 %v1240, %v1238
    %v1267 = vpack.c.b16 %v1243, %v1241
    %v1268 = vpack.c.b16 %v1244, %v1242
    %v1269 = vpack.c.b16 %v1247, %v1245
    %v1270 = vpack.c.b16 %v1248, %v1246
    %v1271 = vpack.c.b16 %v1251, %v1249
    %v1272 = vpack.c.b16 %v1252, %v1250
    %v1273 = vpack.c.b16 %v1255, %v1253
    %v1274 = vpack.c.b16 %v1256, %v1254
    %v1275 = vpack.c.b16 %v1259, %v1257
    %v1276 = vpack.c.b16 %v1260, %v1258
    %1293 = vmatprep.subr.bf16.mxu0 %v1276
    %1294 = vmatpush1.bf16.msra.mxu0 %v1275
    %1295 = vmatprep.subr.bf16.mxu0 %v1274
    %1296 = vmatpush1.bf16.msra.mxu0 %v1273
    %1297 = vmatprep.subr.bf16.mxu0 %v1272
    %1298 = vmatpush1.bf16.msra.mxu0 %v1271
    %1299 = vmatprep.subr.bf16.mxu0 %v1270
    %1300 = vmatpush1.bf16.msra.mxu0 %v1269
    %1301 = vmatprep.subr.bf16.mxu0 %v1268
    %1302 = vmatpush1.bf16.msra.mxu0 %v1267
    %1303 = vmatprep.subr.bf16.mxu0 %v1266
    %1304 = vmatpush1.bf16.msra.mxu0 %v1265
    %1305 = vmatprep.subr.bf16.mxu0 %v1264
    %1306 = vmatpush1.bf16.msra.mxu0 %v1263
    %1307 = vmatprep.subr.bf16.mxu0 %v1262
    %1308 = vmatpush1.bf16.msra.mxu0 %v1261
    %1309 = vmatprep.subr.bf16.mxu0 0
    %1310 = vmatpush2.bf16.msra.mxu0 0
    %1311 = vmatprep.subr.bf16.mxu0 0
    %1312 = vmatpush2.bf16.msra.mxu0 0
    %1313 = vmatprep.subr.bf16.mxu0 0
    %1314 = vmatpush2.bf16.msra.mxu0 0
    %1315 = vmatprep.subr.bf16.mxu0 0
    %1316 = vmatpush2.bf16.msra.mxu0 0
    %1317 = vmatprep.subr.bf16.mxu0 0
    %1318 = vmatpush2.bf16.msra.mxu0 0
    %1319 = vmatprep.subr.bf16.mxu0 0
    %1320 = vmatpush2.bf16.msra.mxu0 0
    %1321 = vmatprep.subr.bf16.mxu0 0
    %1322 = vmatpush2.bf16.msra.mxu0 0
    %1323 = vmatprep.subr.bf16.mxu0 0
    %1324 = vmatpush2.bf16.msra.mxu0 0
    %1325 = vmatprep.mubr.bf16.mxu0 0
    %1326 = vmatmul.mubr.bf16.gmra.mxu0 %v1184
    %v1327 = vpop.f32.mrf.mxu0
    %v1328 = vadd.f32 %v1206, %v1327
    %v1329 = vpop.f32.mrf.mxu0
    %v1330 = vadd.f32 %v1210, %v1329
    %v1331 = vpop.f32.mrf.mxu0
    %v1332 = vpop.f32.mrf.mxu0
    %1333 = vdwg.mxu0
    %v1334 = vmax.f32 %v1328, 0.0
    %v1335 = vmax.f32 %v1330, 0.0
    %v1336 = vpack.c.bf16 %v1334, %v1334
    %v1337 = vpack.c.bf16 %v1335, %v1335
    %v1338 = vld [vmem:[%s4] sm:$0xff]
    %v1339 = vld [vmem:[%s4 + $0x8] sm:$0xff]
    %v1340 = vld [vmem:[%s4 + $0x10] sm:$0xff]
    %v1341 = vld [vmem:[%s4 + $0x18] sm:$0xff]
    %v1342 = vld [vmem:[%s4 + $0x20] sm:$0xff]
    %v1343 = vld [vmem:[%s4 + $0x28] sm:$0xff]
    %v1344 = vld [vmem:[%s4 + $0x30] sm:$0xff]
    %v1345 = vld [vmem:[%s4 + $0x38] sm:$0xff]
    %v1346 = vld [vmem:[%s4 + $0x40] sm:$0xff]
    %v1347 = vld [vmem:[%s4 + $0x48] sm:$0xff]
    %v1348 = vld [vmem:[%s4 + $0x50] sm:$0xff]
    %v1349 = vld [vmem:[%s4 + $0x58] sm:$0xff]
    %v1350 = vld [vmem:[%s4 + $0x60] sm:$0xff]
    %v1351 = vld [vmem:[%s4 + $0x68] sm:$0xff]
    %v1352 = vld [vmem:[%s4 + $0x70] sm:$0xff]
    %v1353 = vld [vmem:[%s4 + $0x78] sm:$0xff]
    %v1354 = vld [vmem:[%s4 + $0x80] sm:$0xff]
    %v1355 = vld [vmem:[%s4 + $0x88] sm:$0xff]
    %v1356 = vld [vmem:[%s4 + $0x90] sm:$0xff]
    %v1357 = vld [vmem:[%s4 + $0x98] sm:$0xff]
    %v1358 = vld [vmem:[%s4 + $0xa0] sm:$0xff]
    %v1359 = vld [vmem:[%s4 + $0xa8] sm:$0xff]
    %v1360 = vld [vmem:[%s4 + $0xb0] sm:$0xff]
    %v1361 = vld [vmem:[%s4 + $0xb8] sm:$0xff]
    %v1362 = vld [vmem:[%s4 + $0xc0] sm:$0xff]
    %v1363 = vld [vmem:[%s4 + $0xc8] sm:$0xff]
    %v1364 = vld [vmem:[%s4 + $0xd0] sm:$0xff]
    %v1365 = vld [vmem:[%s4 + $0xd8] sm:$0xff]
    %v1366 = vld [vmem:[%s4 + $0xe0] sm:$0xff]
    %v1367 = vld [vmem:[%s4 + $0xe8] sm:$0xff]
    %v1368 = vld [vmem:[%s4 + $0xf0] sm:$0xff]
    %v1369 = vld [vmem:[%s4 + $0xf8] sm:$0xff]
    %v1370 = vld [vmem:[%s4 + $0x100] sm:$0xff]
    %v1371 = vld [vmem:[%s4 + $0x108] sm:$0xff]
    %v1372 = vld [vmem:[%s4 + $0x110] sm:$0xff]
    %v1373 = vld [vmem:[%s4 + $0x118] sm:$0xff]
    %v1374 = vld [vmem:[%s4 + $0x120] sm:$0xff]
    %v1375 = vld [vmem:[%s4 + $0x128] sm:$0xff]
    %v1376 = vld [vmem:[%s4 + $0x130] sm:$0xff]
    %v1377 = vld [vmem:[%s4 + $0x138] sm:$0xff]
    %v1378 = vld [vmem:[%s4 + $0x140] sm:$0xff]
    %v1379 = vld [vmem:[%s4 + $0x148] sm:$0xff]
    %v1380 = vld [vmem:[%s4 + $0x150] sm:$0xff]
    %v1381 = vld [vmem:[%s4 + $0x158] sm:$0xff]
    %v1382 = vld [vmem:[%s4 + $0x160] sm:$0xff]
    %v1383 = vld [vmem:[%s4 + $0x168] sm:$0xff]
    %v1384 = vld [vmem:[%s4 + $0x170] sm:$0xff]
    %v1385 = vld [vmem:[%s4 + $0x178] sm:$0xff]
    %v1386 = vld [vmem:[%s4 + $0x180] sm:$0xff]
    %v1387 = vld [vmem:[%s4 + $0x188] sm:$0xff]
    %v1388 = vld [vmem:[%s4 + $0x190] sm:$0xff]
    %v1389 = vld [vmem:[%s4 + $0x198] sm:$0xff]
    %v1390 = vld [vmem:[%s4 + $0x1a0] sm:$0xff]
    %v1391 = vld [vmem:[%s4 + $0x1a8] sm:$0xff]
    %v1392 = vld [vmem:[%s4 + $0x1b0] sm:$0xff]
    %v1393 = vld [vmem:[%s4 + $0x1b8] sm:$0xff]
    %v1394 = vld [vmem:[%s4 + $0x1c0] sm:$0xff]
    %v1395 = vld [vmem:[%s4 + $0x1c8] sm:$0xff]
    %v1396 = vld [vmem:[%s4 + $0x1d0] sm:$0xff]
    %v1397 = vld [vmem:[%s4 + $0x1d8] sm:$0xff]
    %v1398 = vld [vmem:[%s4 + $0x1e0] sm:$0xff]
    %v1399 = vld [vmem:[%s4 + $0x1e8] sm:$0xff]
    %v1400 = vld [vmem:[%s4 + $0x1f0] sm:$0xff]
    %v1401 = vld [vmem:[%s4 + $0x1f8] sm:$0xff]
    %v1402 = vld [vmem:[%s4 + $0x200] sm:$0xff]
    %v1403 = vld [vmem:[%s4 + $0x208] sm:$0xff]
    %v1404 = vld [vmem:[%s4 + $0x210] sm:$0xff]
    %v1405 = vld [vmem:[%s4 + $0x218] sm:$0xff]
    %v1406 = vld [vmem:[%s4 + $0x220] sm:$0xff]
    %v1407 = vld [vmem:[%s4 + $0x228] sm:$0xff]
    %v1408 = vld [vmem:[%s4 + $0x230] sm:$0xff]
    %v1409 = vld [vmem:[%s4 + $0x238] sm:$0xff]
    %v1410 = vld [vmem:[%s4 + $0x240] sm:$0xff]
    %v1411 = vld [vmem:[%s4 + $0x248] sm:$0xff]
    %v1412 = vld [vmem:[%s4 + $0x250] sm:$0xff]
    %v1413 = vld [vmem:[%s4 + $0x258] sm:$0xff]
    %v1414 = vld [vmem:[%s4 + $0x260] sm:$0xff]
    %v1415 = vld [vmem:[%s4 + $0x268] sm:$0xff]
    %v1416 = vld [vmem:[%s4 + $0x270] sm:$0xff]
    %v1417 = vld [vmem:[%s4 + $0x278] sm:$0xff]
    %v1418 = vld [vmem:[%s4 + $0x280] sm:$0xff]
    %v1419 = vld [vmem:[%s4 + $0x288] sm:$0xff]
    %v1420 = vld [vmem:[%s4 + $0x290] sm:$0xff]
    %v1421 = vld [vmem:[%s4 + $0x298] sm:$0xff]
    %v1422 = vld [vmem:[%s4 + $0x2a0] sm:$0xff]
    %v1423 = vld [vmem:[%s4 + $0x2a8] sm:$0xff]
    %v1424 = vld [vmem:[%s4 + $0x2b0] sm:$0xff]
    %v1425 = vld [vmem:[%s4 + $0x2b8] sm:$0xff]
    %v1426 = vld [vmem:[%s4 + $0x2c0] sm:$0xff]
    %v1427 = vld [vmem:[%s4 + $0x2c8] sm:$0xff]
    %v1428 = vld [vmem:[%s4 + $0x2d0] sm:$0xff]
    %v1429 = vld [vmem:[%s4 + $0x2d8] sm:$0xff]
    %v1430 = vld [vmem:[%s4 + $0x2e0] sm:$0xff]
    %v1431 = vld [vmem:[%s4 + $0x2e8] sm:$0xff]
    %v1432 = vld [vmem:[%s4 + $0x2f0] sm:$0xff]
    %v1433 = vld [vmem:[%s4 + $0x2f8] sm:$0xff]
    %v1434 = vld [vmem:[%s4 + $0x300] sm:$0xff]
    %v1435 = vld [vmem:[%s4 + $0x308] sm:$0xff]
    %v1436 = vld [vmem:[%s4 + $0x310] sm:$0xff]
    %v1437 = vld [vmem:[%s4 + $0x318] sm:$0xff]
    %v1438 = vld [vmem:[%s4 + $0x320] sm:$0xff]
    %v1439 = vld [vmem:[%s4 + $0x328] sm:$0xff]
    %v1440 = vld [vmem:[%s4 + $0x330] sm:$0xff]
    %v1441 = vld [vmem:[%s4 + $0x338] sm:$0xff]
    %v1442 = vld [vmem:[%s4 + $0x340] sm:$0xff]
    %v1443 = vld [vmem:[%s4 + $0x348] sm:$0xff]
    %v1444 = vld [vmem:[%s4 + $0x350] sm:$0xff]
    %v1445 = vld [vmem:[%s4 + $0x358] sm:$0xff]
    %v1446 = vld [vmem:[%s4 + $0x360] sm:$0xff]
    %v1447 = vld [vmem:[%s4 + $0x368] sm:$0xff]
    %v1448 = vld [vmem:[%s4 + $0x370] sm:$0xff]
    %v1449 = vld [vmem:[%s4 + $0x378] sm:$0xff]
    %v1450 = vld [vmem:[%s4 + $0x380] sm:$0xff]
    %v1451 = vld [vmem:[%s4 + $0x388] sm:$0xff]
    %v1452 = vld [vmem:[%s4 + $0x390] sm:$0xff]
    %v1453 = vld [vmem:[%s4 + $0x398] sm:$0xff]
    %v1454 = vld [vmem:[%s4 + $0x3a0] sm:$0xff]
    %v1455 = vld [vmem:[%s4 + $0x3a8] sm:$0xff]
    %v1456 = vld [vmem:[%s4 + $0x3b0] sm:$0xff]
    %v1457 = vld [vmem:[%s4 + $0x3b8] sm:$0xff]
    %v1458 = vld [vmem:[%s4 + $0x3c0] sm:$0xff]
    %v1459 = vld [vmem:[%s4 + $0x3c8] sm:$0xff]
    %v1460 = vld [vmem:[%s4 + $0x3d0] sm:$0xff]
    %v1461 = vld [vmem:[%s4 + $0x3d8] sm:$0xff]
    %v1462 = vld [vmem:[%s4 + $0x3e0] sm:$0xff]
    %v1463 = vld [vmem:[%s4 + $0x3e8] sm:$0xff]
    %v1464 = vld [vmem:[%s4 + $0x3f0] sm:$0xff]
    %v1465 = vld [vmem:[%s4 + $0x3f8] sm:$0xff]
    %v1466 = vld [vmem:[%s5] sm:$0xff]
    %v1468 = vlaneseq
    %v1469 = vshrl.u32 %v1468, 7
    %v1470 = vsub.s32 0, %v1469
    %v1471 = vrot.slane %v1466, %v1470
    %v1472 = vlaneseq
    %v1473 = vshrl.u32 %v1472, 7
    %v1474 = vsub.s32 1, %v1473
    %v1475 = vrot.slane %v1466, %v1474
    %v1476 = vlaneseq
    %v1477 = vshrl.u32 %v1476, 7
    %v1478 = vsub.s32 2, %v1477
    %v1479 = vrot.slane %v1466, %v1478
    %v1480 = vlaneseq
    %v1481 = vshrl.u32 %v1480, 7
    %v1482 = vsub.s32 3, %v1481
    %v1483 = vrot.slane %v1466, %v1482
    %v1484 = vlaneseq
    %v1485 = vshrl.u32 %v1484, 7
    %v1486 = vsub.s32 4, %v1485
    %v1487 = vrot.slane %v1466, %v1486
    %v1488 = vlaneseq
    %v1489 = vshrl.u32 %v1488, 7
    %v1490 = vsub.s32 5, %v1489
    %v1491 = vrot.slane %v1466, %v1490
    %v1492 = vlaneseq
    %v1493 = vshrl.u32 %v1492, 7
    %v1494 = vsub.s32 6, %v1493
    %v1495 = vrot.slane %v1466, %v1494
    %v1496 = vlaneseq
    %v1497 = vshrl.u32 %v1496, 7
    %v1498 = vsub.s32 7, %v1497
    %v1499 = vrot.slane %v1466, %v1498
    %v1636 = vunpack.c.l.b16 %v1338
    %v1637 = vunpack.c.h.b16 %v1338
    %v1638 = vunpack.c.l.b16 %v1339
    %v1639 = vunpack.c.h.b16 %v1339
    %v1640 = vunpack.c.l.b16 %v1340
    %v1641 = vunpack.c.h.b16 %v1340
    %v1642 = vunpack.c.l.b16 %v1341
    %v1643 = vunpack.c.h.b16 %v1341
    %v1644 = vunpack.c.l.b16 %v1342
    %v1645 = vunpack.c.h.b16 %v1342
    %v1646 = vunpack.c.l.b16 %v1343
    %v1647 = vunpack.c.h.b16 %v1343
    %v1648 = vunpack.c.l.b16 %v1344
    %v1649 = vunpack.c.h.b16 %v1344
    %v1650 = vunpack.c.l.b16 %v1345
    %v1651 = vunpack.c.h.b16 %v1345
    %v1652 = vunpack.c.l.b16 %v1346
    %v1653 = vunpack.c.h.b16 %v1346
    %v1654 = vunpack.c.l.b16 %v1347
    %v1655 = vunpack.c.h.b16 %v1347
    %v1656 = vunpack.c.l.b16 %v1348
    %v1657 = vunpack.c.h.b16 %v1348
    %v1658 = vunpack.c.l.b16 %v1349
    %v1659 = vunpack.c.h.b16 %v1349
    %v1660 = vunpack.c.l.b16 %v1350
    %v1661 = vunpack.c.h.b16 %v1350
    %v1662 = vunpack.c.l.b16 %v1351
    %v1663 = vunpack.c.h.b16 %v1351
    %v1664 = vunpack.c.l.b16 %v1352
    %v1665 = vunpack.c.h.b16 %v1352
    %v1666 = vunpack.c.l.b16 %v1353
    %v1667 = vunpack.c.h.b16 %v1353
    %v1668 = vunpack.c.l.b16 %v1354
    %v1669 = vunpack.c.h.b16 %v1354
    %v1670 = vunpack.c.l.b16 %v1355
    %v1671 = vunpack.c.h.b16 %v1355
    %v1672 = vunpack.c.l.b16 %v1356
    %v1673 = vunpack.c.h.b16 %v1356
    %v1674 = vunpack.c.l.b16 %v1357
    %v1675 = vunpack.c.h.b16 %v1357
    %v1676 = vunpack.c.l.b16 %v1358
    %v1677 = vunpack.c.h.b16 %v1358
    %v1678 = vunpack.c.l.b16 %v1359
    %v1679 = vunpack.c.h.b16 %v1359
    %v1680 = vunpack.c.l.b16 %v1360
    %v1681 = vunpack.c.h.b16 %v1360
    %v1682 = vunpack.c.l.b16 %v1361
    %v1683 = vunpack.c.h.b16 %v1361
    %v1684 = vunpack.c.l.b16 %v1362
    %v1685 = vunpack.c.h.b16 %v1362
    %v1686 = vunpack.c.l.b16 %v1363
    %v1687 = vunpack.c.h.b16 %v1363
    %v1688 = vunpack.c.l.b16 %v1364
    %v1689 = vunpack.c.h.b16 %v1364
    %v1690 = vunpack.c.l.b16 %v1365
    %v1691 = vunpack.c.h.b16 %v1365
    %v1692 = vunpack.c.l.b16 %v1366
    %v1693 = vunpack.c.h.b16 %v1366
    %v1694 = vunpack.c.l.b16 %v1367
    %v1695 = vunpack.c.h.b16 %v1367
    %v1696 = vunpack.c.l.b16 %v1368
    %v1697 = vunpack.c.h.b16 %v1368
    %v1698 = vunpack.c.l.b16 %v1369
    %v1699 = vunpack.c.h.b16 %v1369
    %v1700 = vunpack.c.l.b16 %v1370
    %v1701 = vunpack.c.h.b16 %v1370
    %v1702 = vunpack.c.l.b16 %v1371
    %v1703 = vunpack.c.h.b16 %v1371
    %v1704 = vunpack.c.l.b16 %v1372
    %v1705 = vunpack.c.h.b16 %v1372
    %v1706 = vunpack.c.l.b16 %v1373
    %v1707 = vunpack.c.h.b16 %v1373
    %v1708 = vunpack.c.l.b16 %v1374
    %v1709 = vunpack.c.h.b16 %v1374
    %v1710 = vunpack.c.l.b16 %v1375
    %v1711 = vunpack.c.h.b16 %v1375
    %v1712 = vunpack.c.l.b16 %v1376
    %v1713 = vunpack.c.h.b16 %v1376
    %v1714 = vunpack.c.l.b16 %v1377
    %v1715 = vunpack.c.h.b16 %v1377
    %v1716 = vunpack.c.l.b16 %v1378
    %v1717 = vunpack.c.h.b16 %v1378
    %v1718 = vunpack.c.l.b16 %v1379
    %v1719 = vunpack.c.h.b16 %v1379
    %v1720 = vunpack.c.l.b16 %v1380
    %v1721 = vunpack.c.h.b16 %v1380
    %v1722 = vunpack.c.l.b16 %v1381
    %v1723 = vunpack.c.h.b16 %v1381
    %v1724 = vunpack.c.l.b16 %v1382
    %v1725 = vunpack.c.h.b16 %v1382
    %v1726 = vunpack.c.l.b16 %v1383
    %v1727 = vunpack.c.h.b16 %v1383
    %v1728 = vunpack.c.l.b16 %v1384
    %v1729 = vunpack.c.h.b16 %v1384
    %v1730 = vunpack.c.l.b16 %v1385
    %v1731 = vunpack.c.h.b16 %v1385
    %v1732 = vunpack.c.l.b16 %v1386
    %v1733 = vunpack.c.h.b16 %v1386
    %v1734 = vunpack.c.l.b16 %v1387
    %v1735 = vunpack.c.h.b16 %v1387
    %v1736 = vunpack.c.l.b16 %v1388
    %v1737 = vunpack.c.h.b16 %v1388
    %v1738 = vunpack.c.l.b16 %v1389
    %v1739 = vunpack.c.h.b16 %v1389
    %v1740 = vunpack.c.l.b16 %v1390
    %v1741 = vunpack.c.h.b16 %v1390
    %v1742 = vunpack.c.l.b16 %v1391
    %v1743 = vunpack.c.h.b16 %v1391
    %v1744 = vunpack.c.l.b16 %v1392
    %v1745 = vunpack.c.h.b16 %v1392
    %v1746 = vunpack.c.l.b16 %v1393
    %v1747 = vunpack.c.h.b16 %v1393
    %v1748 = vunpack.c.l.b16 %v1394
    %v1749 = vunpack.c.h.b16 %v1394
    %v1750 = vunpack.c.l.b16 %v1395
    %v1751 = vunpack.c.h.b16 %v1395
    %v1752 = vunpack.c.l.b16 %v1396
    %v1753 = vunpack.c.h.b16 %v1396
    %v1754 = vunpack.c.l.b16 %v1397
    %v1755 = vunpack.c.h.b16 %v1397
    %v1756 = vunpack.c.l.b16 %v1398
    %v1757 = vunpack.c.h.b16 %v1398
    %v1758 = vunpack.c.l.b16 %v1399
    %v1759 = vunpack.c.h.b16 %v1399
    %v1760 = vunpack.c.l.b16 %v1400
    %v1761 = vunpack.c.h.b16 %v1400
    %v1762 = vunpack.c.l.b16 %v1401
    %v1763 = vunpack.c.h.b16 %v1401
    %v1764 = vunpack.c.l.b16 %v1402
    %v1765 = vunpack.c.h.b16 %v1402
    %v1766 = vunpack.c.l.b16 %v1403
    %v1767 = vunpack.c.h.b16 %v1403
    %v1768 = vunpack.c.l.b16 %v1404
    %v1769 = vunpack.c.h.b16 %v1404
    %v1770 = vunpack.c.l.b16 %v1405
    %v1771 = vunpack.c.h.b16 %v1405
    %v1772 = vunpack.c.l.b16 %v1406
    %v1773 = vunpack.c.h.b16 %v1406
    %v1774 = vunpack.c.l.b16 %v1407
    %v1775 = vunpack.c.h.b16 %v1407
    %v1776 = vunpack.c.l.b16 %v1408
    %v1777 = vunpack.c.h.b16 %v1408
    %v1778 = vunpack.c.l.b16 %v1409
    %v1779 = vunpack.c.h.b16 %v1409
    %v1780 = vunpack.c.l.b16 %v1410
    %v1781 = vunpack.c.h.b16 %v1410
    %v1782 = vunpack.c.l.b16 %v1411
    %v1783 = vunpack.c.h.b16 %v1411
    %v1784 = vunpack.c.l.b16 %v1412
    %v1785 = vunpack.c.h.b16 %v1412
    %v1786 = vunpack.c.l.b16 %v1413
    %v1787 = vunpack.c.h.b16 %v1413
    %v1788 = vunpack.c.l.b16 %v1414
    %v1789 = vunpack.c.h.b16 %v1414
    %v1790 = vunpack.c.l.b16 %v1415
    %v1791 = vunpack.c.h.b16 %v1415
    %v1792 = vunpack.c.l.b16 %v1416
    %v1793 = vunpack.c.h.b16 %v1416
    %v1794 = vunpack.c.l.b16 %v1417
    %v1795 = vunpack.c.h.b16 %v1417
    %v1796 = vunpack.c.l.b16 %v1418
    %v1797 = vunpack.c.h.b16 %v1418
    %v1798 = vunpack.c.l.b16 %v1419
    %v1799 = vunpack.c.h.b16 %v1419
    %v1800 = vunpack.c.l.b16 %v1420
    %v1801 = vunpack.c.h.b16 %v1420
    %v1802 = vunpack.c.l.b16 %v1421
    %v1803 = vunpack.c.h.b16 %v1421
    %v1804 = vunpack.c.l.b16 %v1422
    %v1805 = vunpack.c.h.b16 %v1422
    %v1806 = vunpack.c.l.b16 %v1423
    %v1807 = vunpack.c.h.b16 %v1423
    %v1808 = vunpack.c.l.b16 %v1424
    %v1809 = vunpack.c.h.b16 %v1424
    %v1810 = vunpack.c.l.b16 %v1425
    %v1811 = vunpack.c.h.b16 %v1425
    %v1812 = vunpack.c.l.b16 %v1426
    %v1813 = vunpack.c.h.b16 %v1426
    %v1814 = vunpack.c.l.b16 %v1427
    %v1815 = vunpack.c.h.b16 %v1427
    %v1816 = vunpack.c.l.b16 %v1428
    %v1817 = vunpack.c.h.b16 %v1428
    %v1818 = vunpack.c.l.b16 %v1429
    %v1819 = vunpack.c.h.b16 %v1429
    %v1820 = vunpack.c.l.b16 %v1430
    %v1821 = vunpack.c.h.b16 %v1430
    %v1822 = vunpack.c.l.b16 %v1431
    %v1823 = vunpack.c.h.b16 %v1431
    %v1824 = vunpack.c.l.b16 %v1432
    %v1825 = vunpack.c.h.b16 %v1432
    %v1826 = vunpack.c.l.b16 %v1433
    %v1827 = vunpack.c.h.b16 %v1433
    %v1828 = vunpack.c.l.b16 %v1434
    %v1829 = vunpack.c.h.b16 %v1434
    %v1830 = vunpack.c.l.b16 %v1435
    %v1831 = vunpack.c.h.b16 %v1435
    %v1832 = vunpack.c.l.b16 %v1436
    %v1833 = vunpack.c.h.b16 %v1436
    %v1834 = vunpack.c.l.b16 %v1437
    %v1835 = vunpack.c.h.b16 %v1437
    %v1836 = vunpack.c.l.b16 %v1438
    %v1837 = vunpack.c.h.b16 %v1438
    %v1838 = vunpack.c.l.b16 %v1439
    %v1839 = vunpack.c.h.b16 %v1439
    %v1840 = vunpack.c.l.b16 %v1440
    %v1841 = vunpack.c.h.b16 %v1440
    %v1842 = vunpack.c.l.b16 %v1441
    %v1843 = vunpack.c.h.b16 %v1441
    %v1844 = vunpack.c.l.b16 %v1442
    %v1845 = vunpack.c.h.b16 %v1442
    %v1846 = vunpack.c.l.b16 %v1443
    %v1847 = vunpack.c.h.b16 %v1443
    %v1848 = vunpack.c.l.b16 %v1444
    %v1849 = vunpack.c.h.b16 %v1444
    %v1850 = vunpack.c.l.b16 %v1445
    %v1851 = vunpack.c.h.b16 %v1445
    %v1852 = vunpack.c.l.b16 %v1446
    %v1853 = vunpack.c.h.b16 %v1446
    %v1854 = vunpack.c.l.b16 %v1447
    %v1855 = vunpack.c.h.b16 %v1447
    %v1856 = vunpack.c.l.b16 %v1448
    %v1857 = vunpack.c.h.b16 %v1448
    %v1858 = vunpack.c.l.b16 %v1449
    %v1859 = vunpack.c.h.b16 %v1449
    %v1860 = vunpack.c.l.b16 %v1450
    %v1861 = vunpack.c.h.b16 %v1450
    %v1862 = vunpack.c.l.b16 %v1451
    %v1863 = vunpack.c.h.b16 %v1451
    %v1864 = vunpack.c.l.b16 %v1452
    %v1865 = vunpack.c.h.b16 %v1452
    %v1866 = vunpack.c.l.b16 %v1453
    %v1867 = vunpack.c.h.b16 %v1453
    %v1868 = vunpack.c.l.b16 %v1454
    %v1869 = vunpack.c.h.b16 %v1454
    %v1870 = vunpack.c.l.b16 %v1455
    %v1871 = vunpack.c.h.b16 %v1455
    %v1872 = vunpack.c.l.b16 %v1456
    %v1873 = vunpack.c.h.b16 %v1456
    %v1874 = vunpack.c.l.b16 %v1457
    %v1875 = vunpack.c.h.b16 %v1457
    %v1876 = vunpack.c.l.b16 %v1458
    %v1877 = vunpack.c.h.b16 %v1458
    %v1878 = vunpack.c.l.b16 %v1459
    %v1879 = vunpack.c.h.b16 %v1459
    %v1880 = vunpack.c.l.b16 %v1460
    %v1881 = vunpack.c.h.b16 %v1460
    %v1882 = vunpack.c.l.b16 %v1461
    %v1883 = vunpack.c.h.b16 %v1461
    %v1884 = vunpack.c.l.b16 %v1462
    %v1885 = vunpack.c.h.b16 %v1462
    %v1886 = vunpack.c.l.b16 %v1463
    %v1887 = vunpack.c.h.b16 %v1463
    %v1888 = vunpack.c.l.b16 %v1464
    %v1889 = vunpack.c.h.b16 %v1464
    %v1890 = vunpack.c.l.b16 %v1465
    %v1891 = vunpack.c.h.b16 %v1465
    %v1892 = vpack.c.b16 %v1644, %v1636
    %v1893 = vpack.c.b16 %v1645, %v1637
    %v1894 = vpack.c.b16 %v1646, %v1638
    %v1895 = vpack.c.b16 %v1647, %v1639
    %v1896 = vpack.c.b16 %v1648, %v1640
    %v1897 = vpack.c.b16 %v1649, %v1641
    %v1898 = vpack.c.b16 %v1650, %v1642
    %v1899 = vpack.c.b16 %v1651, %v1643
    %v1900 = vpack.c.b16 %v1660, %v1652
    %v1901 = vpack.c.b16 %v1661, %v1653
    %v1902 = vpack.c.b16 %v1662, %v1654
    %v1903 = vpack.c.b16 %v1663, %v1655
    %v1904 = vpack.c.b16 %v1664, %v1656
    %v1905 = vpack.c.b16 %v1665, %v1657
    %v1906 = vpack.c.b16 %v1666, %v1658
    %v1907 = vpack.c.b16 %v1667, %v1659
    %v1908 = vpack.c.b16 %v1676, %v1668
    %v1909 = vpack.c.b16 %v1677, %v1669
    %v1910 = vpack.c.b16 %v1678, %v1670
    %v1911 = vpack.c.b16 %v1679, %v1671
    %v1912 = vpack.c.b16 %v1680, %v1672
    %v1913 = vpack.c.b16 %v1681, %v1673
    %v1914 = vpack.c.b16 %v1682, %v1674
    %v1915 = vpack.c.b16 %v1683, %v1675
    %v1916 = vpack.c.b16 %v1692, %v1684
    %v1917 = vpack.c.b16 %v1693, %v1685
    %v1918 = vpack.c.b16 %v1694, %v1686
    %v1919 = vpack.c.b16 %v1695, %v1687
    %v1920 = vpack.c.b16 %v1696, %v1688
    %v1921 = vpack.c.b16 %v1697, %v1689
    %v1922 = vpack.c.b16 %v1698, %v1690
    %v1923 = vpack.c.b16 %v1699, %v1691
    %v1924 = vpack.c.b16 %v1708, %v1700
    %v1925 = vpack.c.b16 %v1709, %v1701
    %v1926 = vpack.c.b16 %v1710, %v1702
    %v1927 = vpack.c.b16 %v1711, %v1703
    %v1928 = vpack.c.b16 %v1712, %v1704
    %v1929 = vpack.c.b16 %v1713, %v1705
    %v1930 = vpack.c.b16 %v1714, %v1706
    %v1931 = vpack.c.b16 %v1715, %v1707
    %v1932 = vpack.c.b16 %v1724, %v1716
    %v1933 = vpack.c.b16 %v1725, %v1717
    %v1934 = vpack.c.b16 %v1726, %v1718
    %v1935 = vpack.c.b16 %v1727, %v1719
    %v1936 = vpack.c.b16 %v1728, %v1720
    %v1937 = vpack.c.b16 %v1729, %v1721
    %v1938 = vpack.c.b16 %v1730, %v1722
    %v1939 = vpack.c.b16 %v1731, %v1723
    %v1940 = vpack.c.b16 %v1740, %v1732
    %v1941 = vpack.c.b16 %v1741, %v1733
    %v1942 = vpack.c.b16 %v1742, %v1734
    %v1943 = vpack.c.b16 %v1743, %v1735
    %v1944 = vpack.c.b16 %v1744, %v1736
    %v1945 = vpack.c.b16 %v1745, %v1737
    %v1946 = vpack.c.b16 %v1746, %v1738
    %v1947 = vpack.c.b16 %v1747, %v1739
    %v1948 = vpack.c.b16 %v1756, %v1748
    %v1949 = vpack.c.b16 %v1757, %v1749
    %v1950 = vpack.c.b16 %v1758, %v1750
    %v1951 = vpack.c.b16 %v1759, %v1751
    %v1952 = vpack.c.b16 %v1760, %v1752
    %v1953 = vpack.c.b16 %v1761, %v1753
    %v1954 = vpack.c.b16 %v1762, %v1754
    %v1955 = vpack.c.b16 %v1763, %v1755
    %v1956 = vpack.c.b16 %v1772, %v1764
    %v1957 = vpack.c.b16 %v1773, %v1765
    %v1958 = vpack.c.b16 %v1774, %v1766
    %v1959 = vpack.c.b16 %v1775, %v1767
    %v1960 = vpack.c.b16 %v1776, %v1768
    %v1961 = vpack.c.b16 %v1777, %v1769
    %v1962 = vpack.c.b16 %v1778, %v1770
    %v1963 = vpack.c.b16 %v1779, %v1771
    %v1964 = vpack.c.b16 %v1788, %v1780
    %v1965 = vpack.c.b16 %v1789, %v1781
    %v1966 = vpack.c.b16 %v1790, %v1782
    %v1967 = vpack.c.b16 %v1791, %v1783
    %v1968 = vpack.c.b16 %v1792, %v1784
    %v1969 = vpack.c.b16 %v1793, %v1785
    %v1970 = vpack.c.b16 %v1794, %v1786
    %v1971 = vpack.c.b16 %v1795, %v1787
    %v1972 = vpack.c.b16 %v1804, %v1796
    %v1973 = vpack.c.b16 %v1805, %v1797
    %v1974 = vpack.c.b16 %v1806, %v1798
    %v1975 = vpack.c.b16 %v1807, %v1799
    %v1976 = vpack.c.b16 %v1808, %v1800
    %v1977 = vpack.c.b16 %v1809, %v1801
    %v1978 = vpack.c.b16 %v1810, %v1802
    %v1979 = vpack.c.b16 %v1811, %v1803
    %v1980 = vpack.c.b16 %v1820, %v1812
    %v1981 = vpack.c.b16 %v1821, %v1813
    %v1982 = vpack.c.b16 %v1822, %v1814
    %v1983 = vpack.c.b16 %v1823, %v1815
    %v1984 = vpack.c.b16 %v1824, %v1816
    %v1985 = vpack.c.b16 %v1825, %v1817
    %v1986 = vpack.c.b16 %v1826, %v1818
    %v1987 = vpack.c.b16 %v1827, %v1819
    %v1988 = vpack.c.b16 %v1836, %v1828
    %v1989 = vpack.c.b16 %v1837, %v1829
    %v1990 = vpack.c.b16 %v1838, %v1830
    %v1991 = vpack.c.b16 %v1839, %v1831
    %v1992 = vpack.c.b16 %v1840, %v1832
    %v1993 = vpack.c.b16 %v1841, %v1833
    %v1994 = vpack.c.b16 %v1842, %v1834
    %v1995 = vpack.c.b16 %v1843, %v1835
    %v1996 = vpack.c.b16 %v1852, %v1844
    %v1997 = vpack.c.b16 %v1853, %v1845
    %v1998 = vpack.c.b16 %v1854, %v1846
    %v1999 = vpack.c.b16 %v1855, %v1847
    %v2000 = vpack.c.b16 %v1856, %v1848
    %v2001 = vpack.c.b16 %v1857, %v1849
    %v2002 = vpack.c.b16 %v1858, %v1850
    %v2003 = vpack.c.b16 %v1859, %v1851
    %v2004 = vpack.c.b16 %v1868, %v1860
    %v2005 = vpack.c.b16 %v1869, %v1861
    %v2006 = vpack.c.b16 %v1870, %v1862
    %v2007 = vpack.c.b16 %v1871, %v1863
    %v2008 = vpack.c.b16 %v1872, %v1864
    %v2009 = vpack.c.b16 %v1873, %v1865
    %v2010 = vpack.c.b16 %v1874, %v1866
    %v2011 = vpack.c.b16 %v1875, %v1867
    %v2012 = vpack.c.b16 %v1884, %v1876
    %v2013 = vpack.c.b16 %v1885, %v1877
    %v2014 = vpack.c.b16 %v1886, %v1878
    %v2015 = vpack.c.b16 %v1887, %v1879
    %v2016 = vpack.c.b16 %v1888, %v1880
    %v2017 = vpack.c.b16 %v1889, %v1881
    %v2018 = vpack.c.b16 %v1890, %v1882
    %v2019 = vpack.c.b16 %v1891, %v1883
    %2148 = vmatprep.subr.bf16.mxu0 %v1949
    %2149 = vmatpush1.bf16.msra.mxu0 %v1948
    %2150 = vmatprep.subr.bf16.mxu0 %v1941
    %2151 = vmatpush1.bf16.msra.mxu0 %v1940
    %2152 = vmatprep.subr.bf16.mxu0 %v1933
    %2153 = vmatpush1.bf16.msra.mxu0 %v1932
    %2154 = vmatprep.subr.bf16.mxu0 %v1925
    %2155 = vmatpush1.bf16.msra.mxu0 %v1924
    %2156 = vmatprep.subr.bf16.mxu0 %v1917
    %2157 = vmatpush1.bf16.msra.mxu0 %v1916
    %2158 = vmatprep.subr.bf16.mxu0 %v1909
    %2159 = vmatpush1.bf16.msra.mxu0 %v1908
    %2160 = vmatprep.subr.bf16.mxu0 %v1901
    %2161 = vmatpush1.bf16.msra.mxu0 %v1900
    %2162 = vmatprep.subr.bf16.mxu0 %v1893
    %2163 = vmatpush1.bf16.msra.mxu0 %v1892
    %2164 = vmatprep.subr.bf16.mxu0 %v2013
    %2165 = vmatpush2.bf16.msra.mxu0 %v2012
    %2166 = vmatprep.subr.bf16.mxu0 %v2005
    %2167 = vmatpush2.bf16.msra.mxu0 %v2004
    %2168 = vmatprep.subr.bf16.mxu0 %v1997
    %2169 = vmatpush2.bf16.msra.mxu0 %v1996
    %2170 = vmatprep.subr.bf16.mxu0 %v1989
    %2171 = vmatpush2.bf16.msra.mxu0 %v1988
    %2172 = vmatprep.subr.bf16.mxu0 %v1981
    %2173 = vmatpush2.bf16.msra.mxu0 %v1980
    %2174 = vmatprep.subr.bf16.mxu0 %v1973
    %2175 = vmatpush2.bf16.msra.mxu0 %v1972
    %2176 = vmatprep.subr.bf16.mxu0 %v1965
    %2177 = vmatpush2.bf16.msra.mxu0 %v1964
    %2178 = vmatprep.subr.bf16.mxu0 %v1957
    %2179 = vmatpush2.bf16.msra.mxu0 %v1956
    %2180 = vmatprep.mubr.bf16.mxu0 %v1337
    %2181 = vmatmul.mubr.bf16.gmra.mxu0 %v1336
    %v2182 = vpop.f32.mrf.mxu0
    %v2183 = vadd.f32 %v1471, %v2182
    %v2184 = vpop.f32.mrf.mxu0
    %v2185 = vadd.f32 %v1475, %v2184
    %v2186 = vpop.f32.mrf.mxu0
    %v2187 = vpop.f32.mrf.mxu0
    %2188 = vdwg.mxu0
    %2189 = vmatprep.subr.bf16.mxu0 %v1951
    %2190 = vmatpush1.bf16.msra.mxu0 %v1950
    %2191 = vmatprep.subr.bf16.mxu0 %v1943
    %2192 = vmatpush1.bf16.msra.mxu0 %v1942
    %2193 = vmatprep.subr.bf16.mxu0 %v1935
    %2194 = vmatpush1.bf16.msra.mxu0 %v1934
    %2195 = vmatprep.subr.bf16.mxu0 %v1927
    %2196 = vmatpush1.bf16.msra.mxu0 %v1926
    %2197 = vmatprep.subr.bf16.mxu0 %v1919
    %2198 = vmatpush1.bf16.msra.mxu0 %v1918
    %2199 = vmatprep.subr.bf16.mxu0 %v1911
    %2200 = vmatpush1.bf16.msra.mxu0 %v1910
    %2201 = vmatprep.subr.bf16.mxu0 %v1903
    %2202 = vmatpush1.bf16.msra.mxu0 %v1902
    %2203 = vmatprep.subr.bf16.mxu0 %v1895
    %2204 = vmatpush1.bf16.msra.mxu0 %v1894
    %2205 = vmatprep.subr.bf16.mxu0 %v2015
    %2206 = vmatpush2.bf16.msra.mxu0 %v2014
    %2207 = vmatprep.subr.bf16.mxu0 %v2007
    %2208 = vmatpush2.bf16.msra.mxu0 %v2006
    %2209 = vmatprep.subr.bf16.mxu0 %v1999
    %2210 = vmatpush2.bf16.msra.mxu0 %v1998
    %2211 = vmatprep.subr.bf16.mxu0 %v1991
    %2212 = vmatpush2.bf16.msra.mxu0 %v1990
    %2213 = vmatprep.subr.bf16.mxu0 %v1983
    %2214 = vmatpush2.bf16.msra.mxu0 %v1982
    %2215 = vmatprep.subr.bf16.mxu0 %v1975
    %2216 = vmatpush2.bf16.msra.mxu0 %v1974
    %2217 = vmatprep.subr.bf16.mxu0 %v1967
    %2218 = vmatpush2.bf16.msra.mxu0 %v1966
    %2219 = vmatprep.subr.bf16.mxu0 %v1959
    %2220 = vmatpush2.bf16.msra.mxu0 %v1958
    %2221 = vmatprep.mubr.bf16.mxu0 %v1337
    %2222 = vmatmul.mubr.bf16.gmra.mxu0 %v1336
    %v2223 = vpop.f32.mrf.mxu0
    %v2224 = vadd.f32 %v1479, %v2223
    %v2225 = vpop.f32.mrf.mxu0
    %v2226 = vadd.f32 %v1483, %v2225
    %v2227 = vpop.f32.mrf.mxu0
    %v2228 = vpop.f32.mrf.mxu0
    %2229 = vdwg.mxu0
    %2230 = vmatprep.subr.bf16.mxu0 %v1953
    %2231 = vmatpush1.bf16.msra.mxu0 %v1952
    %2232 = vmatprep.subr.bf16.mxu0 %v1945
    %2233 = vmatpush1.bf16.msra.mxu0 %v1944
    %2234 = vmatprep.subr.bf16.mxu0 %v1937
    %2235 = vmatpush1.bf16.msra.mxu0 %v1936
    %2236 = vmatprep.subr.bf16.mxu0 %v1929
    %2237 = vmatpush1.bf16.msra.mxu0 %v1928
    %2238 = vmatprep.subr.bf16.mxu0 %v1921
    %2239 = vmatpush1.bf16.msra.mxu0 %v1920
    %2240 = vmatprep.subr.bf16.mxu0 %v1913
    %2241 = vmatpush1.bf16.msra.mxu0 %v1912
    %2242 = vmatprep.subr.bf16.mxu0 %v1905
    %2243 = vmatpush1.bf16.msra.mxu0 %v1904
    %2244 = vmatprep.subr.bf16.mxu0 %v1897
    %2245 = vmatpush1.bf16.msra.mxu0 %v1896
    %2246 = vmatprep.subr.bf16.mxu0 %v2017
    %2247 = vmatpush2.bf16.msra.mxu0 %v2016
    %2248 = vmatprep.subr.bf16.mxu0 %v2009
    %2249 = vmatpush2.bf16.msra.mxu0 %v2008
    %2250 = vmatprep.subr.bf16.mxu0 %v2001
    %2251 = vmatpush2.bf16.msra.mxu0 %v2000
    %2252 = vmatprep.subr.bf16.mxu0 %v1993
    %2253 = vmatpush2.bf16.msra.mxu0 %v1992
    %2254 = vmatprep.subr.bf16.mxu0 %v1985
    %2255 = vmatpush2.bf16.msra.mxu0 %v1984
    %2256 = vmatprep.subr.bf16.mxu0 %v1977
    %2257 = vmatpush2.bf16.msra.mxu0 %v1976
    %2258 = vmatprep.subr.bf16.mxu0 %v1969
    %2259 = vmatpush2.bf16.msra.mxu0 %v1968
    %2260 = vmatprep.subr.bf16.mxu0 %v1961
    %2261 = vmatpush2.bf16.msra.mxu0 %v1960
    %2262 = vmatprep.mubr.bf16.mxu0 %v1337
    %2263 = vmatmul.mubr.bf16.gmra.mxu0 %v1336
    %v2264 = vpop.f32.mrf.mxu0
    %v2265 = vadd.f32 %v1487, %v2264
    %v2266 = vpop.f32.mrf.mxu0
    %v2267 = vadd.f32 %v1491, %v2266
    %v2268 = vpop.f32.mrf.mxu0
    %v2269 = vpop.f32.mrf.mxu0
    %2270 = vdwg.mxu0
    %2271 = vmatprep.subr.bf16.mxu0 %v1955
    %2272 = vmatpush1.bf16.msra.mxu0 %v1954
    %2273 = vmatprep.subr.bf16.mxu0 %v1947
    %2274 = vmatpush1.bf16.msra.mxu0 %v1946
    %2275 = vmatprep.subr.bf16.mxu0 %v1939
    %2276 = vmatpush1.bf16.msra.mxu0 %v1938
    %2277 = vmatprep.subr.bf16.mxu0 %v1931
    %2278 = vmatpush1.bf16.msra.mxu0 %v1930
    %2279 = vmatprep.subr.bf16.mxu0 %v1923
    %2280 = vmatpush1.bf16.msra.mxu0 %v1922
    %2281 = vmatprep.subr.bf16.mxu0 %v1915
    %2282 = vmatpush1.bf16.msra.mxu0 %v1914
    %2283 = vmatprep.subr.bf16.mxu0 %v1907
    %2284 = vmatpush1.bf16.msra.mxu0 %v1906
    %2285 = vmatprep.subr.bf16.mxu0 %v1899
    %2286 = vmatpush1.bf16.msra.mxu0 %v1898
    %2287 = vmatprep.subr.bf16.mxu0 %v2019
    %2288 = vmatpush2.bf16.msra.mxu0 %v2018
    %2289 = vmatprep.subr.bf16.mxu0 %v2011
    %2290 = vmatpush2.bf16.msra.mxu0 %v2010
    %2291 = vmatprep.subr.bf16.mxu0 %v2003
    %2292 = vmatpush2.bf16.msra.mxu0 %v2002
    %2293 = vmatprep.subr.bf16.mxu0 %v1995
    %2294 = vmatpush2.bf16.msra.mxu0 %v1994
    %2295 = vmatprep.subr.bf16.mxu0 %v1987
    %2296 = vmatpush2.bf16.msra.mxu0 %v1986
    %2297 = vmatprep.subr.bf16.mxu0 %v1979
    %2298 = vmatpush2.bf16.msra.mxu0 %v1978
    %2299 = vmatprep.subr.bf16.mxu0 %v1971
    %2300 = vmatpush2.bf16.msra.mxu0 %v1970
    %2301 = vmatprep.subr.bf16.mxu0 %v1963
    %2302 = vmatpush2.bf16.msra.mxu0 %v1962
    %2303 = vmatprep.mubr.bf16.mxu0 %v1337
    %2304 = vmatmul.mubr.bf16.gmra.mxu0 %v1336
    %v2305 = vpop.f32.mrf.mxu0
    %v2306 = vadd.f32 %v1495, %v2305
    %v2307 = vpop.f32.mrf.mxu0
    %v2308 = vadd.f32 %v1499, %v2307
    %v2309 = vpop.f32.mrf.mxu0
    %v2310 = vpop.f32.mrf.mxu0
    %2311 = vdwg.mxu0
    %v2312 = vmax.f32 %v2183, 0.0
    %v2313 = vmax.f32 %v2185, 0.0
    %v2314 = vmax.f32 %v2224, 0.0
    %v2315 = vmax.f32 %v2226, 0.0
    %v2316 = vmax.f32 %v2265, 0.0
    %v2317 = vmax.f32 %v2267, 0.0
    %v2318 = vmax.f32 %v2306, 0.0
    %v2319 = vmax.f32 %v2308, 0.0
    %v2320 = vpack.c.bf16 %v2312, %v2312
    %v2321 = vpack.c.bf16 %v2313, %v2313
    %v2322 = vpack.c.bf16 %v2314, %v2314
    %v2323 = vpack.c.bf16 %v2315, %v2315
    %v2324 = vpack.c.bf16 %v2316, %v2316
    %v2325 = vpack.c.bf16 %v2317, %v2317
    %v2326 = vpack.c.bf16 %v2318, %v2318
    %v2327 = vpack.c.bf16 %v2319, %v2319
    %v2328 = vld [vmem:[%s6] sm:$0xff]
    %v2329 = vld [vmem:[%s6 + $0x8] sm:$0xff]
    %v2330 = vld [vmem:[%s6 + $0x10] sm:$0xff]
    %v2331 = vld [vmem:[%s6 + $0x18] sm:$0xff]
    %v2332 = vld [vmem:[%s6 + $0x20] sm:$0xff]
    %v2333 = vld [vmem:[%s6 + $0x28] sm:$0xff]
    %v2334 = vld [vmem:[%s6 + $0x30] sm:$0xff]
    %v2335 = vld [vmem:[%s6 + $0x38] sm:$0xff]
    %v2336 = vld [vmem:[%s6 + $0x40] sm:$0xff]
    %v2337 = vld [vmem:[%s6 + $0x48] sm:$0xff]
    %v2338 = vld [vmem:[%s6 + $0x50] sm:$0xff]
    %v2339 = vld [vmem:[%s6 + $0x58] sm:$0xff]
    %v2340 = vld [vmem:[%s6 + $0x60] sm:$0xff]
    %v2341 = vld [vmem:[%s6 + $0x68] sm:$0xff]
    %v2342 = vld [vmem:[%s6 + $0x70] sm:$0xff]
    %v2343 = vld [vmem:[%s6 + $0x78] sm:$0xff]
    %v2344 = vld [vmem:[%s6 + $0x80] sm:$0xff]
    %v2345 = vld [vmem:[%s6 + $0x88] sm:$0xff]
    %v2346 = vld [vmem:[%s6 + $0x90] sm:$0xff]
    %v2347 = vld [vmem:[%s6 + $0x98] sm:$0xff]
    %v2348 = vld [vmem:[%s6 + $0xa0] sm:$0xff]
    %v2349 = vld [vmem:[%s6 + $0xa8] sm:$0xff]
    %v2350 = vld [vmem:[%s6 + $0xb0] sm:$0xff]
    %v2351 = vld [vmem:[%s6 + $0xb8] sm:$0xff]
    %v2352 = vld [vmem:[%s6 + $0xc0] sm:$0xff]
    %v2353 = vld [vmem:[%s6 + $0xc8] sm:$0xff]
    %v2354 = vld [vmem:[%s6 + $0xd0] sm:$0xff]
    %v2355 = vld [vmem:[%s6 + $0xd8] sm:$0xff]
    %v2356 = vld [vmem:[%s6 + $0xe0] sm:$0xff]
    %v2357 = vld [vmem:[%s6 + $0xe8] sm:$0xff]
    %v2358 = vld [vmem:[%s6 + $0xf0] sm:$0xff]
    %v2359 = vld [vmem:[%s6 + $0xf8] sm:$0xff]
    %v2360 = vld [vmem:[%s6 + $0x100] sm:$0xff]
    %v2361 = vld [vmem:[%s6 + $0x108] sm:$0xff]
    %v2362 = vld [vmem:[%s6 + $0x110] sm:$0xff]
    %v2363 = vld [vmem:[%s6 + $0x118] sm:$0xff]
    %v2364 = vld [vmem:[%s6 + $0x120] sm:$0xff]
    %v2365 = vld [vmem:[%s6 + $0x128] sm:$0xff]
    %v2366 = vld [vmem:[%s6 + $0x130] sm:$0xff]
    %v2367 = vld [vmem:[%s6 + $0x138] sm:$0xff]
    %v2368 = vld [vmem:[%s6 + $0x140] sm:$0xff]
    %v2369 = vld [vmem:[%s6 + $0x148] sm:$0xff]
    %v2370 = vld [vmem:[%s6 + $0x150] sm:$0xff]
    %v2371 = vld [vmem:[%s6 + $0x158] sm:$0xff]
    %v2372 = vld [vmem:[%s6 + $0x160] sm:$0xff]
    %v2373 = vld [vmem:[%s6 + $0x168] sm:$0xff]
    %v2374 = vld [vmem:[%s6 + $0x170] sm:$0xff]
    %v2375 = vld [vmem:[%s6 + $0x178] sm:$0xff]
    %v2376 = vld [vmem:[%s6 + $0x180] sm:$0xff]
    %v2377 = vld [vmem:[%s6 + $0x188] sm:$0xff]
    %v2378 = vld [vmem:[%s6 + $0x190] sm:$0xff]
    %v2379 = vld [vmem:[%s6 + $0x198] sm:$0xff]
    %v2380 = vld [vmem:[%s6 + $0x1a0] sm:$0xff]
    %v2381 = vld [vmem:[%s6 + $0x1a8] sm:$0xff]
    %v2382 = vld [vmem:[%s6 + $0x1b0] sm:$0xff]
    %v2383 = vld [vmem:[%s6 + $0x1b8] sm:$0xff]
    %v2384 = vld [vmem:[%s6 + $0x1c0] sm:$0xff]
    %v2385 = vld [vmem:[%s6 + $0x1c8] sm:$0xff]
    %v2386 = vld [vmem:[%s6 + $0x1d0] sm:$0xff]
    %v2387 = vld [vmem:[%s6 + $0x1d8] sm:$0xff]
    %v2388 = vld [vmem:[%s6 + $0x1e0] sm:$0xff]
    %v2389 = vld [vmem:[%s6 + $0x1e8] sm:$0xff]
    %v2390 = vld [vmem:[%s6 + $0x1f0] sm:$0xff]
    %v2391 = vld [vmem:[%s6 + $0x1f8] sm:$0xff]
    %v2392 = vld [vmem:[%s6 + $0x200] sm:$0xff]
    %v2393 = vld [vmem:[%s6 + $0x208] sm:$0xff]
    %v2394 = vld [vmem:[%s6 + $0x210] sm:$0xff]
    %v2395 = vld [vmem:[%s6 + $0x218] sm:$0xff]
    %v2396 = vld [vmem:[%s6 + $0x220] sm:$0xff]
    %v2397 = vld [vmem:[%s6 + $0x228] sm:$0xff]
    %v2398 = vld [vmem:[%s6 + $0x230] sm:$0xff]
    %v2399 = vld [vmem:[%s6 + $0x238] sm:$0xff]
    %v2400 = vld [vmem:[%s6 + $0x240] sm:$0xff]
    %v2401 = vld [vmem:[%s6 + $0x248] sm:$0xff]
    %v2402 = vld [vmem:[%s6 + $0x250] sm:$0xff]
    %v2403 = vld [vmem:[%s6 + $0x258] sm:$0xff]
    %v2404 = vld [vmem:[%s6 + $0x260] sm:$0xff]
    %v2405 = vld [vmem:[%s6 + $0x268] sm:$0xff]
    %v2406 = vld [vmem:[%s6 + $0x270] sm:$0xff]
    %v2407 = vld [vmem:[%s6 + $0x278] sm:$0xff]
    %v2408 = vld [vmem:[%s6 + $0x280] sm:$0xff]
    %v2409 = vld [vmem:[%s6 + $0x288] sm:$0xff]
    %v2410 = vld [vmem:[%s6 + $0x290] sm:$0xff]
    %v2411 = vld [vmem:[%s6 + $0x298] sm:$0xff]
    %v2412 = vld [vmem:[%s6 + $0x2a0] sm:$0xff]
    %v2413 = vld [vmem:[%s6 + $0x2a8] sm:$0xff]
    %v2414 = vld [vmem:[%s6 + $0x2b0] sm:$0xff]
    %v2415 = vld [vmem:[%s6 + $0x2b8] sm:$0xff]
    %v2416 = vld [vmem:[%s6 + $0x2c0] sm:$0xff]
    %v2417 = vld [vmem:[%s6 + $0x2c8] sm:$0xff]
    %v2418 = vld [vmem:[%s6 + $0x2d0] sm:$0xff]
    %v2419 = vld [vmem:[%s6 + $0x2d8] sm:$0xff]
    %v2420 = vld [vmem:[%s6 + $0x2e0] sm:$0xff]
    %v2421 = vld [vmem:[%s6 + $0x2e8] sm:$0xff]
    %v2422 = vld [vmem:[%s6 + $0x2f0] sm:$0xff]
    %v2423 = vld [vmem:[%s6 + $0x2f8] sm:$0xff]
    %v2424 = vld [vmem:[%s6 + $0x300] sm:$0xff]
    %v2425 = vld [vmem:[%s6 + $0x308] sm:$0xff]
    %v2426 = vld [vmem:[%s6 + $0x310] sm:$0xff]
    %v2427 = vld [vmem:[%s6 + $0x318] sm:$0xff]
    %v2428 = vld [vmem:[%s6 + $0x320] sm:$0xff]
    %v2429 = vld [vmem:[%s6 + $0x328] sm:$0xff]
    %v2430 = vld [vmem:[%s6 + $0x330] sm:$0xff]
    %v2431 = vld [vmem:[%s6 + $0x338] sm:$0xff]
    %v2432 = vld [vmem:[%s6 + $0x340] sm:$0xff]
    %v2433 = vld [vmem:[%s6 + $0x348] sm:$0xff]
    %v2434 = vld [vmem:[%s6 + $0x350] sm:$0xff]
    %v2435 = vld [vmem:[%s6 + $0x358] sm:$0xff]
    %v2436 = vld [vmem:[%s6 + $0x360] sm:$0xff]
    %v2437 = vld [vmem:[%s6 + $0x368] sm:$0xff]
    %v2438 = vld [vmem:[%s6 + $0x370] sm:$0xff]
    %v2439 = vld [vmem:[%s6 + $0x378] sm:$0xff]
    %v2440 = vld [vmem:[%s6 + $0x380] sm:$0xff]
    %v2441 = vld [vmem:[%s6 + $0x388] sm:$0xff]
    %v2442 = vld [vmem:[%s6 + $0x390] sm:$0xff]
    %v2443 = vld [vmem:[%s6 + $0x398] sm:$0xff]
    %v2444 = vld [vmem:[%s6 + $0x3a0] sm:$0xff]
    %v2445 = vld [vmem:[%s6 + $0x3a8] sm:$0xff]
    %v2446 = vld [vmem:[%s6 + $0x3b0] sm:$0xff]
    %v2447 = vld [vmem:[%s6 + $0x3b8] sm:$0xff]
    %v2448 = vld [vmem:[%s6 + $0x3c0] sm:$0xff]
    %v2449 = vld [vmem:[%s6 + $0x3c8] sm:$0xff]
    %v2450 = vld [vmem:[%s6 + $0x3d0] sm:$0xff]
    %v2451 = vld [vmem:[%s6 + $0x3d8] sm:$0xff]
    %v2452 = vld [vmem:[%s6 + $0x3e0] sm:$0xff]
    %v2453 = vld [vmem:[%s6 + $0x3e8] sm:$0xff]
    %v2454 = vld [vmem:[%s6 + $0x3f0] sm:$0xff]
    %v2455 = vld [vmem:[%s6 + $0x3f8] sm:$0xff]
    %v2456 = vld [vmem:[%s7] sm:$0x3]
    %v2458 = vlaneseq
    %v2459 = vshrl.u32 %v2458, 7
    %v2460 = vsub.s32 0, %v2459
    %v2461 = vrot.slane %v2456, %v2460
    %v2462 = vlaneseq
    %v2463 = vshrl.u32 %v2462, 7
    %v2464 = vsub.s32 1, %v2463
    %v2465 = vrot.slane %v2456, %v2464
    %v2596 = vunpack.c.l.b16 %v2328
    %v2597 = vunpack.c.h.b16 %v2328
    %v2598 = vunpack.c.l.b16 %v2329
    %v2599 = vunpack.c.h.b16 %v2329
    %v2600 = vunpack.c.l.b16 %v2330
    %v2601 = vunpack.c.h.b16 %v2330
    %v2602 = vunpack.c.l.b16 %v2331
    %v2603 = vunpack.c.h.b16 %v2331
    %v2604 = vunpack.c.l.b16 %v2332
    %v2605 = vunpack.c.h.b16 %v2332
    %v2606 = vunpack.c.l.b16 %v2333
    %v2607 = vunpack.c.h.b16 %v2333
    %v2608 = vunpack.c.l.b16 %v2334
    %v2609 = vunpack.c.h.b16 %v2334
    %v2610 = vunpack.c.l.b16 %v2335
    %v2611 = vunpack.c.h.b16 %v2335
    %v2612 = vunpack.c.l.b16 %v2336
    %v2613 = vunpack.c.h.b16 %v2336
    %v2614 = vunpack.c.l.b16 %v2337
    %v2615 = vunpack.c.h.b16 %v2337
    %v2616 = vunpack.c.l.b16 %v2338
    %v2617 = vunpack.c.h.b16 %v2338
    %v2618 = vunpack.c.l.b16 %v2339
    %v2619 = vunpack.c.h.b16 %v2339
    %v2620 = vunpack.c.l.b16 %v2340
    %v2621 = vunpack.c.h.b16 %v2340
    %v2622 = vunpack.c.l.b16 %v2341
    %v2623 = vunpack.c.h.b16 %v2341
    %v2624 = vunpack.c.l.b16 %v2342
    %v2625 = vunpack.c.h.b16 %v2342
    %v2626 = vunpack.c.l.b16 %v2343
    %v2627 = vunpack.c.h.b16 %v2343
    %v2628 = vunpack.c.l.b16 %v2344
    %v2629 = vunpack.c.h.b16 %v2344
    %v2630 = vunpack.c.l.b16 %v2345
    %v2631 = vunpack.c.h.b16 %v2345
    %v2632 = vunpack.c.l.b16 %v2346
    %v2633 = vunpack.c.h.b16 %v2346
    %v2634 = vunpack.c.l.b16 %v2347
    %v2635 = vunpack.c.h.b16 %v2347
    %v2636 = vunpack.c.l.b16 %v2348
    %v2637 = vunpack.c.h.b16 %v2348
    %v2638 = vunpack.c.l.b16 %v2349
    %v2639 = vunpack.c.h.b16 %v2349
    %v2640 = vunpack.c.l.b16 %v2350
    %v2641 = vunpack.c.h.b16 %v2350
    %v2642 = vunpack.c.l.b16 %v2351
    %v2643 = vunpack.c.h.b16 %v2351
    %v2644 = vunpack.c.l.b16 %v2352
    %v2645 = vunpack.c.h.b16 %v2352
    %v2646 = vunpack.c.l.b16 %v2353
    %v2647 = vunpack.c.h.b16 %v2353
    %v2648 = vunpack.c.l.b16 %v2354
    %v2649 = vunpack.c.h.b16 %v2354
    %v2650 = vunpack.c.l.b16 %v2355
    %v2651 = vunpack.c.h.b16 %v2355
    %v2652 = vunpack.c.l.b16 %v2356
    %v2653 = vunpack.c.h.b16 %v2356
    %v2654 = vunpack.c.l.b16 %v2357
    %v2655 = vunpack.c.h.b16 %v2357
    %v2656 = vunpack.c.l.b16 %v2358
    %v2657 = vunpack.c.h.b16 %v2358
    %v2658 = vunpack.c.l.b16 %v2359
    %v2659 = vunpack.c.h.b16 %v2359
    %v2660 = vunpack.c.l.b16 %v2360
    %v2661 = vunpack.c.h.b16 %v2360
    %v2662 = vunpack.c.l.b16 %v2361
    %v2663 = vunpack.c.h.b16 %v2361
    %v2664 = vunpack.c.l.b16 %v2362
    %v2665 = vunpack.c.h.b16 %v2362
    %v2666 = vunpack.c.l.b16 %v2363
    %v2667 = vunpack.c.h.b16 %v2363
    %v2668 = vunpack.c.l.b16 %v2364
    %v2669 = vunpack.c.h.b16 %v2364
    %v2670 = vunpack.c.l.b16 %v2365
    %v2671 = vunpack.c.h.b16 %v2365
    %v2672 = vunpack.c.l.b16 %v2366
    %v2673 = vunpack.c.h.b16 %v2366
    %v2674 = vunpack.c.l.b16 %v2367
    %v2675 = vunpack.c.h.b16 %v2367
    %v2676 = vunpack.c.l.b16 %v2368
    %v2677 = vunpack.c.h.b16 %v2368
    %v2678 = vunpack.c.l.b16 %v2369
    %v2679 = vunpack.c.h.b16 %v2369
    %v2680 = vunpack.c.l.b16 %v2370
    %v2681 = vunpack.c.h.b16 %v2370
    %v2682 = vunpack.c.l.b16 %v2371
    %v2683 = vunpack.c.h.b16 %v2371
    %v2684 = vunpack.c.l.b16 %v2372
    %v2685 = vunpack.c.h.b16 %v2372
    %v2686 = vunpack.c.l.b16 %v2373
    %v2687 = vunpack.c.h.b16 %v2373
    %v2688 = vunpack.c.l.b16 %v2374
    %v2689 = vunpack.c.h.b16 %v2374
    %v2690 = vunpack.c.l.b16 %v2375
    %v2691 = vunpack.c.h.b16 %v2375
    %v2692 = vunpack.c.l.b16 %v2376
    %v2693 = vunpack.c.h.b16 %v2376
    %v2694 = vunpack.c.l.b16 %v2377
    %v2695 = vunpack.c.h.b16 %v2377
    %v2696 = vunpack.c.l.b16 %v2378
    %v2697 = vunpack.c.h.b16 %v2378
    %v2698 = vunpack.c.l.b16 %v2379
    %v2699 = vunpack.c.h.b16 %v2379
    %v2700 = vunpack.c.l.b16 %v2380
    %v2701 = vunpack.c.h.b16 %v2380
    %v2702 = vunpack.c.l.b16 %v2381
    %v2703 = vunpack.c.h.b16 %v2381
    %v2704 = vunpack.c.l.b16 %v2382
    %v2705 = vunpack.c.h.b16 %v2382
    %v2706 = vunpack.c.l.b16 %v2383
    %v2707 = vunpack.c.h.b16 %v2383
    %v2708 = vunpack.c.l.b16 %v2384
    %v2709 = vunpack.c.h.b16 %v2384
    %v2710 = vunpack.c.l.b16 %v2385
    %v2711 = vunpack.c.h.b16 %v2385
    %v2712 = vunpack.c.l.b16 %v2386
    %v2713 = vunpack.c.h.b16 %v2386
    %v2714 = vunpack.c.l.b16 %v2387
    %v2715 = vunpack.c.h.b16 %v2387
    %v2716 = vunpack.c.l.b16 %v2388
    %v2717 = vunpack.c.h.b16 %v2388
    %v2718 = vunpack.c.l.b16 %v2389
    %v2719 = vunpack.c.h.b16 %v2389
    %v2720 = vunpack.c.l.b16 %v2390
    %v2721 = vunpack.c.h.b16 %v2390
    %v2722 = vunpack.c.l.b16 %v2391
    %v2723 = vunpack.c.h.b16 %v2391
    %v2724 = vunpack.c.l.b16 %v2392
    %v2725 = vunpack.c.h.b16 %v2392
    %v2726 = vunpack.c.l.b16 %v2393
    %v2727 = vunpack.c.h.b16 %v2393
    %v2728 = vunpack.c.l.b16 %v2394
    %v2729 = vunpack.c.h.b16 %v2394
    %v2730 = vunpack.c.l.b16 %v2395
    %v2731 = vunpack.c.h.b16 %v2395
    %v2732 = vunpack.c.l.b16 %v2396
    %v2733 = vunpack.c.h.b16 %v2396
    %v2734 = vunpack.c.l.b16 %v2397
    %v2735 = vunpack.c.h.b16 %v2397
    %v2736 = vunpack.c.l.b16 %v2398
    %v2737 = vunpack.c.h.b16 %v2398
    %v2738 = vunpack.c.l.b16 %v2399
    %v2739 = vunpack.c.h.b16 %v2399
    %v2740 = vunpack.c.l.b16 %v2400
    %v2741 = vunpack.c.h.b16 %v2400
    %v2742 = vunpack.c.l.b16 %v2401
    %v2743 = vunpack.c.h.b16 %v2401
    %v2744 = vunpack.c.l.b16 %v2402
    %v2745 = vunpack.c.h.b16 %v2402
    %v2746 = vunpack.c.l.b16 %v2403
    %v2747 = vunpack.c.h.b16 %v2403
    %v2748 = vunpack.c.l.b16 %v2404
    %v2749 = vunpack.c.h.b16 %v2404
    %v2750 = vunpack.c.l.b16 %v2405
    %v2751 = vunpack.c.h.b16 %v2405
    %v2752 = vunpack.c.l.b16 %v2406
    %v2753 = vunpack.c.h.b16 %v2406
    %v2754 = vunpack.c.l.b16 %v2407
    %v2755 = vunpack.c.h.b16 %v2407
    %v2756 = vunpack.c.l.b16 %v2408
    %v2757 = vunpack.c.h.b16 %v2408
    %v2758 = vunpack.c.l.b16 %v2409
    %v2759 = vunpack.c.h.b16 %v2409
    %v2760 = vunpack.c.l.b16 %v2410
    %v2761 = vunpack.c.h.b16 %v2410
    %v2762 = vunpack.c.l.b16 %v2411
    %v2763 = vunpack.c.h.b16 %v2411
    %v2764 = vunpack.c.l.b16 %v2412
    %v2765 = vunpack.c.h.b16 %v2412
    %v2766 = vunpack.c.l.b16 %v2413
    %v2767 = vunpack.c.h.b16 %v2413
    %v2768 = vunpack.c.l.b16 %v2414
    %v2769 = vunpack.c.h.b16 %v2414
    %v2770 = vunpack.c.l.b16 %v2415
    %v2771 = vunpack.c.h.b16 %v2415
    %v2772 = vunpack.c.l.b16 %v2416
    %v2773 = vunpack.c.h.b16 %v2416
    %v2774 = vunpack.c.l.b16 %v2417
    %v2775 = vunpack.c.h.b16 %v2417
    %v2776 = vunpack.c.l.b16 %v2418
    %v2777 = vunpack.c.h.b16 %v2418
    %v2778 = vunpack.c.l.b16 %v2419
    %v2779 = vunpack.c.h.b16 %v2419
    %v2780 = vunpack.c.l.b16 %v2420
    %v2781 = vunpack.c.h.b16 %v2420
    %v2782 = vunpack.c.l.b16 %v2421
    %v2783 = vunpack.c.h.b16 %v2421
    %v2784 = vunpack.c.l.b16 %v2422
    %v2785 = vunpack.c.h.b16 %v2422
    %v2786 = vunpack.c.l.b16 %v2423
    %v2787 = vunpack.c.h.b16 %v2423
    %v2788 = vunpack.c.l.b16 %v2424
    %v2789 = vunpack.c.h.b16 %v2424
    %v2790 = vunpack.c.l.b16 %v2425
    %v2791 = vunpack.c.h.b16 %v2425
    %v2792 = vunpack.c.l.b16 %v2426
    %v2793 = vunpack.c.h.b16 %v2426
    %v2794 = vunpack.c.l.b16 %v2427
    %v2795 = vunpack.c.h.b16 %v2427
    %v2796 = vunpack.c.l.b16 %v2428
    %v2797 = vunpack.c.h.b16 %v2428
    %v2798 = vunpack.c.l.b16 %v2429
    %v2799 = vunpack.c.h.b16 %v2429
    %v2800 = vunpack.c.l.b16 %v2430
    %v2801 = vunpack.c.h.b16 %v2430
    %v2802 = vunpack.c.l.b16 %v2431
    %v2803 = vunpack.c.h.b16 %v2431
    %v2804 = vunpack.c.l.b16 %v2432
    %v2805 = vunpack.c.h.b16 %v2432
    %v2806 = vunpack.c.l.b16 %v2433
    %v2807 = vunpack.c.h.b16 %v2433
    %v2808 = vunpack.c.l.b16 %v2434
    %v2809 = vunpack.c.h.b16 %v2434
    %v2810 = vunpack.c.l.b16 %v2435
    %v2811 = vunpack.c.h.b16 %v2435
    %v2812 = vunpack.c.l.b16 %v2436
    %v2813 = vunpack.c.h.b16 %v2436
    %v2814 = vunpack.c.l.b16 %v2437
    %v2815 = vunpack.c.h.b16 %v2437
    %v2816 = vunpack.c.l.b16 %v2438
    %v2817 = vunpack.c.h.b16 %v2438
    %v2818 = vunpack.c.l.b16 %v2439
    %v2819 = vunpack.c.h.b16 %v2439
    %v2820 = vunpack.c.l.b16 %v2440
    %v2821 = vunpack.c.h.b16 %v2440
    %v2822 = vunpack.c.l.b16 %v2441
    %v2823 = vunpack.c.h.b16 %v2441
    %v2824 = vunpack.c.l.b16 %v2442
    %v2825 = vunpack.c.h.b16 %v2442
    %v2826 = vunpack.c.l.b16 %v2443
    %v2827 = vunpack.c.h.b16 %v2443
    %v2828 = vunpack.c.l.b16 %v2444
    %v2829 = vunpack.c.h.b16 %v2444
    %v2830 = vunpack.c.l.b16 %v2445
    %v2831 = vunpack.c.h.b16 %v2445
    %v2832 = vunpack.c.l.b16 %v2446
    %v2833 = vunpack.c.h.b16 %v2446
    %v2834 = vunpack.c.l.b16 %v2447
    %v2835 = vunpack.c.h.b16 %v2447
    %v2836 = vunpack.c.l.b16 %v2448
    %v2837 = vunpack.c.h.b16 %v2448
    %v2838 = vunpack.c.l.b16 %v2449
    %v2839 = vunpack.c.h.b16 %v2449
    %v2840 = vunpack.c.l.b16 %v2450
    %v2841 = vunpack.c.h.b16 %v2450
    %v2842 = vunpack.c.l.b16 %v2451
    %v2843 = vunpack.c.h.b16 %v2451
    %v2844 = vunpack.c.l.b16 %v2452
    %v2845 = vunpack.c.h.b16 %v2452
    %v2846 = vunpack.c.l.b16 %v2453
    %v2847 = vunpack.c.h.b16 %v2453
    %v2848 = vunpack.c.l.b16 %v2454
    %v2849 = vunpack.c.h.b16 %v2454
    %v2850 = vunpack.c.l.b16 %v2455
    %v2851 = vunpack.c.h.b16 %v2455
    %v2852 = vpack.c.b16 %v2598, %v2596
    %v2853 = vpack.c.b16 %v2599, %v2597
    %v2854 = vpack.c.b16 %v2602, %v2600
    %v2855 = vpack.c.b16 %v2603, %v2601
    %v2856 = vpack.c.b16 %v2606, %v2604
    %v2857 = vpack.c.b16 %v2607, %v2605
    %v2858 = vpack.c.b16 %v2610, %v2608
    %v2859 = vpack.c.b16 %v2611, %v2609
    %v2860 = vpack.c.b16 %v2614, %v2612
    %v2861 = vpack.c.b16 %v2615, %v2613
    %v2862 = vpack.c.b16 %v2618, %v2616
    %v2863 = vpack.c.b16 %v2619, %v2617
    %v2864 = vpack.c.b16 %v2622, %v2620
    %v2865 = vpack.c.b16 %v2623, %v2621
    %v2866 = vpack.c.b16 %v2626, %v2624
    %v2867 = vpack.c.b16 %v2627, %v2625
    %v2868 = vpack.c.b16 %v2630, %v2628
    %v2869 = vpack.c.b16 %v2631, %v2629
    %v2870 = vpack.c.b16 %v2634, %v2632
    %v2871 = vpack.c.b16 %v2635, %v2633
    %v2872 = vpack.c.b16 %v2638, %v2636
    %v2873 = vpack.c.b16 %v2639, %v2637
    %v2874 = vpack.c.b16 %v2642, %v2640
    %v2875 = vpack.c.b16 %v2643, %v2641
    %v2876 = vpack.c.b16 %v2646, %v2644
    %v2877 = vpack.c.b16 %v2647, %v2645
    %v2878 = vpack.c.b16 %v2650, %v2648
    %v2879 = vpack.c.b16 %v2651, %v2649
    %v2880 = vpack.c.b16 %v2654, %v2652
    %v2881 = vpack.c.b16 %v2655, %v2653
    %v2882 = vpack.c.b16 %v2658, %v2656
    %v2883 = vpack.c.b16 %v2659, %v2657
    %v2884 = vpack.c.b16 %v2662, %v2660
    %v2885 = vpack.c.b16 %v2663, %v2661
    %v2886 = vpack.c.b16 %v2666, %v2664
    %v2887 = vpack.c.b16 %v2667, %v2665
    %v2888 = vpack.c.b16 %v2670, %v2668
    %v2889 = vpack.c.b16 %v2671, %v2669
    %v2890 = vpack.c.b16 %v2674, %v2672
    %v2891 = vpack.c.b16 %v2675, %v2673
    %v2892 = vpack.c.b16 %v2678, %v2676
    %v2893 = vpack.c.b16 %v2679, %v2677
    %v2894 = vpack.c.b16 %v2682, %v2680
    %v2895 = vpack.c.b16 %v2683, %v2681
    %v2896 = vpack.c.b16 %v2686, %v2684
    %v2897 = vpack.c.b16 %v2687, %v2685
    %v2898 = vpack.c.b16 %v2690, %v2688
    %v2899 = vpack.c.b16 %v2691, %v2689
    %v2900 = vpack.c.b16 %v2694, %v2692
    %v2901 = vpack.c.b16 %v2695, %v2693
    %v2902 = vpack.c.b16 %v2698, %v2696
    %v2903 = vpack.c.b16 %v2699, %v2697
    %v2904 = vpack.c.b16 %v2702, %v2700
    %v2905 = vpack.c.b16 %v2703, %v2701
    %v2906 = vpack.c.b16 %v2706, %v2704
    %v2907 = vpack.c.b16 %v2707, %v2705
    %v2908 = vpack.c.b16 %v2710, %v2708
    %v2909 = vpack.c.b16 %v2711, %v2709
    %v2910 = vpack.c.b16 %v2714, %v2712
    %v2911 = vpack.c.b16 %v2715, %v2713
    %v2912 = vpack.c.b16 %v2718, %v2716
    %v2913 = vpack.c.b16 %v2719, %v2717
    %v2914 = vpack.c.b16 %v2722, %v2720
    %v2915 = vpack.c.b16 %v2723, %v2721
    %v2916 = vpack.c.b16 %v2726, %v2724
    %v2917 = vpack.c.b16 %v2727, %v2725
    %v2918 = vpack.c.b16 %v2730, %v2728
    %v2919 = vpack.c.b16 %v2731, %v2729
    %v2920 = vpack.c.b16 %v2734, %v2732
    %v2921 = vpack.c.b16 %v2735, %v2733
    %v2922 = vpack.c.b16 %v2738, %v2736
    %v2923 = vpack.c.b16 %v2739, %v2737
    %v2924 = vpack.c.b16 %v2742, %v2740
    %v2925 = vpack.c.b16 %v2743, %v2741
    %v2926 = vpack.c.b16 %v2746, %v2744
    %v2927 = vpack.c.b16 %v2747, %v2745
    %v2928 = vpack.c.b16 %v2750, %v2748
    %v2929 = vpack.c.b16 %v2751, %v2749
    %v2930 = vpack.c.b16 %v2754, %v2752
    %v2931 = vpack.c.b16 %v2755, %v2753
    %v2932 = vpack.c.b16 %v2758, %v2756
    %v2933 = vpack.c.b16 %v2759, %v2757
    %v2934 = vpack.c.b16 %v2762, %v2760
    %v2935 = vpack.c.b16 %v2763, %v2761
    %v2936 = vpack.c.b16 %v2766, %v2764
    %v2937 = vpack.c.b16 %v2767, %v2765
    %v2938 = vpack.c.b16 %v2770, %v2768
    %v2939 = vpack.c.b16 %v2771, %v2769
    %v2940 = vpack.c.b16 %v2774, %v2772
    %v2941 = vpack.c.b16 %v2775, %v2773
    %v2942 = vpack.c.b16 %v2778, %v2776
    %v2943 = vpack.c.b16 %v2779, %v2777
    %v2944 = vpack.c.b16 %v2782, %v2780
    %v2945 = vpack.c.b16 %v2783, %v2781
    %v2946 = vpack.c.b16 %v2786, %v2784
    %v2947 = vpack.c.b16 %v2787, %v2785
    %v2948 = vpack.c.b16 %v2790, %v2788
    %v2949 = vpack.c.b16 %v2791, %v2789
    %v2950 = vpack.c.b16 %v2794, %v2792
    %v2951 = vpack.c.b16 %v2795, %v2793
    %v2952 = vpack.c.b16 %v2798, %v2796
    %v2953 = vpack.c.b16 %v2799, %v2797
    %v2954 = vpack.c.b16 %v2802, %v2800
    %v2955 = vpack.c.b16 %v2803, %v2801
    %v2956 = vpack.c.b16 %v2806, %v2804
    %v2957 = vpack.c.b16 %v2807, %v2805
    %v2958 = vpack.c.b16 %v2810, %v2808
    %v2959 = vpack.c.b16 %v2811, %v2809
    %v2960 = vpack.c.b16 %v2814, %v2812
    %v2961 = vpack.c.b16 %v2815, %v2813
    %v2962 = vpack.c.b16 %v2818, %v2816
    %v2963 = vpack.c.b16 %v2819, %v2817
    %v2964 = vpack.c.b16 %v2822, %v2820
    %v2965 = vpack.c.b16 %v2823, %v2821
    %v2966 = vpack.c.b16 %v2826, %v2824
    %v2967 = vpack.c.b16 %v2827, %v2825
    %v2968 = vpack.c.b16 %v2830, %v2828
    %v2969 = vpack.c.b16 %v2831, %v2829
    %v2970 = vpack.c.b16 %v2834, %v2832
    %v2971 = vpack.c.b16 %v2835, %v2833
    %v2972 = vpack.c.b16 %v2838, %v2836
    %v2973 = vpack.c.b16 %v2839, %v2837
    %v2974 = vpack.c.b16 %v2842, %v2840
    %v2975 = vpack.c.b16 %v2843, %v2841
    %v2976 = vpack.c.b16 %v2846, %v2844
    %v2977 = vpack.c.b16 %v2847, %v2845
    %v2978 = vpack.c.b16 %v2850, %v2848
    %v2979 = vpack.c.b16 %v2851, %v2849
    %3108 = vmatprep.subr.bf16.mxu0 %v2867
    %3109 = vmatpush1.bf16.msra.mxu0 %v2866
    %3110 = vmatprep.subr.bf16.mxu0 %v2865
    %3111 = vmatpush1.bf16.msra.mxu0 %v2864
    %3112 = vmatprep.subr.bf16.mxu0 %v2863
    %3113 = vmatpush1.bf16.msra.mxu0 %v2862
    %3114 = vmatprep.subr.bf16.mxu0 %v2861
    %3115 = vmatpush1.bf16.msra.mxu0 %v2860
    %3116 = vmatprep.subr.bf16.mxu0 %v2859
    %3117 = vmatpush1.bf16.msra.mxu0 %v2858
    %3118 = vmatprep.subr.bf16.mxu0 %v2857
    %3119 = vmatpush1.bf16.msra.mxu0 %v2856
    %3120 = vmatprep.subr.bf16.mxu0 %v2855
    %3121 = vmatpush1.bf16.msra.mxu0 %v2854
    %3122 = vmatprep.subr.bf16.mxu0 %v2853
    %3123 = vmatpush1.bf16.msra.mxu0 %v2852
    %3124 = vmatprep.subr.bf16.mxu0 %v2883
    %3125 = vmatpush2.bf16.msra.mxu0 %v2882
    %3126 = vmatprep.subr.bf16.mxu0 %v2881
    %3127 = vmatpush2.bf16.msra.mxu0 %v2880
    %3128 = vmatprep.subr.bf16.mxu0 %v2879
    %3129 = vmatpush2.bf16.msra.mxu0 %v2878
    %3130 = vmatprep.subr.bf16.mxu0 %v2877
    %3131 = vmatpush2.bf16.msra.mxu0 %v2876
    %3132 = vmatprep.subr.bf16.mxu0 %v2875
    %3133 = vmatpush2.bf16.msra.mxu0 %v2874
    %3134 = vmatprep.subr.bf16.mxu0 %v2873
    %3135 = vmatpush2.bf16.msra.mxu0 %v2872
    %3136 = vmatprep.subr.bf16.mxu0 %v2871
    %3137 = vmatpush2.bf16.msra.mxu0 %v2870
    %3138 = vmatprep.subr.bf16.mxu0 %v2869
    %3139 = vmatpush2.bf16.msra.mxu0 %v2868
    %3140 = vmatprep.mubr.bf16.mxu0 %v2321
    %3141 = vmatmul.mubr.bf16.gmra.mxu0 %v2320
    %v3142 = vpop.f32.mrf.mxu0
    %v3143 = vadd.f32 %v2461, %v3142
    %v3144 = vpop.f32.mrf.mxu0
    %v3145 = vadd.f32 %v2465, %v3144
    %v3146 = vpop.f32.mrf.mxu0
    %v3147 = vpop.f32.mrf.mxu0
    %3148 = vdwg.mxu0
    %3149 = vmatprep.subr.bf16.mxu0 %v2899
    %3150 = vmatpush1.bf16.msra.mxu0 %v2898
    %3151 = vmatprep.subr.bf16.mxu0 %v2897
    %3152 = vmatpush1.bf16.msra.mxu0 %v2896
    %3153 = vmatprep.subr.bf16.mxu0 %v2895
    %3154 = vmatpush1.bf16.msra.mxu0 %v2894
    %3155 = vmatprep.subr.bf16.mxu0 %v2893
    %3156 = vmatpush1.bf16.msra.mxu0 %v2892
    %3157 = vmatprep.subr.bf16.mxu0 %v2891
    %3158 = vmatpush1.bf16.msra.mxu0 %v2890
    %3159 = vmatprep.subr.bf16.mxu0 %v2889
    %3160 = vmatpush1.bf16.msra.mxu0 %v2888
    %3161 = vmatprep.subr.bf16.mxu0 %v2887
    %3162 = vmatpush1.bf16.msra.mxu0 %v2886
    %3163 = vmatprep.subr.bf16.mxu0 %v2885
    %3164 = vmatpush1.bf16.msra.mxu0 %v2884
    %3165 = vmatprep.subr.bf16.mxu0 %v2915
    %3166 = vmatpush2.bf16.msra.mxu0 %v2914
    %3167 = vmatprep.subr.bf16.mxu0 %v2913
    %3168 = vmatpush2.bf16.msra.mxu0 %v2912
    %3169 = vmatprep.subr.bf16.mxu0 %v2911
    %3170 = vmatpush2.bf16.msra.mxu0 %v2910
    %3171 = vmatprep.subr.bf16.mxu0 %v2909
    %3172 = vmatpush2.bf16.msra.mxu0 %v2908
    %3173 = vmatprep.subr.bf16.mxu0 %v2907
    %3174 = vmatpush2.bf16.msra.mxu0 %v2906
    %3175 = vmatprep.subr.bf16.mxu0 %v2905
    %3176 = vmatpush2.bf16.msra.mxu0 %v2904
    %3177 = vmatprep.subr.bf16.mxu0 %v2903
    %3178 = vmatpush2.bf16.msra.mxu0 %v2902
    %3179 = vmatprep.subr.bf16.mxu0 %v2901
    %3180 = vmatpush2.bf16.msra.mxu0 %v2900
    %3181 = vmatprep.mubr.bf16.mxu0 %v2323
    %3182 = vmatmul.mubr.bf16.gmra.mxu0 %v2322
    %v3183 = vpop.f32.mrf.mxu0
    %v3184 = vadd.f32 %v3143, %v3183
    %v3185 = vpop.f32.mrf.mxu0
    %v3186 = vadd.f32 %v3145, %v3185
    %v3187 = vpop.f32.mrf.mxu0
    %v3188 = vpop.f32.mrf.mxu0
    %3189 = vdwg.mxu0
    %3190 = vmatprep.subr.bf16.mxu0 %v2931
    %3191 = vmatpush1.bf16.msra.mxu0 %v2930
    %3192 = vmatprep.subr.bf16.mxu0 %v2929
    %3193 = vmatpush1.bf16.msra.mxu0 %v2928
    %3194 = vmatprep.subr.bf16.mxu0 %v2927
    %3195 = vmatpush1.bf16.msra.mxu0 %v2926
    %3196 = vmatprep.subr.bf16.mxu0 %v2925
    %3197 = vmatpush1.bf16.msra.mxu0 %v2924
    %3198 = vmatprep.subr.bf16.mxu0 %v2923
    %3199 = vmatpush1.bf16.msra.mxu0 %v2922
    %3200 = vmatprep.subr.bf16.mxu0 %v2921
    %3201 = vmatpush1.bf16.msra.mxu0 %v2920
    %3202 = vmatprep.subr.bf16.mxu0 %v2919
    %3203 = vmatpush1.bf16.msra.mxu0 %v2918
    %3204 = vmatprep.subr.bf16.mxu0 %v2917
    %3205 = vmatpush1.bf16.msra.mxu0 %v2916
    %3206 = vmatprep.subr.bf16.mxu0 %v2947
    %3207 = vmatpush2.bf16.msra.mxu0 %v2946
    %3208 = vmatprep.subr.bf16.mxu0 %v2945
    %3209 = vmatpush2.bf16.msra.mxu0 %v2944
    %3210 = vmatprep.subr.bf16.mxu0 %v2943
    %3211 = vmatpush2.bf16.msra.mxu0 %v2942
    %3212 = vmatprep.subr.bf16.mxu0 %v2941
    %3213 = vmatpush2.bf16.msra.mxu0 %v2940
    %3214 = vmatprep.subr.bf16.mxu0 %v2939
    %3215 = vmatpush2.bf16.msra.mxu0 %v2938
    %3216 = vmatprep.subr.bf16.mxu0 %v2937
    %3217 = vmatpush2.bf16.msra.mxu0 %v2936
    %3218 = vmatprep.subr.bf16.mxu0 %v2935
    %3219 = vmatpush2.bf16.msra.mxu0 %v2934
    %3220 = vmatprep.subr.bf16.mxu0 %v2933
    %3221 = vmatpush2.bf16.msra.mxu0 %v2932
    %3222 = vmatprep.mubr.bf16.mxu0 %v2325
    %3223 = vmatmul.mubr.bf16.gmra.mxu0 %v2324
    %v3224 = vpop.f32.mrf.mxu0
    %v3225 = vadd.f32 %v3184, %v3224
    %v3226 = vpop.f32.mrf.mxu0
    %v3227 = vadd.f32 %v3186, %v3226
    %v3228 = vpop.f32.mrf.mxu0
    %v3229 = vpop.f32.mrf.mxu0
    %3230 = vdwg.mxu0
    %3231 = vmatprep.subr.bf16.mxu0 %v2963
    %3232 = vmatpush1.bf16.msra.mxu0 %v2962
    %3233 = vmatprep.subr.bf16.mxu0 %v2961
    %3234 = vmatpush1.bf16.msra.mxu0 %v2960
    %3235 = vmatprep.subr.bf16.mxu0 %v2959
    %3236 = vmatpush1.bf16.msra.mxu0 %v2958
    %3237 = vmatprep.subr.bf16.mxu0 %v2957
    %3238 = vmatpush1.bf16.msra.mxu0 %v2956
    %3239 = vmatprep.subr.bf16.mxu0 %v2955
    %3240 = vmatpush1.bf16.msra.mxu0 %v2954
    %3241 = vmatprep.subr.bf16.mxu0 %v2953
    %3242 = vmatpush1.bf16.msra.mxu0 %v2952
    %3243 = vmatprep.subr.bf16.mxu0 %v2951
    %3244 = vmatpush1.bf16.msra.mxu0 %v2950
    %3245 = vmatprep.subr.bf16.mxu0 %v2949
    %3246 = vmatpush1.bf16.msra.mxu0 %v2948
    %3247 = vmatprep.subr.bf16.mxu0 %v2979
    %3248 = vmatpush2.bf16.msra.mxu0 %v2978
    %3249 = vmatprep.subr.bf16.mxu0 %v2977
    %3250 = vmatpush2.bf16.msra.mxu0 %v2976
    %3251 = vmatprep.subr.bf16.mxu0 %v2975
    %3252 = vmatpush2.bf16.msra.mxu0 %v2974
    %3253 = vmatprep.subr.bf16.mxu0 %v2973
    %3254 = vmatpush2.bf16.msra.mxu0 %v2972
    %3255 = vmatprep.subr.bf16.mxu0 %v2971
    %3256 = vmatpush2.bf16.msra.mxu0 %v2970
    %3257 = vmatprep.subr.bf16.mxu0 %v2969
    %3258 = vmatpush2.bf16.msra.mxu0 %v2968
    %3259 = vmatprep.subr.bf16.mxu0 %v2967
    %3260 = vmatpush2.bf16.msra.mxu0 %v2966
    %3261 = vmatprep.subr.bf16.mxu0 %v2965
    %3262 = vmatpush2.bf16.msra.mxu0 %v2964
    %3263 = vmatprep.mubr.bf16.mxu0 %v2327
    %3264 = vmatmul.mubr.bf16.gmra.mxu0 %v2326
    %v3265 = vpop.f32.mrf.mxu0
    %v3266 = vadd.f32 %v3225, %v3265
    %v3267 = vpop.f32.mrf.mxu0
    %v3268 = vadd.f32 %v3227, %v3267
    %v3269 = vpop.f32.mrf.mxu0
    %v3270 = vpop.f32.mrf.mxu0
    %3271 = vdwg.mxu0
    %v3272 = vmax.f32 %v3266, 0.0
    %v3273 = vmax.f32 %v3268, 0.0
    %v3274 = vld [vmem:[%s8] sm:$0xff]
    %v3275 = vld [vmem:[%s8 + $0x8] sm:$0xff]
    %v3276 = vld [vmem:[%s8 + $0x10] sm:$0xff]
    %v3277 = vld [vmem:[%s8 + $0x18] sm:$0xff]
    %v3278 = vld [vmem:[%s8 + $0x20] sm:$0xff]
    %v3279 = vld [vmem:[%s8 + $0x28] sm:$0xff]
    %v3280 = vld [vmem:[%s8 + $0x30] sm:$0xff]
    %v3281 = vld [vmem:[%s8 + $0x38] sm:$0xff]
    %v3282 = vld [vmem:[%s8 + $0x40] sm:$0xff]
    %v3283 = vld [vmem:[%s8 + $0x48] sm:$0xff]
    %v3284 = vld [vmem:[%s8 + $0x50] sm:$0xff]
    %v3285 = vld [vmem:[%s8 + $0x58] sm:$0xff]
    %v3286 = vld [vmem:[%s8 + $0x60] sm:$0xff]
    %v3287 = vld [vmem:[%s8 + $0x68] sm:$0xff]
    %v3288 = vld [vmem:[%s8 + $0x70] sm:$0xff]
    %v3289 = vld [vmem:[%s8 + $0x78] sm:$0xff]
    %v3290 = vld [vmem:[%s8 + $0x80] sm:$0xff]
    %v3291 = vld [vmem:[%s8 + $0x88] sm:$0xff]
    %v3292 = vld [vmem:[%s8 + $0x90] sm:$0xff]
    %v3293 = vld [vmem:[%s8 + $0x98] sm:$0xff]
    %v3294 = vld [vmem:[%s8 + $0xa0] sm:$0xff]
    %v3295 = vld [vmem:[%s8 + $0xa8] sm:$0xff]
    %v3296 = vld [vmem:[%s8 + $0xb0] sm:$0xff]
    %v3297 = vld [vmem:[%s8 + $0xb8] sm:$0xff]
    %v3298 = vld [vmem:[%s8 + $0xc0] sm:$0xff]
    %v3299 = vld [vmem:[%s8 + $0xc8] sm:$0xff]
    %v3300 = vld [vmem:[%s8 + $0xd0] sm:$0xff]
    %v3301 = vld [vmem:[%s8 + $0xd8] sm:$0xff]
    %v3302 = vld [vmem:[%s8 + $0xe0] sm:$0xff]
    %v3303 = vld [vmem:[%s8 + $0xe8] sm:$0xff]
    %v3304 = vld [vmem:[%s8 + $0xf0] sm:$0xff]
    %v3305 = vld [vmem:[%s8 + $0xf8] sm:$0xff]
    %v3306 = vld [vmem:[%s9] sm:$0x1]
    %v3308 = vlaneseq
    %v3309 = vshrl.u32 %v3308, 7
    %v3310 = vsub.s32 0, %v3309
    %v3311 = vrot.slane %v3306, %v3310
    %3313 = vmatprep.subr.mxu0 0.0
    %3314 = vmatpush1.msra.mxu0 %v3289
    %3315 = vmatprep.subr.mxu0 0.0
    %3316 = vmatpush1.msra.mxu0 %v3288
    %3317 = vmatprep.subr.mxu0 0.0
    %3318 = vmatpush1.msra.mxu0 %v3287
    %3319 = vmatprep.subr.mxu0 0.0
    %3320 = vmatpush1.msra.mxu0 %v3286
    %3321 = vmatprep.subr.mxu0 0.0
    %3322 = vmatpush1.msra.mxu0 %v3285
    %3323 = vmatprep.subr.mxu0 0.0
    %3324 = vmatpush1.msra.mxu0 %v3284
    %3325 = vmatprep.subr.mxu0 0.0
    %3326 = vmatpush1.msra.mxu0 %v3283
    %3327 = vmatprep.subr.mxu0 0.0
    %3328 = vmatpush1.msra.mxu0 %v3282
    %3329 = vmatprep.subr.mxu0 0.0
    %3330 = vmatpush1.msra.mxu0 %v3281
    %3331 = vmatprep.subr.mxu0 0.0
    %3332 = vmatpush1.msra.mxu0 %v3280
    %3333 = vmatprep.subr.mxu0 0.0
    %3334 = vmatpush1.msra.mxu0 %v3279
    %3335 = vmatprep.subr.mxu0 0.0
    %3336 = vmatpush1.msra.mxu0 %v3278
    %3337 = vmatprep.subr.mxu0 0.0
    %3338 = vmatpush1.msra.mxu0 %v3277
    %3339 = vmatprep.subr.mxu0 0.0
    %3340 = vmatpush1.msra.mxu0 %v3276
    %3341 = vmatprep.subr.mxu0 0.0
    %3342 = vmatpush1.msra.mxu0 %v3275
    %3343 = vmatprep.subr.mxu0 0.0
    %3344 = vmatpush1.msra.mxu0 %v3274
    %3345 = vmatprep.subr.mxu0 0.0
    %3346 = vmatpush2.msra.mxu0 %v3305
    %3347 = vmatprep.subr.mxu0 0.0
    %3348 = vmatpush2.msra.mxu0 %v3304
    %3349 = vmatprep.subr.mxu0 0.0
    %3350 = vmatpush2.msra.mxu0 %v3303
    %3351 = vmatprep.subr.mxu0 0.0
    %3352 = vmatpush2.msra.mxu0 %v3302
    %3353 = vmatprep.subr.mxu0 0.0
    %3354 = vmatpush2.msra.mxu0 %v3301
    %3355 = vmatprep.subr.mxu0 0.0
    %3356 = vmatpush2.msra.mxu0 %v3300
    %3357 = vmatprep.subr.mxu0 0.0
    %3358 = vmatpush2.msra.mxu0 %v3299
    %3359 = vmatprep.subr.mxu0 0.0
    %3360 = vmatpush2.msra.mxu0 %v3298
    %3361 = vmatprep.subr.mxu0 0.0
    %3362 = vmatpush2.msra.mxu0 %v3297
    %3363 = vmatprep.subr.mxu0 0.0
    %3364 = vmatpush2.msra.mxu0 %v3296
    %3365 = vmatprep.subr.mxu0 0.0
    %3366 = vmatpush2.msra.mxu0 %v3295
    %3367 = vmatprep.subr.mxu0 0.0
    %3368 = vmatpush2.msra.mxu0 %v3294
    %3369 = vmatprep.subr.mxu0 0.0
    %3370 = vmatpush2.msra.mxu0 %v3293
    %3371 = vmatprep.subr.mxu0 0.0
    %3372 = vmatpush2.msra.mxu0 %v3292
    %3373 = vmatprep.subr.mxu0 0.0
    %3374 = vmatpush2.msra.mxu0 %v3291
    %3375 = vmatprep.subr.mxu0 0.0
    %3376 = vmatpush2.msra.mxu0 %v3290
    %3377 = vmatprep.mubr.f32.mxu0 %v3273
    %3378 = vmatmul.mubr.f32.gmra.mxu0 %v3272
    %v3379 = vpop.f32.mrf.mxu0
    %v3380 = vadd.f32 %v3311, %v3379
    %v3381 = vpop.f32.mrf.mxu0
    %3382 = vdwg.mxu0
    %v3383 = vlaneseq
    %v3384 = vand.u32 %v3383, 127
    %vm3385 = vcmp.lt.s32.totalorder %v3384, 8
    %v3386 = vsel %vm3385, %v3380, -1e+30
    %3387 = vmax.xlane.f32.xlu0 %v3386
    %v3388 = vpop.xlane.xlu0 %3387
    %v3389 = vsub.f32 %v3386, %v3388
    %v3390 = vmul.f32 %v3389, 1.442695
    %v3391 = vpow.pop %v3390
    %3392 = vadd.xlane.f32.xlu0 %v3391
    %v3393 = vpop.xlane.xlu0 %3392
    %v3394 = vrcp.pop %v3393
    %v3395 = vmul.f32 %v3391, %v3394
    %3396 = vst [vmem:[%s10] sm:$0xff] %v3395
  $region49: #{mfcc_lstm_forward.1} parent=0 // pred_fallthru
    _
  // Predicated region
  $region50: #{mfcc_lstm_forward.1} parent=0 // pred_check
    _
  $region51: #{mfcc_lstm_forward.1} parent=0 // pred_check_branch
    %3398 = sbr.rel (0) target = $region53
  $region52: #{mfcc_lstm_forward.1} parent=0 // pred_region
    _
  $region53: #{mfcc_lstm_forward.1} parent=0 // pred_fallthru
    _
  // Predicated region
  $region54: #{mfcc_lstm_forward.1} parent=0 // pred_check
    _
  $region55: #{mfcc_lstm_forward.1} parent=0 // pred_check_branch
    %3400 = sbr.rel (0) target = $region57
  $region56: #{mfcc_lstm_forward.1} parent=0 // pred_region
    _
  $region57: #{mfcc_lstm_forward.1} parent=0 // pred_fallthru
    _

</llo_original>
